<compile_context>
chip_gen: v5e
topology: v5e:2x2
jax: 0.10.0
libtpu: 0.0.40
codegen_flags: <defaults>
</compile_context>

<pallas_src>
import functools

import jax
import jax.numpy as jnp
from jax.experimental import pallas as pl
from jax.experimental.pallas import tpu as pltpu


def _round_up(n, m):
    return ((n + m - 1) // m) * m


# ----------------------------- Pallas kernel ------------------------------ #

def convgru_kernel(x_ref, h_ref, wur_ref, wo_ref, bur_ref, bo_ref, coord_ref,
                   out_ref, patch_ref, upd_ref, *, H, W, K, Cip, Ch, pad_rows):
    """One batch-tile per grid step (channels x flat batch*spatial layout).

    x_ref    : (Cip, N)            input, channels zero-padded to Cip (mult of 8)
    h_ref    : (Ch, N)             previous hidden state
    wur_ref  : (2*Ch, KKblk_pad)   fused update+reset weights (flat im2col cols)
    wo_ref   : (Ch, KKblk_pad)     out-gate weights
    bur_ref  : (2*Ch, 1)           [b_update; b_reset]
    bo_ref   : (Ch, 1)             b_out
    coord_ref: (2, N)              int32 per-lane frame row / col indices
    out_ref  : (Ch, N)             new hidden state (lane-dense)
    patch_ref: (KKblk_pad, N)      VMEM im2col scratch
    upd_ref  : (Ch, N)             VMEM stash for the update gate
    """
    N = out_ref.shape[-1]              # Bt * H * W (flat lane axis)
    KK = K * K
    p = K // 2
    blk = Cip + Ch
    cen = p * K + p                    # centre tap index
    KKblk = KK * blk

    # Zero the contraction-pad rows (weight pad columns are zero, but
    # uninitialised VMEM could hold NaN and poison 0*NaN accumulation).
    if pad_rows > 0:
        patch_ref[KKblk:KKblk + pad_rows, :] = jnp.zeros((pad_rows, N),
                                                         jnp.float32)

    def tap_mask(t):
        """Per-tap validity mask (1 inside the frame, 0 at the border)."""
        dy, dx = divmod(t, K)
        oy, ox = dy - p, dx - p
        rr = coord_ref[0:1, :]         # (1, N) row index i, re-read (cheap vld)
        cc = coord_ref[1:2, :]         # (1, N) col index j
        cond = None

        def _and(c):
            nonlocal cond
            cond = c if cond is None else jnp.logical_and(cond, c)

        if oy < 0:
            _and(rr >= -oy)
        elif oy > 0:
            _and(rr < H - oy)
        if ox < 0:
            _and(cc >= -ox)
        elif ox > 0:
            _and(cc < W - ox)
        return cond.astype(jnp.float32)

    def fill(load_src, row_off, nrows, skip_center=False):
        """Write mask_t * shift_t(src) into patch rows [t*blk+row_off, +nrows).

        `load_src()` re-reads the source ref per tap (no hoisted live value).
        Rolling the flat N axis cannot corrupt valid outputs: any position
        whose source leaves its own frame is exactly a masked position.
        """
        for t in range(KK):
            r0 = t * blk + row_off
            if t == cen:
                if not skip_center:
                    patch_ref[r0:r0 + nrows, :] = load_src()
                continue
            dy, dx = divmod(t, K)
            s = (dy - p) * W + (dx - p)            # flat source offset of tap t
            rolled = pltpu.roll(load_src(), (-s) % N, axis=1)   # == jnp.roll
            patch_ref[r0:r0 + nrows, :] = rolled * tap_mask(t)

    # Shared im2col patch for [x, h] (reused by the fused update+reset dot).
    fill(lambda: x_ref[...], 0, Cip)
    fill(lambda: h_ref[...], Cip, Ch)

    # Fused update + reset pre-activations: ONE (2Ch, KKblk_pad)x(KKblk_pad, N)
    # MXU dot, f32 accumulate, bias broadcast-added.
    ur = jnp.dot(wur_ref[...], patch_ref[...],
                 preferred_element_type=jnp.float32) + bur_ref[...]
    upd_ref[...] = jax.nn.sigmoid(ur[:Ch, :])          # stash update in VMEM
    reset = jax.nn.sigmoid(ur[Ch:, :])

    # Out gate: overwrite only the h-rows of the patch with reset*h.  The
    # product is staged through the centre-tap rows so no (Ch, N) value stays
    # live in vregs across the fill; shifted taps re-read it from the patch.
    rh0 = cen * blk + Cip
    patch_ref[rh0:rh0 + Ch, :] = reset * h_ref[...]
    fill(lambda: patch_ref[rh0:rh0 + Ch, :], Cip, Ch, skip_center=True)

    o_pre = jnp.dot(wo_ref[...], patch_ref[...],
                    preferred_element_type=jnp.float32) + bo_ref[...]
    out_inputs = jnp.tanh(o_pre)

    update = upd_ref[...]
    out_ref[...] = (h_ref[...] * (1.0 - update)
                    + out_inputs * update).astype(out_ref.dtype)


# ------------------------------ JAX wrapper -------------------------------- #

def convgru_forward(x_nchw, prev_state_nchw, params, *, kernel_size):
    """ConvGRU cell forward.

    x_nchw          : (B, Ci, H, W)  float32
    prev_state_nchw : (B, Ch, H, W)  float32 or None
    params          : dict of weights (PyTorch OIHW layout) and biases
    returns         : (B, Ch, H, W)  new state
    """
    K = kernel_size
    B, Ci, H, W = x_nchw.shape
    Ch = params["w_update"].shape[0]
    HW = H * W
    KK = K * K
    Cip = _round_up(Ci, 8)             # pad x channels to a sublane multiple
    blk = Cip + Ch
    KKblk = KK * blk
    KKblk_pad = _round_up(KKblk, 128)  # lane-dense weight contraction dim
    pad_rows = KKblk_pad - KKblk

    if prev_state_nchw is None:
        prev_state_nchw = jnp.zeros((B, Ch, H, W), x_nchw.dtype)

    # Batch tile: fold Bt images onto the lane axis (N = Bt*HW in 512-2048).
    max_lanes = 2048
    if B * HW <= max_lanes or HW % 128 != 0:
        Bt = B
    else:
        Bt = 1
        for cand in range(max(1, max_lanes // HW), 0, -1):
            if B % cand == 0:
                Bt = cand
                break
    Ntile = Bt * HW
    nb = B // Bt

    # Channels-major with batch folded onto the lane axis: (C, B*HW).
    x = jnp.transpose(x_nchw.reshape(B, Ci, HW), (1, 0, 2)).reshape(Ci, B * HW)
    x = jnp.pad(x, ((0, Cip - Ci), (0, 0)))
    h = jnp.transpose(prev_state_nchw.reshape(B, Ch, HW),
                      (1, 0, 2)).reshape(Ch, B * HW)

    # Weights: OIHW (Ch, Ci+Ch, K, K) -> (Ch, KK*blk) flat im2col columns,
    # column index = (dy*K+dx)*blk + c, with c in [0,Cip) the (zero-padded)
    # x part and c in [Cip, blk) the h part — matching the patch row layout.
    def prep_w(w_oihw):
        wx = jnp.pad(w_oihw[:, :Ci], ((0, 0), (0, Cip - Ci), (0, 0), (0, 0)))
        wh = w_oihw[:, Ci:]
        wc = jnp.concatenate([wx, wh], axis=1)          # (Ch, blk, K, K)
        wc = jnp.transpose(wc, (0, 2, 3, 1))            # (Ch, dy, dx, blk)
        wc = wc.reshape(Ch, KKblk)
        return jnp.pad(wc, ((0, 0), (0, pad_rows)))     # (Ch, KKblk_pad)

    w_ur = jnp.concatenate([prep_w(params["w_update"]),
                            prep_w(params["w_reset"])], axis=0)   # (2Ch, Kpad)
    w_o = prep_w(params["w_out"])                                  # (Ch, Kpad)
    b_ur = jnp.concatenate([params["b_update"],
                            params["b_reset"]]).reshape(2 * Ch, 1)
    b_o = params["b_out"].reshape(Ch, 1)

    # Grid-invariant per-lane frame coordinates (row, col) for in-kernel masks.
    q = jnp.arange(HW, dtype=jnp.int32)
    coords = jnp.stack([jnp.tile(q // W, Bt), jnp.tile(q % W, Bt)],
                       axis=0)                                     # (2, Ntile)

    kern = functools.partial(convgru_kernel, H=H, W=W, K=K, Cip=Cip, Ch=Ch,
                             pad_rows=pad_rows)

    flops = 2 * 3 * Ch * KKblk * B * HW
    transcendentals = 3 * Ch * B * HW
    bytes_accessed = 4 * (Cip * B * HW + 2 * Ch * B * HW
                          + 3 * Ch * KKblk_pad + 3 * Ch + 2 * Ntile)

    out_flat = pl.pallas_call(
        kern,
        out_shape=jax.ShapeDtypeStruct((Ch, B * HW), x_nchw.dtype),
        grid_spec=pltpu.PrefetchScalarGridSpec(
            num_scalar_prefetch=0,
            grid=(nb,),
            in_specs=[
                pl.BlockSpec((Cip, Ntile), lambda b: (0, b)),          # x
                pl.BlockSpec((Ch, Ntile), lambda b: (0, b)),           # h
                pl.BlockSpec((2 * Ch, KKblk_pad), lambda b: (0, 0)),   # w_ur
                pl.BlockSpec((Ch, KKblk_pad), lambda b: (0, 0)),       # w_o
                pl.BlockSpec((2 * Ch, 1), lambda b: (0, 0)),           # b_ur
                pl.BlockSpec((Ch, 1), lambda b: (0, 0)),               # b_o
                pl.BlockSpec((2, Ntile), lambda b: (0, 0)),            # coords
            ],
            out_specs=pl.BlockSpec((Ch, Ntile), lambda b: (0, b)),
            scratch_shapes=[pltpu.VMEM((KKblk_pad, Ntile), jnp.float32),
                            pltpu.VMEM((Ch, Ntile), jnp.float32)],
        ),
        compiler_params=pltpu.CompilerParams(
            dimension_semantics=("parallel",)),
        cost_estimate=pl.CostEstimate(flops=flops,
                                      transcendentals=transcendentals,
                                      bytes_accessed=bytes_accessed),
    )(x, h, w_ur, w_o, b_ur, b_o, coords)

    return out_flat.reshape(Ch, B, H, W).transpose(1, 0, 2, 3)


# -------------------------- pure-JAX reference ----------------------------- #

def convgru_reference(x, prev_state, params, *, kernel_size):
    K = kernel_size
    p = K // 2
    B, Ci, H, W = x.shape
    Ch = params["w_update"].shape[0]
    if prev_state is None:
        prev_state = jnp.zeros((B, Ch, H, W), x.dtype)

    def conv(inp, w_oihw, b):
        y = jax.lax.conv_general_dilated(
            inp, w_oihw, window_strides=(1, 1), padding=[(p, p), (p, p)],
            dimension_numbers=("NCHW", "OIHW", "NCHW"))
        return y + b.reshape(1, -1, 1, 1)

    stacked = jnp.concatenate([x, prev_state], axis=1)
    update = jax.nn.sigmoid(conv(stacked, params["w_update"], params["b_update"]))
    reset = jax.nn.sigmoid(conv(stacked, params["w_reset"], params["b_reset"]))
    out_in = jnp.tanh(conv(jnp.concatenate([x, prev_state * reset], axis=1),
                           params["w_out"], params["b_out"]))
    return prev_state * (1.0 - update) + out_in * update


# --------------------------------- main ------------------------------------ #

if __name__ == "__main__":
    B, Ci, Ch, H, W, K = 2, 4, 32, 16, 16, 3

    key = jax.random.PRNGKey(0)
    kx, kh, ku, kr, ko, kbu, kbr, kbo = jax.random.split(key, 8)

    x = jax.random.normal(kx, (B, Ci, H, W), jnp.float32)
    prev_state = jax.random.normal(kh, (B, Ch, H, W), jnp.float32)

    cin = Ci + Ch
    params = {
        "w_update": 0.1 * jax.random.normal(ku, (Ch, cin, K, K), jnp.float32),
        "w_reset":  0.1 * jax.random.normal(kr, (Ch, cin, K, K), jnp.float32),
        "w_out":    0.1 * jax.random.normal(ko, (Ch, cin, K, K), jnp.float32),
        "b_update": 0.1 * jax.random.normal(kbu, (Ch,), jnp.float32),
        "b_reset":  0.1 * jax.random.normal(kbr, (Ch,), jnp.float32),
        "b_out":    0.1 * jax.random.normal(kbo, (Ch,), jnp.float32),
    }

    out = jax.block_until_ready(convgru_forward(x, prev_state, params, kernel_size=K))
    ref = convgru_reference(x, prev_state, params, kernel_size=K)
    assert out.shape == (B, Ch, H, W)
    assert jnp.allclose(out, ref, atol=1e-4, rtol=1e-4), "mismatch vs reference"

    # prev_state=None path (zero initial state), as in the module's forward().
    out0 = jax.block_until_ready(convgru_forward(x, None, params, kernel_size=K))
    ref0 = convgru_reference(x, None, params, kernel_size=K)
    assert jnp.allclose(out0, ref0, atol=1e-4, rtol=1e-4), "mismatch (None state)"

    print("KERNEL_OK")
</pallas_src>

<mosaic_0001>
module attributes {stable_mosaic.version = 11 : i64} {
  func.func @convgru_kernel(%arg0: i32, %arg1: memref<8x512xf32, #tpu.memory_space<vmem>>, %arg2: memref<32x512xf32, #tpu.memory_space<vmem>>, %arg3: memref<64x384xf32, #tpu.memory_space<vmem>>, %arg4: memref<32x384xf32, #tpu.memory_space<vmem>>, %arg5: memref<64x1xf32, #tpu.memory_space<vmem>>, %arg6: memref<32x1xf32, #tpu.memory_space<vmem>>, %arg7: memref<2x512xi32, #tpu.memory_space<vmem>>, %arg8: memref<32x512xf32, #tpu.memory_space<vmem>>, %arg9: memref<384x512xf32, #tpu.memory_space<vmem>>, %arg10: memref<32x512xf32, #tpu.memory_space<vmem>>) attributes {dimension_semantics = [#tpu.dimension_semantics<parallel>], iteration_bounds = array<i64: 1>, scalar_prefetch = 0 : i64, scratch_operands = 2 : i64, tpu.core_type = #tpu.core_type<tc>, window_params = [{transform_indices = @transform_0, window_bounds = array<i64: 8, 512>}, {transform_indices = @transform_1, window_bounds = array<i64: 32, 512>}, {pipeline_mode = #tpu.pipeline_mode<synchronous>, transform_indices = @transform_2, window_bounds = array<i64: 64, 384>}, {pipeline_mode = #tpu.pipeline_mode<synchronous>, transform_indices = @transform_3, window_bounds = array<i64: 32, 384>}, {pipeline_mode = #tpu.pipeline_mode<synchronous>, transform_indices = @transform_4, window_bounds = array<i64: 64, 1>}, {pipeline_mode = #tpu.pipeline_mode<synchronous>, transform_indices = @transform_5, window_bounds = array<i64: 32, 1>}, {pipeline_mode = #tpu.pipeline_mode<synchronous>, transform_indices = @transform_6, window_bounds = array<i64: 2, 512>}, {transform_indices = @transform_7, window_bounds = array<i64: 32, 512>}]} {
    %cst = arith.constant 0.000000e+00 : f32
    %0 = vector.broadcast %cst : f32 to vector<24x512xf32>
    %c360 = arith.constant 360 : index
    %c0 = arith.constant 0 : index
    %1 = vector.load %arg9[%c360, %c0] : memref<384x512xf32, #tpu.memory_space<vmem>>, vector<24x512xf32>
    tpu.vector_store %arg9[%c360, %c0], %0 {strides = array<i32>} : memref<384x512xf32, #tpu.memory_space<vmem>>, vector<24x512xf32>,
    %c0_0 = arith.constant 0 : index
    %c0_1 = arith.constant 0 : index
    %2 = vector.load %arg1[%c0_0, %c0_1] : memref<8x512xf32, #tpu.memory_space<vmem>>, vector<8x512xf32>
    %c17_i32 = arith.constant 17 : i32
    %3 = tpu.dynamic_rotate %2 by %c17_i32 dim 1 : vector<8x512xf32>, i32 -> vector<8x512xf32>
    %c0_2 = arith.constant 0 : index
    %c0_3 = arith.constant 0 : index
    %4 = vector.load %arg7[%c0_2, %c0_3] : memref<2x512xi32, #tpu.memory_space<vmem>>, vector<1x512xi32>
    %c1 = arith.constant 1 : index
    %c0_4 = arith.constant 0 : index
    %5 = vector.load %arg7[%c1, %c0_4] : memref<2x512xi32, #tpu.memory_space<vmem>>, vector<1x512xi32>
    %c1_i32 = arith.constant 1 : i32
    %6 = vector.broadcast %c1_i32 : i32 to vector<1x512xi32>
    %7 = arith.cmpi sge, %4, %6 : vector<1x512xi32>
    %c1_i32_5 = arith.constant 1 : i32
    %8 = vector.broadcast %c1_i32_5 : i32 to vector<1x512xi32>
    %9 = arith.cmpi sge, %5, %8 : vector<1x512xi32>
    %10 = arith.andi %7, %9 : vector<1x512xi1>
    %11 = arith.extui %10 : vector<1x512xi1> to vector<1x512xi32>
    %12 = arith.sitofp %11 : vector<1x512xi32> to vector<1x512xf32>
    %13 = vector.broadcast %12 : vector<1x512xf32> to vector<8x512xf32>
    %14 = arith.mulf %3, %13 : vector<8x512xf32>
    %c0_6 = arith.constant 0 : index
    %c0_7 = arith.constant 0 : index
    %15 = vector.load %arg9[%c0_6, %c0_7] : memref<384x512xf32, #tpu.memory_space<vmem>>, vector<8x512xf32>
    tpu.vector_store %arg9[%c0_6, %c0_7], %14 {strides = array<i32>} : memref<384x512xf32, #tpu.memory_space<vmem>>, vector<8x512xf32>,
    %c0_8 = arith.constant 0 : index
    %c0_9 = arith.constant 0 : index
    %16 = vector.load %arg1[%c0_8, %c0_9] : memref<8x512xf32, #tpu.memory_space<vmem>>, vector<8x512xf32>
    %c16_i32 = arith.constant 16 : i32
    %17 = tpu.dynamic_rotate %16 by %c16_i32 dim 1 : vector<8x512xf32>, i32 -> vector<8x512xf32>
    %c0_10 = arith.constant 0 : index
    %c0_11 = arith.constant 0 : index
    %18 = vector.load %arg7[%c0_10, %c0_11] : memref<2x512xi32, #tpu.memory_space<vmem>>, vector<1x512xi32>
    %c1_i32_12 = arith.constant 1 : i32
    %19 = vector.broadcast %c1_i32_12 : i32 to vector<1x512xi32>
    %20 = arith.cmpi sge, %18, %19 : vector<1x512xi32>
    %21 = arith.extui %20 : vector<1x512xi1> to vector<1x512xi32>
    %22 = arith.sitofp %21 : vector<1x512xi32> to vector<1x512xf32>
    %23 = vector.broadcast %22 : vector<1x512xf32> to vector<8x512xf32>
    %24 = arith.mulf %17, %23 : vector<8x512xf32>
    %c40 = arith.constant 40 : index
    %c0_13 = arith.constant 0 : index
    %25 = vector.load %arg9[%c40, %c0_13] : memref<384x512xf32, #tpu.memory_space<vmem>>, vector<8x512xf32>
    tpu.vector_store %arg9[%c40, %c0_13], %24 {strides = array<i32>} : memref<384x512xf32, #tpu.memory_space<vmem>>, vector<8x512xf32>,
    %c0_14 = arith.constant 0 : index
    %c0_15 = arith.constant 0 : index
    %26 = vector.load %arg1[%c0_14, %c0_15] : memref<8x512xf32, #tpu.memory_space<vmem>>, vector<8x512xf32>
    %c15_i32 = arith.constant 15 : i32
    %27 = tpu.dynamic_rotate %26 by %c15_i32 dim 1 : vector<8x512xf32>, i32 -> vector<8x512xf32>
    %c0_16 = arith.constant 0 : index
    %c0_17 = arith.constant 0 : index
    %28 = vector.load %arg7[%c0_16, %c0_17] : memref<2x512xi32, #tpu.memory_space<vmem>>, vector<1x512xi32>
    %c1_18 = arith.constant 1 : index
    %c0_19 = arith.constant 0 : index
    %29 = vector.load %arg7[%c1_18, %c0_19] : memref<2x512xi32, #tpu.memory_space<vmem>>, vector<1x512xi32>
    %c1_i32_20 = arith.constant 1 : i32
    %30 = vector.broadcast %c1_i32_20 : i32 to vector<1x512xi32>
    %31 = arith.cmpi sge, %28, %30 : vector<1x512xi32>
    %c15_i32_21 = arith.constant 15 : i32
    %32 = vector.broadcast %c15_i32_21 : i32 to vector<1x512xi32>
    %33 = arith.cmpi slt, %29, %32 : vector<1x512xi32>
    %34 = arith.andi %31, %33 : vector<1x512xi1>
    %35 = arith.extui %34 : vector<1x512xi1> to vector<1x512xi32>
    %36 = arith.sitofp %35 : vector<1x512xi32> to vector<1x512xf32>
    %37 = vector.broadcast %36 : vector<1x512xf32> to vector<8x512xf32>
    %38 = arith.mulf %27, %37 : vector<8x512xf32>
    %c80 = arith.constant 80 : index
    %c0_22 = arith.constant 0 : index
    %39 = vector.load %arg9[%c80, %c0_22] : memref<384x512xf32, #tpu.memory_space<vmem>>, vector<8x512xf32>
    tpu.vector_store %arg9[%c80, %c0_22], %38 {strides = array<i32>} : memref<384x512xf32, #tpu.memory_space<vmem>>, vector<8x512xf32>,
    %c0_23 = arith.constant 0 : index
    %c0_24 = arith.constant 0 : index
    %40 = vector.load %arg1[%c0_23, %c0_24] : memref<8x512xf32, #tpu.memory_space<vmem>>, vector<8x512xf32>
    %c1_i32_25 = arith.constant 1 : i32
    %41 = tpu.dynamic_rotate %40 by %c1_i32_25 dim 1 : vector<8x512xf32>, i32 -> vector<8x512xf32>
    %c1_26 = arith.constant 1 : index
    %c0_27 = arith.constant 0 : index
    %42 = vector.load %arg7[%c1_26, %c0_27] : memref<2x512xi32, #tpu.memory_space<vmem>>, vector<1x512xi32>
    %c1_i32_28 = arith.constant 1 : i32
    %43 = vector.broadcast %c1_i32_28 : i32 to vector<1x512xi32>
    %44 = arith.cmpi sge, %42, %43 : vector<1x512xi32>
    %45 = arith.extui %44 : vector<1x512xi1> to vector<1x512xi32>
    %46 = arith.sitofp %45 : vector<1x512xi32> to vector<1x512xf32>
    %47 = vector.broadcast %46 : vector<1x512xf32> to vector<8x512xf32>
    %48 = arith.mulf %41, %47 : vector<8x512xf32>
    %c120 = arith.constant 120 : index
    %c0_29 = arith.constant 0 : index
    %49 = vector.load %arg9[%c120, %c0_29] : memref<384x512xf32, #tpu.memory_space<vmem>>, vector<8x512xf32>
    tpu.vector_store %arg9[%c120, %c0_29], %48 {strides = array<i32>} : memref<384x512xf32, #tpu.memory_space<vmem>>, vector<8x512xf32>,
    %c0_30 = arith.constant 0 : index
    %c0_31 = arith.constant 0 : index
    %50 = vector.load %arg1[%c0_30, %c0_31] : memref<8x512xf32, #tpu.memory_space<vmem>>, vector<8x512xf32>
    %c160 = arith.constant 160 : index
    %c0_32 = arith.constant 0 : index
    %51 = vector.load %arg9[%c160, %c0_32] : memref<384x512xf32, #tpu.memory_space<vmem>>, vector<8x512xf32>
    tpu.vector_store %arg9[%c160, %c0_32], %50 {strides = array<i32>} : memref<384x512xf32, #tpu.memory_space<vmem>>, vector<8x512xf32>,
    %c0_33 = arith.constant 0 : index
    %c0_34 = arith.constant 0 : index
    %52 = vector.load %arg1[%c0_33, %c0_34] : memref<8x512xf32, #tpu.memory_space<vmem>>, vector<8x512xf32>
    %c511_i32 = arith.constant 511 : i32
    %53 = tpu.dynamic_rotate %52 by %c511_i32 dim 1 : vector<8x512xf32>, i32 -> vector<8x512xf32>
    %c1_35 = arith.constant 1 : index
    %c0_36 = arith.constant 0 : index
    %54 = vector.load %arg7[%c1_35, %c0_36] : memref<2x512xi32, #tpu.memory_space<vmem>>, vector<1x512xi32>
    %c15_i32_37 = arith.constant 15 : i32
    %55 = vector.broadcast %c15_i32_37 : i32 to vector<1x512xi32>
    %56 = arith.cmpi slt, %54, %55 : vector<1x512xi32>
    %57 = arith.extui %56 : vector<1x512xi1> to vector<1x512xi32>
    %58 = arith.sitofp %57 : vector<1x512xi32> to vector<1x512xf32>
    %59 = vector.broadcast %58 : vector<1x512xf32> to vector<8x512xf32>
    %60 = arith.mulf %53, %59 : vector<8x512xf32>
    %c200 = arith.constant 200 : index
    %c0_38 = arith.constant 0 : index
    %61 = vector.load %arg9[%c200, %c0_38] : memref<384x512xf32, #tpu.memory_space<vmem>>, vector<8x512xf32>
    tpu.vector_store %arg9[%c200, %c0_38], %60 {strides = array<i32>} : memref<384x512xf32, #tpu.memory_space<vmem>>, vector<8x512xf32>,
    %c0_39 = arith.constant 0 : index
    %c0_40 = arith.constant 0 : index
    %62 = vector.load %arg1[%c0_39, %c0_40] : memref<8x512xf32, #tpu.memory_space<vmem>>, vector<8x512xf32>
    %c497_i32 = arith.constant 497 : i32
    %63 = tpu.dynamic_rotate %62 by %c497_i32 dim 1 : vector<8x512xf32>, i32 -> vector<8x512xf32>
    %c0_41 = arith.constant 0 : index
    %c0_42 = arith.constant 0 : index
    %64 = vector.load %arg7[%c0_41, %c0_42] : memref<2x512xi32, #tpu.memory_space<vmem>>, vector<1x512xi32>
    %c1_43 = arith.constant 1 : index
    %c0_44 = arith.constant 0 : index
    %65 = vector.load %arg7[%c1_43, %c0_44] : memref<2x512xi32, #tpu.memory_space<vmem>>, vector<1x512xi32>
    %c15_i32_45 = arith.constant 15 : i32
    %66 = vector.broadcast %c15_i32_45 : i32 to vector<1x512xi32>
    %67 = arith.cmpi slt, %64, %66 : vector<1x512xi32>
    %c1_i32_46 = arith.constant 1 : i32
    %68 = vector.broadcast %c1_i32_46 : i32 to vector<1x512xi32>
    %69 = arith.cmpi sge, %65, %68 : vector<1x512xi32>
    %70 = arith.andi %67, %69 : vector<1x512xi1>
    %71 = arith.extui %70 : vector<1x512xi1> to vector<1x512xi32>
    %72 = arith.sitofp %71 : vector<1x512xi32> to vector<1x512xf32>
    %73 = vector.broadcast %72 : vector<1x512xf32> to vector<8x512xf32>
    %74 = arith.mulf %63, %73 : vector<8x512xf32>
    %c240 = arith.constant 240 : index
    %c0_47 = arith.constant 0 : index
    %75 = vector.load %arg9[%c240, %c0_47] : memref<384x512xf32, #tpu.memory_space<vmem>>, vector<8x512xf32>
    tpu.vector_store %arg9[%c240, %c0_47], %74 {strides = array<i32>} : memref<384x512xf32, #tpu.memory_space<vmem>>, vector<8x512xf32>,
    %c0_48 = arith.constant 0 : index
    %c0_49 = arith.constant 0 : index
    %76 = vector.load %arg1[%c0_48, %c0_49] : memref<8x512xf32, #tpu.memory_space<vmem>>, vector<8x512xf32>
    %c496_i32 = arith.constant 496 : i32
    %77 = tpu.dynamic_rotate %76 by %c496_i32 dim 1 : vector<8x512xf32>, i32 -> vector<8x512xf32>
    %c0_50 = arith.constant 0 : index
    %c0_51 = arith.constant 0 : index
    %78 = vector.load %arg7[%c0_50, %c0_51] : memref<2x512xi32, #tpu.memory_space<vmem>>, vector<1x512xi32>
    %c15_i32_52 = arith.constant 15 : i32
    %79 = vector.broadcast %c15_i32_52 : i32 to vector<1x512xi32>
    %80 = arith.cmpi slt, %78, %79 : vector<1x512xi32>
    %81 = arith.extui %80 : vector<1x512xi1> to vector<1x512xi32>
    %82 = arith.sitofp %81 : vector<1x512xi32> to vector<1x512xf32>
    %83 = vector.broadcast %82 : vector<1x512xf32> to vector<8x512xf32>
    %84 = arith.mulf %77, %83 : vector<8x512xf32>
    %c280 = arith.constant 280 : index
    %c0_53 = arith.constant 0 : index
    %85 = vector.load %arg9[%c280, %c0_53] : memref<384x512xf32, #tpu.memory_space<vmem>>, vector<8x512xf32>
    tpu.vector_store %arg9[%c280, %c0_53], %84 {strides = array<i32>} : memref<384x512xf32, #tpu.memory_space<vmem>>, vector<8x512xf32>,
    %c0_54 = arith.constant 0 : index
    %c0_55 = arith.constant 0 : index
    %86 = vector.load %arg1[%c0_54, %c0_55] : memref<8x512xf32, #tpu.memory_space<vmem>>, vector<8x512xf32>
    %c495_i32 = arith.constant 495 : i32
    %87 = tpu.dynamic_rotate %86 by %c495_i32 dim 1 : vector<8x512xf32>, i32 -> vector<8x512xf32>
    %c0_56 = arith.constant 0 : index
    %c0_57 = arith.constant 0 : index
    %88 = vector.load %arg7[%c0_56, %c0_57] : memref<2x512xi32, #tpu.memory_space<vmem>>, vector<1x512xi32>
    %c1_58 = arith.constant 1 : index
    %c0_59 = arith.constant 0 : index
    %89 = vector.load %arg7[%c1_58, %c0_59] : memref<2x512xi32, #tpu.memory_space<vmem>>, vector<1x512xi32>
    %c15_i32_60 = arith.constant 15 : i32
    %90 = vector.broadcast %c15_i32_60 : i32 to vector<1x512xi32>
    %91 = arith.cmpi slt, %88, %90 : vector<1x512xi32>
    %c15_i32_61 = arith.constant 15 : i32
    %92 = vector.broadcast %c15_i32_61 : i32 to vector<1x512xi32>
    %93 = arith.cmpi slt, %89, %92 : vector<1x512xi32>
    %94 = arith.andi %91, %93 : vector<1x512xi1>
    %95 = arith.extui %94 : vector<1x512xi1> to vector<1x512xi32>
    %96 = arith.sitofp %95 : vector<1x512xi32> to vector<1x512xf32>
    %97 = vector.broadcast %96 : vector<1x512xf32> to vector<8x512xf32>
    %98 = arith.mulf %87, %97 : vector<8x512xf32>
    %c320 = arith.constant 320 : index
    %c0_62 = arith.constant 0 : index
    %99 = vector.load %arg9[%c320, %c0_62] : memref<384x512xf32, #tpu.memory_space<vmem>>, vector<8x512xf32>
    tpu.vector_store %arg9[%c320, %c0_62], %98 {strides = array<i32>} : memref<384x512xf32, #tpu.memory_space<vmem>>, vector<8x512xf32>,
    %c0_63 = arith.constant 0 : index
    %c0_64 = arith.constant 0 : index
    %100 = vector.load %arg2[%c0_63, %c0_64] : memref<32x512xf32, #tpu.memory_space<vmem>>, vector<32x512xf32>
    %c17_i32_65 = arith.constant 17 : i32
    %101 = tpu.dynamic_rotate %100 by %c17_i32_65 dim 1 : vector<32x512xf32>, i32 -> vector<32x512xf32>
    %c0_66 = arith.constant 0 : index
    %c0_67 = arith.constant 0 : index
    %102 = vector.load %arg7[%c0_66, %c0_67] : memref<2x512xi32, #tpu.memory_space<vmem>>, vector<1x512xi32>
    %c1_68 = arith.constant 1 : index
    %c0_69 = arith.constant 0 : index
    %103 = vector.load %arg7[%c1_68, %c0_69] : memref<2x512xi32, #tpu.memory_space<vmem>>, vector<1x512xi32>
    %c1_i32_70 = arith.constant 1 : i32
    %104 = vector.broadcast %c1_i32_70 : i32 to vector<1x512xi32>
    %105 = arith.cmpi sge, %102, %104 : vector<1x512xi32>
    %c1_i32_71 = arith.constant 1 : i32
    %106 = vector.broadcast %c1_i32_71 : i32 to vector<1x512xi32>
    %107 = arith.cmpi sge, %103, %106 : vector<1x512xi32>
    %108 = arith.andi %105, %107 : vector<1x512xi1>
    %109 = arith.extui %108 : vector<1x512xi1> to vector<1x512xi32>
    %110 = arith.sitofp %109 : vector<1x512xi32> to vector<1x512xf32>
    %111 = vector.broadcast %110 : vector<1x512xf32> to vector<32x512xf32>
    %112 = arith.mulf %101, %111 : vector<32x512xf32>
    %c8 = arith.constant 8 : index
    %c0_72 = arith.constant 0 : index
    %113 = vector.load %arg9[%c8, %c0_72] : memref<384x512xf32, #tpu.memory_space<vmem>>, vector<32x512xf32>
    tpu.vector_store %arg9[%c8, %c0_72], %112 {strides = array<i32>} : memref<384x512xf32, #tpu.memory_space<vmem>>, vector<32x512xf32>,
    %c0_73 = arith.constant 0 : index
    %c0_74 = arith.constant 0 : index
    %114 = vector.load %arg2[%c0_73, %c0_74] : memref<32x512xf32, #tpu.memory_space<vmem>>, vector<32x512xf32>
    %c16_i32_75 = arith.constant 16 : i32
    %115 = tpu.dynamic_rotate %114 by %c16_i32_75 dim 1 : vector<32x512xf32>, i32 -> vector<32x512xf32>
    %c0_76 = arith.constant 0 : index
    %c0_77 = arith.constant 0 : index
    %116 = vector.load %arg7[%c0_76, %c0_77] : memref<2x512xi32, #tpu.memory_space<vmem>>, vector<1x512xi32>
    %c1_i32_78 = arith.constant 1 : i32
    %117 = vector.broadcast %c1_i32_78 : i32 to vector<1x512xi32>
    %118 = arith.cmpi sge, %116, %117 : vector<1x512xi32>
    %119 = arith.extui %118 : vector<1x512xi1> to vector<1x512xi32>
    %120 = arith.sitofp %119 : vector<1x512xi32> to vector<1x512xf32>
    %121 = vector.broadcast %120 : vector<1x512xf32> to vector<32x512xf32>
    %122 = arith.mulf %115, %121 : vector<32x512xf32>
    %c48 = arith.constant 48 : index
    %c0_79 = arith.constant 0 : index
    %123 = vector.load %arg9[%c48, %c0_79] : memref<384x512xf32, #tpu.memory_space<vmem>>, vector<32x512xf32>
    tpu.vector_store %arg9[%c48, %c0_79], %122 {strides = array<i32>} : memref<384x512xf32, #tpu.memory_space<vmem>>, vector<32x512xf32>,
    %c0_80 = arith.constant 0 : index
    %c0_81 = arith.constant 0 : index
    %124 = vector.load %arg2[%c0_80, %c0_81] : memref<32x512xf32, #tpu.memory_space<vmem>>, vector<32x512xf32>
    %c15_i32_82 = arith.constant 15 : i32
    %125 = tpu.dynamic_rotate %124 by %c15_i32_82 dim 1 : vector<32x512xf32>, i32 -> vector<32x512xf32>
    %c0_83 = arith.constant 0 : index
    %c0_84 = arith.constant 0 : index
    %126 = vector.load %arg7[%c0_83, %c0_84] : memref<2x512xi32, #tpu.memory_space<vmem>>, vector<1x512xi32>
    %c1_85 = arith.constant 1 : index
    %c0_86 = arith.constant 0 : index
    %127 = vector.load %arg7[%c1_85, %c0_86] : memref<2x512xi32, #tpu.memory_space<vmem>>, vector<1x512xi32>
    %c1_i32_87 = arith.constant 1 : i32
    %128 = vector.broadcast %c1_i32_87 : i32 to vector<1x512xi32>
    %129 = arith.cmpi sge, %126, %128 : vector<1x512xi32>
    %c15_i32_88 = arith.constant 15 : i32
    %130 = vector.broadcast %c15_i32_88 : i32 to vector<1x512xi32>
    %131 = arith.cmpi slt, %127, %130 : vector<1x512xi32>
    %132 = arith.andi %129, %131 : vector<1x512xi1>
    %133 = arith.extui %132 : vector<1x512xi1> to vector<1x512xi32>
    %134 = arith.sitofp %133 : vector<1x512xi32> to vector<1x512xf32>
    %135 = vector.broadcast %134 : vector<1x512xf32> to vector<32x512xf32>
    %136 = arith.mulf %125, %135 : vector<32x512xf32>
    %c88 = arith.constant 88 : index
    %c0_89 = arith.constant 0 : index
    %137 = vector.load %arg9[%c88, %c0_89] : memref<384x512xf32, #tpu.memory_space<vmem>>, vector<32x512xf32>
    tpu.vector_store %arg9[%c88, %c0_89], %136 {strides = array<i32>} : memref<384x512xf32, #tpu.memory_space<vmem>>, vector<32x512xf32>,
    %c0_90 = arith.constant 0 : index
    %c0_91 = arith.constant 0 : index
    %138 = vector.load %arg2[%c0_90, %c0_91] : memref<32x512xf32, #tpu.memory_space<vmem>>, vector<32x512xf32>
    %c1_i32_92 = arith.constant 1 : i32
    %139 = tpu.dynamic_rotate %138 by %c1_i32_92 dim 1 : vector<32x512xf32>, i32 -> vector<32x512xf32>
    %c1_93 = arith.constant 1 : index
    %c0_94 = arith.constant 0 : index
    %140 = vector.load %arg7[%c1_93, %c0_94] : memref<2x512xi32, #tpu.memory_space<vmem>>, vector<1x512xi32>
    %c1_i32_95 = arith.constant 1 : i32
    %141 = vector.broadcast %c1_i32_95 : i32 to vector<1x512xi32>
    %142 = arith.cmpi sge, %140, %141 : vector<1x512xi32>
    %143 = arith.extui %142 : vector<1x512xi1> to vector<1x512xi32>
    %144 = arith.sitofp %143 : vector<1x512xi32> to vector<1x512xf32>
    %145 = vector.broadcast %144 : vector<1x512xf32> to vector<32x512xf32>
    %146 = arith.mulf %139, %145 : vector<32x512xf32>
    %c128 = arith.constant 128 : index
    %c0_96 = arith.constant 0 : index
    %147 = vector.load %arg9[%c128, %c0_96] : memref<384x512xf32, #tpu.memory_space<vmem>>, vector<32x512xf32>
    tpu.vector_store %arg9[%c128, %c0_96], %146 {strides = array<i32>} : memref<384x512xf32, #tpu.memory_space<vmem>>, vector<32x512xf32>,
    %c0_97 = arith.constant 0 : index
    %c0_98 = arith.constant 0 : index
    %148 = vector.load %arg2[%c0_97, %c0_98] : memref<32x512xf32, #tpu.memory_space<vmem>>, vector<32x512xf32>
    %c168 = arith.constant 168 : index
    %c0_99 = arith.constant 0 : index
    %149 = vector.load %arg9[%c168, %c0_99] : memref<384x512xf32, #tpu.memory_space<vmem>>, vector<32x512xf32>
    tpu.vector_store %arg9[%c168, %c0_99], %148 {strides = array<i32>} : memref<384x512xf32, #tpu.memory_space<vmem>>, vector<32x512xf32>,
    %c0_100 = arith.constant 0 : index
    %c0_101 = arith.constant 0 : index
    %150 = vector.load %arg2[%c0_100, %c0_101] : memref<32x512xf32, #tpu.memory_space<vmem>>, vector<32x512xf32>
    %c511_i32_102 = arith.constant 511 : i32
    %151 = tpu.dynamic_rotate %150 by %c511_i32_102 dim 1 : vector<32x512xf32>, i32 -> vector<32x512xf32>
    %c1_103 = arith.constant 1 : index
    %c0_104 = arith.constant 0 : index
    %152 = vector.load %arg7[%c1_103, %c0_104] : memref<2x512xi32, #tpu.memory_space<vmem>>, vector<1x512xi32>
    %c15_i32_105 = arith.constant 15 : i32
    %153 = vector.broadcast %c15_i32_105 : i32 to vector<1x512xi32>
    %154 = arith.cmpi slt, %152, %153 : vector<1x512xi32>
    %155 = arith.extui %154 : vector<1x512xi1> to vector<1x512xi32>
    %156 = arith.sitofp %155 : vector<1x512xi32> to vector<1x512xf32>
    %157 = vector.broadcast %156 : vector<1x512xf32> to vector<32x512xf32>
    %158 = arith.mulf %151, %157 : vector<32x512xf32>
    %c208 = arith.constant 208 : index
    %c0_106 = arith.constant 0 : index
    %159 = vector.load %arg9[%c208, %c0_106] : memref<384x512xf32, #tpu.memory_space<vmem>>, vector<32x512xf32>
    tpu.vector_store %arg9[%c208, %c0_106], %158 {strides = array<i32>} : memref<384x512xf32, #tpu.memory_space<vmem>>, vector<32x512xf32>,
    %c0_107 = arith.constant 0 : index
    %c0_108 = arith.constant 0 : index
    %160 = vector.load %arg2[%c0_107, %c0_108] : memref<32x512xf32, #tpu.memory_space<vmem>>, vector<32x512xf32>
    %c497_i32_109 = arith.constant 497 : i32
    %161 = tpu.dynamic_rotate %160 by %c497_i32_109 dim 1 : vector<32x512xf32>, i32 -> vector<32x512xf32>
    %c0_110 = arith.constant 0 : index
    %c0_111 = arith.constant 0 : index
    %162 = vector.load %arg7[%c0_110, %c0_111] : memref<2x512xi32, #tpu.memory_space<vmem>>, vector<1x512xi32>
    %c1_112 = arith.constant 1 : index
    %c0_113 = arith.constant 0 : index
    %163 = vector.load %arg7[%c1_112, %c0_113] : memref<2x512xi32, #tpu.memory_space<vmem>>, vector<1x512xi32>
    %c15_i32_114 = arith.constant 15 : i32
    %164 = vector.broadcast %c15_i32_114 : i32 to vector<1x512xi32>
    %165 = arith.cmpi slt, %162, %164 : vector<1x512xi32>
    %c1_i32_115 = arith.constant 1 : i32
    %166 = vector.broadcast %c1_i32_115 : i32 to vector<1x512xi32>
    %167 = arith.cmpi sge, %163, %166 : vector<1x512xi32>
    %168 = arith.andi %165, %167 : vector<1x512xi1>
    %169 = arith.extui %168 : vector<1x512xi1> to vector<1x512xi32>
    %170 = arith.sitofp %169 : vector<1x512xi32> to vector<1x512xf32>
    %171 = vector.broadcast %170 : vector<1x512xf32> to vector<32x512xf32>
    %172 = arith.mulf %161, %171 : vector<32x512xf32>
    %c248 = arith.constant 248 : index
    %c0_116 = arith.constant 0 : index
    %173 = vector.load %arg9[%c248, %c0_116] : memref<384x512xf32, #tpu.memory_space<vmem>>, vector<32x512xf32>
    tpu.vector_store %arg9[%c248, %c0_116], %172 {strides = array<i32>} : memref<384x512xf32, #tpu.memory_space<vmem>>, vector<32x512xf32>,
    %c0_117 = arith.constant 0 : index
    %c0_118 = arith.constant 0 : index
    %174 = vector.load %arg2[%c0_117, %c0_118] : memref<32x512xf32, #tpu.memory_space<vmem>>, vector<32x512xf32>
    %c496_i32_119 = arith.constant 496 : i32
    %175 = tpu.dynamic_rotate %174 by %c496_i32_119 dim 1 : vector<32x512xf32>, i32 -> vector<32x512xf32>
    %c0_120 = arith.constant 0 : index
    %c0_121 = arith.constant 0 : index
    %176 = vector.load %arg7[%c0_120, %c0_121] : memref<2x512xi32, #tpu.memory_space<vmem>>, vector<1x512xi32>
    %c15_i32_122 = arith.constant 15 : i32
    %177 = vector.broadcast %c15_i32_122 : i32 to vector<1x512xi32>
    %178 = arith.cmpi slt, %176, %177 : vector<1x512xi32>
    %179 = arith.extui %178 : vector<1x512xi1> to vector<1x512xi32>
    %180 = arith.sitofp %179 : vector<1x512xi32> to vector<1x512xf32>
    %181 = vector.broadcast %180 : vector<1x512xf32> to vector<32x512xf32>
    %182 = arith.mulf %175, %181 : vector<32x512xf32>
    %c288 = arith.constant 288 : index
    %c0_123 = arith.constant 0 : index
    %183 = vector.load %arg9[%c288, %c0_123] : memref<384x512xf32, #tpu.memory_space<vmem>>, vector<32x512xf32>
    tpu.vector_store %arg9[%c288, %c0_123], %182 {strides = array<i32>} : memref<384x512xf32, #tpu.memory_space<vmem>>, vector<32x512xf32>,
    %c0_124 = arith.constant 0 : index
    %c0_125 = arith.constant 0 : index
    %184 = vector.load %arg2[%c0_124, %c0_125] : memref<32x512xf32, #tpu.memory_space<vmem>>, vector<32x512xf32>
    %c495_i32_126 = arith.constant 495 : i32
    %185 = tpu.dynamic_rotate %184 by %c495_i32_126 dim 1 : vector<32x512xf32>, i32 -> vector<32x512xf32>
    %c0_127 = arith.constant 0 : index
    %c0_128 = arith.constant 0 : index
    %186 = vector.load %arg7[%c0_127, %c0_128] : memref<2x512xi32, #tpu.memory_space<vmem>>, vector<1x512xi32>
    %c1_129 = arith.constant 1 : index
    %c0_130 = arith.constant 0 : index
    %187 = vector.load %arg7[%c1_129, %c0_130] : memref<2x512xi32, #tpu.memory_space<vmem>>, vector<1x512xi32>
    %c15_i32_131 = arith.constant 15 : i32
    %188 = vector.broadcast %c15_i32_131 : i32 to vector<1x512xi32>
    %189 = arith.cmpi slt, %186, %188 : vector<1x512xi32>
    %c15_i32_132 = arith.constant 15 : i32
    %190 = vector.broadcast %c15_i32_132 : i32 to vector<1x512xi32>
    %191 = arith.cmpi slt, %187, %190 : vector<1x512xi32>
    %192 = arith.andi %189, %191 : vector<1x512xi1>
    %193 = arith.extui %192 : vector<1x512xi1> to vector<1x512xi32>
    %194 = arith.sitofp %193 : vector<1x512xi32> to vector<1x512xf32>
    %195 = vector.broadcast %194 : vector<1x512xf32> to vector<32x512xf32>
    %196 = arith.mulf %185, %195 : vector<32x512xf32>
    %c328 = arith.constant 328 : index
    %c0_133 = arith.constant 0 : index
    %197 = vector.load %arg9[%c328, %c0_133] : memref<384x512xf32, #tpu.memory_space<vmem>>, vector<32x512xf32>
    tpu.vector_store %arg9[%c328, %c0_133], %196 {strides = array<i32>} : memref<384x512xf32, #tpu.memory_space<vmem>>, vector<32x512xf32>,
    %c0_134 = arith.constant 0 : index
    %c0_135 = arith.constant 0 : index
    %198 = vector.load %arg3[%c0_134, %c0_135] : memref<64x384xf32, #tpu.memory_space<vmem>>, vector<64x384xf32>
    %c0_136 = arith.constant 0 : index
    %c0_137 = arith.constant 0 : index
    %199 = vector.load %arg9[%c0_136, %c0_137] : memref<384x512xf32, #tpu.memory_space<vmem>>, vector<384x512xf32>
    %cst_138 = arith.constant dense<0.000000e+00> : vector<64x512xf32>
    %200 = tpu.matmul %198, %199, %cst_138 {dimension_numbers = #tpu.dot_dimension_numbers<[1], [0], [0], [1], [0, 0, 1, 1], [], []>} : vector<64x384xf32>, vector<384x512xf32>, vector<64x512xf32> -> vector<64x512xf32>
    %c0_139 = arith.constant 0 : index
    %c0_140 = arith.constant 0 : index
    %201 = vector.load %arg5[%c0_139, %c0_140] : memref<64x1xf32, #tpu.memory_space<vmem>>, vector<64x1xf32>
    %202 = vector.broadcast %201 : vector<64x1xf32> to vector<64x512xf32>
    %203 = arith.addf %200, %202 : vector<64x512xf32>
    %204 = vector.extract_strided_slice %203 {offsets = [0, 0], sizes = [32, 512], strides = [1, 1]} : vector<64x512xf32> to vector<32x512xf32>
    %205 = arith.negf %204 : vector<32x512xf32>
    %206 = math.exp %205 : vector<32x512xf32>
    %cst_141 = arith.constant 1.000000e+00 : f32
    %207 = vector.broadcast %cst_141 : f32 to vector<32x512xf32>
    %208 = arith.addf %207, %206 : vector<32x512xf32>
    %209 = arith.divf %207, %208 : vector<32x512xf32>
    %c0_142 = arith.constant 0 : index
    %c0_143 = arith.constant 0 : index
    %210 = vector.load %arg10[%c0_142, %c0_143] : memref<32x512xf32, #tpu.memory_space<vmem>>, vector<32x512xf32>
    tpu.vector_store %arg10[%c0_142, %c0_143], %209 {strides = array<i32>} : memref<32x512xf32, #tpu.memory_space<vmem>>, vector<32x512xf32>,
    %211 = vector.extract_strided_slice %203 {offsets = [32, 0], sizes = [32, 512], strides = [1, 1]} : vector<64x512xf32> to vector<32x512xf32>
    %212 = arith.negf %211 : vector<32x512xf32>
    %213 = math.exp %212 : vector<32x512xf32>
    %cst_144 = arith.constant 1.000000e+00 : f32
    %214 = vector.broadcast %cst_144 : f32 to vector<32x512xf32>
    %215 = arith.addf %214, %213 : vector<32x512xf32>
    %216 = arith.divf %214, %215 : vector<32x512xf32>
    %c0_145 = arith.constant 0 : index
    %c0_146 = arith.constant 0 : index
    %217 = vector.load %arg2[%c0_145, %c0_146] : memref<32x512xf32, #tpu.memory_space<vmem>>, vector<32x512xf32>
    %218 = arith.mulf %216, %217 : vector<32x512xf32>
    %c168_147 = arith.constant 168 : index
    %c0_148 = arith.constant 0 : index
    %219 = vector.load %arg9[%c168_147, %c0_148] : memref<384x512xf32, #tpu.memory_space<vmem>>, vector<32x512xf32>
    tpu.vector_store %arg9[%c168_147, %c0_148], %218 {strides = array<i32>} : memref<384x512xf32, #tpu.memory_space<vmem>>, vector<32x512xf32>,
    %c168_149 = arith.constant 168 : index
    %c0_150 = arith.constant 0 : index
    %220 = vector.load %arg9[%c168_149, %c0_150] : memref<384x512xf32, #tpu.memory_space<vmem>>, vector<32x512xf32>
    %c17_i32_151 = arith.constant 17 : i32
    %221 = tpu.dynamic_rotate %220 by %c17_i32_151 dim 1 : vector<32x512xf32>, i32 -> vector<32x512xf32>
    %c0_152 = arith.constant 0 : index
    %c0_153 = arith.constant 0 : index
    %222 = vector.load %arg7[%c0_152, %c0_153] : memref<2x512xi32, #tpu.memory_space<vmem>>, vector<1x512xi32>
    %c1_154 = arith.constant 1 : index
    %c0_155 = arith.constant 0 : index
    %223 = vector.load %arg7[%c1_154, %c0_155] : memref<2x512xi32, #tpu.memory_space<vmem>>, vector<1x512xi32>
    %c1_i32_156 = arith.constant 1 : i32
    %224 = vector.broadcast %c1_i32_156 : i32 to vector<1x512xi32>
    %225 = arith.cmpi sge, %222, %224 : vector<1x512xi32>
    %c1_i32_157 = arith.constant 1 : i32
    %226 = vector.broadcast %c1_i32_157 : i32 to vector<1x512xi32>
    %227 = arith.cmpi sge, %223, %226 : vector<1x512xi32>
    %228 = arith.andi %225, %227 : vector<1x512xi1>
    %229 = arith.extui %228 : vector<1x512xi1> to vector<1x512xi32>
    %230 = arith.sitofp %229 : vector<1x512xi32> to vector<1x512xf32>
    %231 = vector.broadcast %230 : vector<1x512xf32> to vector<32x512xf32>
    %232 = arith.mulf %221, %231 : vector<32x512xf32>
    %c8_158 = arith.constant 8 : index
    %c0_159 = arith.constant 0 : index
    %233 = vector.load %arg9[%c8_158, %c0_159] : memref<384x512xf32, #tpu.memory_space<vmem>>, vector<32x512xf32>
    tpu.vector_store %arg9[%c8_158, %c0_159], %232 {strides = array<i32>} : memref<384x512xf32, #tpu.memory_space<vmem>>, vector<32x512xf32>,
    %c168_160 = arith.constant 168 : index
    %c0_161 = arith.constant 0 : index
    %234 = vector.load %arg9[%c168_160, %c0_161] : memref<384x512xf32, #tpu.memory_space<vmem>>, vector<32x512xf32>
    %c16_i32_162 = arith.constant 16 : i32
    %235 = tpu.dynamic_rotate %234 by %c16_i32_162 dim 1 : vector<32x512xf32>, i32 -> vector<32x512xf32>
    %c0_163 = arith.constant 0 : index
    %c0_164 = arith.constant 0 : index
    %236 = vector.load %arg7[%c0_163, %c0_164] : memref<2x512xi32, #tpu.memory_space<vmem>>, vector<1x512xi32>
    %c1_i32_165 = arith.constant 1 : i32
    %237 = vector.broadcast %c1_i32_165 : i32 to vector<1x512xi32>
    %238 = arith.cmpi sge, %236, %237 : vector<1x512xi32>
    %239 = arith.extui %238 : vector<1x512xi1> to vector<1x512xi32>
    %240 = arith.sitofp %239 : vector<1x512xi32> to vector<1x512xf32>
    %241 = vector.broadcast %240 : vector<1x512xf32> to vector<32x512xf32>
    %242 = arith.mulf %235, %241 : vector<32x512xf32>
    %c48_166 = arith.constant 48 : index
    %c0_167 = arith.constant 0 : index
    %243 = vector.load %arg9[%c48_166, %c0_167] : memref<384x512xf32, #tpu.memory_space<vmem>>, vector<32x512xf32>
    tpu.vector_store %arg9[%c48_166, %c0_167], %242 {strides = array<i32>} : memref<384x512xf32, #tpu.memory_space<vmem>>, vector<32x512xf32>,
    %c168_168 = arith.constant 168 : index
    %c0_169 = arith.constant 0 : index
    %244 = vector.load %arg9[%c168_168, %c0_169] : memref<384x512xf32, #tpu.memory_space<vmem>>, vector<32x512xf32>
    %c15_i32_170 = arith.constant 15 : i32
    %245 = tpu.dynamic_rotate %244 by %c15_i32_170 dim 1 : vector<32x512xf32>, i32 -> vector<32x512xf32>
    %c0_171 = arith.constant 0 : index
    %c0_172 = arith.constant 0 : index
    %246 = vector.load %arg7[%c0_171, %c0_172] : memref<2x512xi32, #tpu.memory_space<vmem>>, vector<1x512xi32>
    %c1_173 = arith.constant 1 : index
    %c0_174 = arith.constant 0 : index
    %247 = vector.load %arg7[%c1_173, %c0_174] : memref<2x512xi32, #tpu.memory_space<vmem>>, vector<1x512xi32>
    %c1_i32_175 = arith.constant 1 : i32
    %248 = vector.broadcast %c1_i32_175 : i32 to vector<1x512xi32>
    %249 = arith.cmpi sge, %246, %248 : vector<1x512xi32>
    %c15_i32_176 = arith.constant 15 : i32
    %250 = vector.broadcast %c15_i32_176 : i32 to vector<1x512xi32>
    %251 = arith.cmpi slt, %247, %250 : vector<1x512xi32>
    %252 = arith.andi %249, %251 : vector<1x512xi1>
    %253 = arith.extui %252 : vector<1x512xi1> to vector<1x512xi32>
    %254 = arith.sitofp %253 : vector<1x512xi32> to vector<1x512xf32>
    %255 = vector.broadcast %254 : vector<1x512xf32> to vector<32x512xf32>
    %256 = arith.mulf %245, %255 : vector<32x512xf32>
    %c88_177 = arith.constant 88 : index
    %c0_178 = arith.constant 0 : index
    %257 = vector.load %arg9[%c88_177, %c0_178] : memref<384x512xf32, #tpu.memory_space<vmem>>, vector<32x512xf32>
    tpu.vector_store %arg9[%c88_177, %c0_178], %256 {strides = array<i32>} : memref<384x512xf32, #tpu.memory_space<vmem>>, vector<32x512xf32>,
    %c168_179 = arith.constant 168 : index
    %c0_180 = arith.constant 0 : index
    %258 = vector.load %arg9[%c168_179, %c0_180] : memref<384x512xf32, #tpu.memory_space<vmem>>, vector<32x512xf32>
    %c1_i32_181 = arith.constant 1 : i32
    %259 = tpu.dynamic_rotate %258 by %c1_i32_181 dim 1 : vector<32x512xf32>, i32 -> vector<32x512xf32>
    %c1_182 = arith.constant 1 : index
    %c0_183 = arith.constant 0 : index
    %260 = vector.load %arg7[%c1_182, %c0_183] : memref<2x512xi32, #tpu.memory_space<vmem>>, vector<1x512xi32>
    %c1_i32_184 = arith.constant 1 : i32
    %261 = vector.broadcast %c1_i32_184 : i32 to vector<1x512xi32>
    %262 = arith.cmpi sge, %260, %261 : vector<1x512xi32>
    %263 = arith.extui %262 : vector<1x512xi1> to vector<1x512xi32>
    %264 = arith.sitofp %263 : vector<1x512xi32> to vector<1x512xf32>
    %265 = vector.broadcast %264 : vector<1x512xf32> to vector<32x512xf32>
    %266 = arith.mulf %259, %265 : vector<32x512xf32>
    %c128_185 = arith.constant 128 : index
    %c0_186 = arith.constant 0 : index
    %267 = vector.load %arg9[%c128_185, %c0_186] : memref<384x512xf32, #tpu.memory_space<vmem>>, vector<32x512xf32>
    tpu.vector_store %arg9[%c128_185, %c0_186], %266 {strides = array<i32>} : memref<384x512xf32, #tpu.memory_space<vmem>>, vector<32x512xf32>,
    %c168_187 = arith.constant 168 : index
    %c0_188 = arith.constant 0 : index
    %268 = vector.load %arg9[%c168_187, %c0_188] : memref<384x512xf32, #tpu.memory_space<vmem>>, vector<32x512xf32>
    %c511_i32_189 = arith.constant 511 : i32
    %269 = tpu.dynamic_rotate %268 by %c511_i32_189 dim 1 : vector<32x512xf32>, i32 -> vector<32x512xf32>
    %c1_190 = arith.constant 1 : index
    %c0_191 = arith.constant 0 : index
    %270 = vector.load %arg7[%c1_190, %c0_191] : memref<2x512xi32, #tpu.memory_space<vmem>>, vector<1x512xi32>
    %c15_i32_192 = arith.constant 15 : i32
    %271 = vector.broadcast %c15_i32_192 : i32 to vector<1x512xi32>
    %272 = arith.cmpi slt, %270, %271 : vector<1x512xi32>
    %273 = arith.extui %272 : vector<1x512xi1> to vector<1x512xi32>
    %274 = arith.sitofp %273 : vector<1x512xi32> to vector<1x512xf32>
    %275 = vector.broadcast %274 : vector<1x512xf32> to vector<32x512xf32>
    %276 = arith.mulf %269, %275 : vector<32x512xf32>
    %c208_193 = arith.constant 208 : index
    %c0_194 = arith.constant 0 : index
    %277 = vector.load %arg9[%c208_193, %c0_194] : memref<384x512xf32, #tpu.memory_space<vmem>>, vector<32x512xf32>
    tpu.vector_store %arg9[%c208_193, %c0_194], %276 {strides = array<i32>} : memref<384x512xf32, #tpu.memory_space<vmem>>, vector<32x512xf32>,
    %c168_195 = arith.constant 168 : index
    %c0_196 = arith.constant 0 : index
    %278 = vector.load %arg9[%c168_195, %c0_196] : memref<384x512xf32, #tpu.memory_space<vmem>>, vector<32x512xf32>
    %c497_i32_197 = arith.constant 497 : i32
    %279 = tpu.dynamic_rotate %278 by %c497_i32_197 dim 1 : vector<32x512xf32>, i32 -> vector<32x512xf32>
    %c0_198 = arith.constant 0 : index
    %c0_199 = arith.constant 0 : index
    %280 = vector.load %arg7[%c0_198, %c0_199] : memref<2x512xi32, #tpu.memory_space<vmem>>, vector<1x512xi32>
    %c1_200 = arith.constant 1 : index
    %c0_201 = arith.constant 0 : index
    %281 = vector.load %arg7[%c1_200, %c0_201] : memref<2x512xi32, #tpu.memory_space<vmem>>, vector<1x512xi32>
    %c15_i32_202 = arith.constant 15 : i32
    %282 = vector.broadcast %c15_i32_202 : i32 to vector<1x512xi32>
    %283 = arith.cmpi slt, %280, %282 : vector<1x512xi32>
    %c1_i32_203 = arith.constant 1 : i32
    %284 = vector.broadcast %c1_i32_203 : i32 to vector<1x512xi32>
    %285 = arith.cmpi sge, %281, %284 : vector<1x512xi32>
    %286 = arith.andi %283, %285 : vector<1x512xi1>
    %287 = arith.extui %286 : vector<1x512xi1> to vector<1x512xi32>
    %288 = arith.sitofp %287 : vector<1x512xi32> to vector<1x512xf32>
    %289 = vector.broadcast %288 : vector<1x512xf32> to vector<32x512xf32>
    %290 = arith.mulf %279, %289 : vector<32x512xf32>
    %c248_204 = arith.constant 248 : index
    %c0_205 = arith.constant 0 : index
    %291 = vector.load %arg9[%c248_204, %c0_205] : memref<384x512xf32, #tpu.memory_space<vmem>>, vector<32x512xf32>
    tpu.vector_store %arg9[%c248_204, %c0_205], %290 {strides = array<i32>} : memref<384x512xf32, #tpu.memory_space<vmem>>, vector<32x512xf32>,
    %c168_206 = arith.constant 168 : index
    %c0_207 = arith.constant 0 : index
    %292 = vector.load %arg9[%c168_206, %c0_207] : memref<384x512xf32, #tpu.memory_space<vmem>>, vector<32x512xf32>
    %c496_i32_208 = arith.constant 496 : i32
    %293 = tpu.dynamic_rotate %292 by %c496_i32_208 dim 1 : vector<32x512xf32>, i32 -> vector<32x512xf32>
    %c0_209 = arith.constant 0 : index
    %c0_210 = arith.constant 0 : index
    %294 = vector.load %arg7[%c0_209, %c0_210] : memref<2x512xi32, #tpu.memory_space<vmem>>, vector<1x512xi32>
    %c15_i32_211 = arith.constant 15 : i32
    %295 = vector.broadcast %c15_i32_211 : i32 to vector<1x512xi32>
    %296 = arith.cmpi slt, %294, %295 : vector<1x512xi32>
    %297 = arith.extui %296 : vector<1x512xi1> to vector<1x512xi32>
    %298 = arith.sitofp %297 : vector<1x512xi32> to vector<1x512xf32>
    %299 = vector.broadcast %298 : vector<1x512xf32> to vector<32x512xf32>
    %300 = arith.mulf %293, %299 : vector<32x512xf32>
    %c288_212 = arith.constant 288 : index
    %c0_213 = arith.constant 0 : index
    %301 = vector.load %arg9[%c288_212, %c0_213] : memref<384x512xf32, #tpu.memory_space<vmem>>, vector<32x512xf32>
    tpu.vector_store %arg9[%c288_212, %c0_213], %300 {strides = array<i32>} : memref<384x512xf32, #tpu.memory_space<vmem>>, vector<32x512xf32>,
    %c168_214 = arith.constant 168 : index
    %c0_215 = arith.constant 0 : index
    %302 = vector.load %arg9[%c168_214, %c0_215] : memref<384x512xf32, #tpu.memory_space<vmem>>, vector<32x512xf32>
    %c495_i32_216 = arith.constant 495 : i32
    %303 = tpu.dynamic_rotate %302 by %c495_i32_216 dim 1 : vector<32x512xf32>, i32 -> vector<32x512xf32>
    %c0_217 = arith.constant 0 : index
    %c0_218 = arith.constant 0 : index
    %304 = vector.load %arg7[%c0_217, %c0_218] : memref<2x512xi32, #tpu.memory_space<vmem>>, vector<1x512xi32>
    %c1_219 = arith.constant 1 : index
    %c0_220 = arith.constant 0 : index
    %305 = vector.load %arg7[%c1_219, %c0_220] : memref<2x512xi32, #tpu.memory_space<vmem>>, vector<1x512xi32>
    %c15_i32_221 = arith.constant 15 : i32
    %306 = vector.broadcast %c15_i32_221 : i32 to vector<1x512xi32>
    %307 = arith.cmpi slt, %304, %306 : vector<1x512xi32>
    %c15_i32_222 = arith.constant 15 : i32
    %308 = vector.broadcast %c15_i32_222 : i32 to vector<1x512xi32>
    %309 = arith.cmpi slt, %305, %308 : vector<1x512xi32>
    %310 = arith.andi %307, %309 : vector<1x512xi1>
    %311 = arith.extui %310 : vector<1x512xi1> to vector<1x512xi32>
    %312 = arith.sitofp %311 : vector<1x512xi32> to vector<1x512xf32>
    %313 = vector.broadcast %312 : vector<1x512xf32> to vector<32x512xf32>
    %314 = arith.mulf %303, %313 : vector<32x512xf32>
    %c328_223 = arith.constant 328 : index
    %c0_224 = arith.constant 0 : index
    %315 = vector.load %arg9[%c328_223, %c0_224] : memref<384x512xf32, #tpu.memory_space<vmem>>, vector<32x512xf32>
    tpu.vector_store %arg9[%c328_223, %c0_224], %314 {strides = array<i32>} : memref<384x512xf32, #tpu.memory_space<vmem>>, vector<32x512xf32>,
    %c0_225 = arith.constant 0 : index
    %c0_226 = arith.constant 0 : index
    %316 = vector.load %arg4[%c0_225, %c0_226] : memref<32x384xf32, #tpu.memory_space<vmem>>, vector<32x384xf32>
    %c0_227 = arith.constant 0 : index
    %c0_228 = arith.constant 0 : index
    %317 = vector.load %arg9[%c0_227, %c0_228] : memref<384x512xf32, #tpu.memory_space<vmem>>, vector<384x512xf32>
    %cst_229 = arith.constant dense<0.000000e+00> : vector<32x512xf32>
    %318 = tpu.matmul %316, %317, %cst_229 {dimension_numbers = #tpu.dot_dimension_numbers<[1], [0], [0], [1], [0, 0, 1, 1], [], []>} : vector<32x384xf32>, vector<384x512xf32>, vector<32x512xf32> -> vector<32x512xf32>
    %c0_230 = arith.constant 0 : index
    %c0_231 = arith.constant 0 : index
    %319 = vector.load %arg6[%c0_230, %c0_231] : memref<32x1xf32, #tpu.memory_space<vmem>>, vector<32x1xf32>
    %320 = vector.broadcast %319 : vector<32x1xf32> to vector<32x512xf32>
    %321 = arith.addf %318, %320 : vector<32x512xf32>
    %322 = math.tanh %321 : vector<32x512xf32>
    %c0_232 = arith.constant 0 : index
    %c0_233 = arith.constant 0 : index
    %323 = vector.load %arg10[%c0_232, %c0_233] : memref<32x512xf32, #tpu.memory_space<vmem>>, vector<32x512xf32>
    %c0_234 = arith.constant 0 : index
    %c0_235 = arith.constant 0 : index
    %324 = vector.load %arg2[%c0_234, %c0_235] : memref<32x512xf32, #tpu.memory_space<vmem>>, vector<32x512xf32>
    %cst_236 = arith.constant 1.000000e+00 : f32
    %325 = vector.broadcast %cst_236 : f32 to vector<32x512xf32>
    %326 = arith.subf %325, %323 : vector<32x512xf32>
    %327 = arith.mulf %324, %326 : vector<32x512xf32>
    %328 = arith.mulf %322, %323 : vector<32x512xf32>
    %329 = arith.addf %327, %328 : vector<32x512xf32>
    %c0_237 = arith.constant 0 : index
    %c0_238 = arith.constant 0 : index
    %330 = vector.load %arg8[%c0_237, %c0_238] : memref<32x512xf32, #tpu.memory_space<vmem>>, vector<32x512xf32>
    tpu.vector_store %arg8[%c0_237, %c0_238], %329 {strides = array<i32>} : memref<32x512xf32, #tpu.memory_space<vmem>>, vector<32x512xf32>,
    return
  }
  func.func @transform_0(%arg0: i32) -> (i32, i32) {
    %c0_i32 = arith.constant 0 : i32
    %c0_i32_0 = arith.constant 0 : i32
    return %c0_i32, %arg0 : i32, i32
  }
  func.func @transform_1(%arg0: i32) -> (i32, i32) {
    %c0_i32 = arith.constant 0 : i32
    %c0_i32_0 = arith.constant 0 : i32
    return %c0_i32, %arg0 : i32, i32
  }
  func.func @transform_2(%arg0: i32) -> (i32, i32) {
    %c0_i32 = arith.constant 0 : i32
    %c0_i32_0 = arith.constant 0 : i32
    %c0_i32_1 = arith.constant 0 : i32
    return %c0_i32, %c0_i32_0 : i32, i32
  }
  func.func @transform_3(%arg0: i32) -> (i32, i32) {
    %c0_i32 = arith.constant 0 : i32
    %c0_i32_0 = arith.constant 0 : i32
    %c0_i32_1 = arith.constant 0 : i32
    return %c0_i32, %c0_i32_0 : i32, i32
  }
  func.func @transform_4(%arg0: i32) -> (i32, i32) {
    %c0_i32 = arith.constant 0 : i32
    %c0_i32_0 = arith.constant 0 : i32
    %c0_i32_1 = arith.constant 0 : i32
    return %c0_i32, %c0_i32_0 : i32, i32
  }
  func.func @transform_5(%arg0: i32) -> (i32, i32) {
    %c0_i32 = arith.constant 0 : i32
    %c0_i32_0 = arith.constant 0 : i32
    %c0_i32_1 = arith.constant 0 : i32
    return %c0_i32, %c0_i32_0 : i32, i32
  }
  func.func @transform_6(%arg0: i32) -> (i32, i32) {
    %c0_i32 = arith.constant 0 : i32
    %c0_i32_0 = arith.constant 0 : i32
    %c0_i32_1 = arith.constant 0 : i32
    return %c0_i32, %c0_i32_0 : i32, i32
  }
  func.func @transform_7(%arg0: i32) -> (i32, i32) {
    %c0_i32 = arith.constant 0 : i32
    %c0_i32_0 = arith.constant 0 : i32
    return %c0_i32, %arg0 : i32, i32
  }
}

</mosaic_0001>

<llo_original>
// kernel: tpu_custom_call.1
$region0: #{tpu_custom_call.1}
  #allocation0 [shape = 'u32[]', space=smem, size = 0x4, offset = 0x4, fixed_abs, tag = 'smem constant byte address 0x4 - core index']
  #allocation1 [shape = 'u32[72,128]{1,0:T(1,128)}', space=vmem, size = 0x9000, scoped, tag = 'internal scratch']
  #allocation2 [shape = 'f32[384,512]{1,0:T(8,128)}', space=vmem, size = 0xc0000, scoped, tag = 'scratch operand']
  #allocation3 [shape = 'f32[32,512]{1,0:T(8,128)}', space=vmem, size = 0x10000, scoped, tag = 'scratch operand']
  %s0 = inlined_call_operand.hbm [shape: f32[8,512], index: 0, kind: input, shape index: {}]
  %s1 = inlined_call_operand.hbm [shape: f32[32,512], index: 1, kind: input, shape index: {}]
  %s2 = inlined_call_operand.hbm [shape: f32[64,384], index: 2, kind: input, shape index: {}]
  %s3 = inlined_call_operand.vmem [shape: f32[32,384], index: 3, kind: input, shape index: {}]
  %s4 = inlined_call_operand.vmem [shape: f32[64,1], index: 4, kind: input, shape index: {}]
  %s5 = inlined_call_operand.vmem [shape: f32[32,1], index: 5, kind: input, shape index: {}]
  %s6 = inlined_call_operand.hbm [shape: s32[2,512], index: 6, kind: input, shape index: {}]
  %s7 = inlined_call_operand.hbm [shape: f32[32,512], index: 7, kind: output, shape index: {}]
  %s8 = sld [smem:[#allocation0]]
  $region54: #{tpu_custom_call.1} parent=0
    _
  %s10 = ssub.s32 1, %s8
  %s11 = scalar_select 0, %s10, %s8
  $region1: #{tpu_custom_call.1} parent=0
    #allocation4 [shape = 'u8[16384]{0}', space=vmem, size = 0x4000, scoped, tag = 'input window, operand 0, single buffered']
    #allocation5 [shape = 's32[1]{0}', space=sflag, size = 0x4, scoped, tag = 'scoped memory for tpu_custom_call.1']
    #allocation6 [shape = 's32[1]{0}', space=sflag, size = 0x4, scoped, tag = 'scoped memory for tpu_custom_call.1']
    #allocation7 [shape = 'u8[65536]{0}', space=vmem, size = 0x10000, scoped, tag = 'input window, operand 1, single buffered']
    #allocation8 [shape = 's32[1]{0}', space=sflag, size = 0x4, scoped, tag = 'scoped memory for tpu_custom_call.1']
    #allocation9 [shape = 'u8[98304]{0}', space=vmem, size = 0x18000, scoped, tag = 'input window, operand 2, single buffered']
    #allocation10 [shape = 'u8[4096]{0}', space=vmem, size = 0x1000, scoped, tag = 'input window, operand 6, single buffered']
    #allocation11 [shape = 's32[1]{0}', space=sflag, size = 0x4, scoped, tag = 'scoped memory for tpu_custom_call.1']
    #allocation12 [shape = 'u8[65536]{0}', space=vmem, size = 0x10000, scoped, tag = 'output window, operand 0, single buffered']
    %12 = vsyncpa [#allocation5], 0
    %13 = vsyncpa [#allocation8], 0
    %14 = vsyncpa [#allocation11], 0
    %15 = vsyncpa [#allocation6], 0
    // Predicated region
    $region2: #{tpu_custom_call.1} parent=1 // pred_check
      _
    $region3: #{tpu_custom_call.1} parent=1 // pred_check_branch
      %17 = sbr.rel (0) target = $region5
    $region4: #{tpu_custom_call.1} parent=1 // pred_region
      %19 = vsyncadd [#allocation5], 0
      %s21 = sshll.u32 %s0, 4
      %s22 = int_to_ptr.hbm [resolvable:$true] %s21
      %s23 = sshll.u32 [#allocation4], 4
      %s24 = int_to_ptr.vmem [resolvable:$true] %s23
      %26 = dma.hbm_to_vmem [thread:$0]  %s22, 512, %s24, [#allocation5]
    $region5: #{tpu_custom_call.1} parent=1 // pred_fallthru
      _
    // Predicated region
    $region6: #{tpu_custom_call.1} parent=1 // pred_check
      _
    $region7: #{tpu_custom_call.1} parent=1 // pred_check_branch
      %28 = sbr.rel (0) target = $region9
    $region8: #{tpu_custom_call.1} parent=1 // pred_region
      %30 = vsyncadd [#allocation8], 0
      %s31 = sshll.u32 %s1, 4
      %s32 = int_to_ptr.hbm [resolvable:$true] %s31
      %s33 = sshll.u32 [#allocation7], 4
      %s34 = int_to_ptr.vmem [resolvable:$true] %s33
      %39 = dma.hbm_to_vmem [thread:$0]  %s32, 2048, %s34, [#allocation8], 512, 512, 32
    $region9: #{tpu_custom_call.1} parent=1 // pred_fallthru
      _
    // Predicated region
    $region10: #{tpu_custom_call.1} parent=1 // pred_check
      _
    $region11: #{tpu_custom_call.1} parent=1 // pred_check_branch
      %41 = sbr.rel (0) target = $region13
    $region12: #{tpu_custom_call.1} parent=1 // pred_region
      %43 = vsyncadd [#allocation8], 0
      %s44 = sshll.u32 %s2, 4
      %s45 = int_to_ptr.hbm [resolvable:$true] %s44
      %s46 = sshll.u32 [#allocation9], 4
      %s47 = int_to_ptr.vmem [resolvable:$true] %s46
      %52 = dma.hbm_to_vmem [thread:$0]  %s45, 3072, %s47, [#allocation8], 384, 384, 24
    $region13: #{tpu_custom_call.1} parent=1 // pred_fallthru
      _
    // Predicated region
    $region14: #{tpu_custom_call.1} parent=1 // pred_check
      _
    $region15: #{tpu_custom_call.1} parent=1 // pred_check_branch
      %54 = sbr.rel (0) target = $region17
    $region16: #{tpu_custom_call.1} parent=1 // pred_region
      _
    $region17: #{tpu_custom_call.1} parent=1 // pred_fallthru
      _
    // Predicated region
    $region18: #{tpu_custom_call.1} parent=1 // pred_check
      _
    $region19: #{tpu_custom_call.1} parent=1 // pred_check_branch
      %56 = sbr.rel (0) target = $region21
    $region20: #{tpu_custom_call.1} parent=1 // pred_region
      _
    $region21: #{tpu_custom_call.1} parent=1 // pred_fallthru
      _
    // Predicated region
    $region22: #{tpu_custom_call.1} parent=1 // pred_check
      _
    $region23: #{tpu_custom_call.1} parent=1 // pred_check_branch
      %58 = sbr.rel (0) target = $region25
    $region24: #{tpu_custom_call.1} parent=1 // pred_region
      _
    $region25: #{tpu_custom_call.1} parent=1 // pred_fallthru
      _
    // Predicated region
    $region26: #{tpu_custom_call.1} parent=1 // pred_check
      _
    $region27: #{tpu_custom_call.1} parent=1 // pred_check_branch
      %60 = sbr.rel (0) target = $region29
    $region28: #{tpu_custom_call.1} parent=1 // pred_region
      %62 = vsyncadd [#allocation11], 0
      %s64 = sshll.u32 %s6, 4
      %s65 = int_to_ptr.hbm [resolvable:$true] %s64
      %s66 = sshll.u32 [#allocation10], 4
      %s67 = int_to_ptr.vmem [resolvable:$true] %s66
      %69 = dma.hbm_to_vmem [thread:$0]  %s65, 128, %s67, [#allocation11]
    $region29: #{tpu_custom_call.1} parent=1 // pred_fallthru
      _
    // Predicated region
    $region30: #{tpu_custom_call.1} parent=1 // pred_check
      _
    $region31: #{tpu_custom_call.1} parent=1 // pred_check_branch
      %71 = sbr.rel (0) target = $region33
    $region32: #{tpu_custom_call.1} parent=1 // pred_region
      %73 = dma.done [#allocation5], 512
    $region33: #{tpu_custom_call.1} parent=1 // pred_fallthru
      _
    // Predicated region
    $region34: #{tpu_custom_call.1} parent=1 // pred_check
      _
    $region35: #{tpu_custom_call.1} parent=1 // pred_check_branch
      %75 = sbr.rel (0) target = $region37
    $region36: #{tpu_custom_call.1} parent=1 // pred_region
      %77 = dma.done [#allocation8], 2048
    $region37: #{tpu_custom_call.1} parent=1 // pred_fallthru
      _
    // Predicated region
    $region38: #{tpu_custom_call.1} parent=1 // pred_check
      _
    $region39: #{tpu_custom_call.1} parent=1 // pred_check_branch
      %79 = sbr.rel (0) target = $region41
    $region40: #{tpu_custom_call.1} parent=1 // pred_region
      %81 = dma.done [#allocation8], 3072
    $region41: #{tpu_custom_call.1} parent=1 // pred_fallthru
      _
    // Predicated region
    $region42: #{tpu_custom_call.1} parent=1 // pred_check
      _
    $region43: #{tpu_custom_call.1} parent=1 // pred_check_branch
      %83 = sbr.rel (0) target = $region45
    $region44: #{tpu_custom_call.1} parent=1 // pred_region
      %85 = dma.done [#allocation11], 128
    $region45: #{tpu_custom_call.1} parent=1 // pred_fallthru
      _
    %86 = vst [vmem:[#allocation2 + $0x5a0] sm:$0xff] 0.0
    %87 = vst [vmem:[#allocation2 + $0x5a8] sm:$0xff] 0.0
    %88 = vst [vmem:[#allocation2 + $0x5b0] sm:$0xff] 0.0
    %89 = vst [vmem:[#allocation2 + $0x5b8] sm:$0xff] 0.0
    %90 = vst [vmem:[#allocation2 + $0x5c0] sm:$0xff] 0.0
    %91 = vst [vmem:[#allocation2 + $0x5c8] sm:$0xff] 0.0
    %92 = vst [vmem:[#allocation2 + $0x5d0] sm:$0xff] 0.0
    %93 = vst [vmem:[#allocation2 + $0x5d8] sm:$0xff] 0.0
    %94 = vst [vmem:[#allocation2 + $0x5e0] sm:$0xff] 0.0
    %95 = vst [vmem:[#allocation2 + $0x5e8] sm:$0xff] 0.0
    %96 = vst [vmem:[#allocation2 + $0x5f0] sm:$0xff] 0.0
    %97 = vst [vmem:[#allocation2 + $0x5f8] sm:$0xff] 0.0
    %v98 = vld [vmem:[#allocation4] sm:$0xff]
    %v99 = vld [vmem:[#allocation4 + $0x8] sm:$0xff]
    %v100 = vld [vmem:[#allocation4 + $0x10] sm:$0xff]
    %v101 = vld [vmem:[#allocation4 + $0x18] sm:$0xff]
    %102 = vrot.lane.b32.xlu0 %v98, 17
    %v103 = vpop.permute.xlu0 %102
    %104 = vrot.lane.b32.xlu0 %v99, 17
    %v105 = vpop.permute.xlu0 %104
    %106 = vrot.lane.b32.xlu0 %v100, 17
    %v107 = vpop.permute.xlu0 %106
    %108 = vrot.lane.b32.xlu0 %v101, 17
    %v109 = vpop.permute.xlu0 %108
    %v110 = vlaneseq
    %v111 = vand.u32 %v110, 127
    %vm112 = vcmp.lt.s32.totalorder %v111, 17
    %v113 = vsel %vm112, %v107, %v109
    %v114 = vsel %vm112, %v105, %v107
    %v115 = vsel %vm112, %v103, %v105
    %v116 = vsel %vm112, %v109, %v103
    %v117 = vld [vmem:[#allocation10] ss:$2 sm:$0xf]
    %s118 = scalar_lea.vmem [#allocation10], 1
    %v119 = vld [vmem:[%s118] ss:$2 sm:$0xf]
    %vm120 = vcmp.ge.s32.totalorder %v117, 1
    %vm121 = vcmp.ge.s32.totalorder %v119, 1
    %vm122 = vmand %vm120, %vm121
    %v123 = vsel %vm122, 1, 0
    %v124 = vcvt.s32.f32 %v123
    %v126 = vperm.slane %v124, 0
    %v127 = vperm.slane %v124, 1
    %v128 = vperm.slane %v124, 2
    %v129 = vperm.slane %v124, 3
    %v134 = vmul.f32 %v116, %v126
    %v135 = vmul.f32 %v115, %v127
    %v136 = vmul.f32 %v114, %v128
    %v137 = vmul.f32 %v113, %v129
    %138 = vst [vmem:[#allocation2] sm:$0xff] %v134
    %139 = vst [vmem:[#allocation2 + $0x8] sm:$0xff] %v135
    %140 = vst [vmem:[#allocation2 + $0x10] sm:$0xff] %v136
    %141 = vst [vmem:[#allocation2 + $0x18] sm:$0xff] %v137
    %v142 = vld [vmem:[#allocation4] sm:$0xff]
    %v143 = vld [vmem:[#allocation4 + $0x8] sm:$0xff]
    %v144 = vld [vmem:[#allocation4 + $0x10] sm:$0xff]
    %v145 = vld [vmem:[#allocation4 + $0x18] sm:$0xff]
    %146 = vrot.lane.b32.xlu0 %v142, 16
    %v147 = vpop.permute.xlu0 %146
    %148 = vrot.lane.b32.xlu0 %v143, 16
    %v149 = vpop.permute.xlu0 %148
    %150 = vrot.lane.b32.xlu0 %v144, 16
    %v151 = vpop.permute.xlu0 %150
    %152 = vrot.lane.b32.xlu0 %v145, 16
    %v153 = vpop.permute.xlu0 %152
    %vm154 = vcmp.lt.s32.totalorder %v111, 16
    %v155 = vsel %vm154, %v151, %v153
    %v156 = vsel %vm154, %v149, %v151
    %v157 = vsel %vm154, %v147, %v149
    %v158 = vsel %vm154, %v153, %v147
    %v159 = vld [vmem:[#allocation10] ss:$2 sm:$0xf]
    %vm160 = vcmp.ge.s32.totalorder %v159, 1
    %v161 = vsel %vm160, 1, 0
    %v162 = vcvt.s32.f32 %v161
    %v164 = vperm.slane %v162, 0
    %v165 = vperm.slane %v162, 1
    %v166 = vperm.slane %v162, 2
    %v167 = vperm.slane %v162, 3
    %v172 = vmul.f32 %v158, %v164
    %v173 = vmul.f32 %v157, %v165
    %v174 = vmul.f32 %v156, %v166
    %v175 = vmul.f32 %v155, %v167
    %176 = vst [vmem:[#allocation2 + $0xa0] sm:$0xff] %v172
    %177 = vst [vmem:[#allocation2 + $0xa8] sm:$0xff] %v173
    %178 = vst [vmem:[#allocation2 + $0xb0] sm:$0xff] %v174
    %179 = vst [vmem:[#allocation2 + $0xb8] sm:$0xff] %v175
    %v180 = vld [vmem:[#allocation4] sm:$0xff]
    %v181 = vld [vmem:[#allocation4 + $0x8] sm:$0xff]
    %v182 = vld [vmem:[#allocation4 + $0x10] sm:$0xff]
    %v183 = vld [vmem:[#allocation4 + $0x18] sm:$0xff]
    %184 = vrot.lane.b32.xlu0 %v180, 15
    %v185 = vpop.permute.xlu0 %184
    %186 = vrot.lane.b32.xlu0 %v181, 15
    %v187 = vpop.permute.xlu0 %186
    %188 = vrot.lane.b32.xlu0 %v182, 15
    %v189 = vpop.permute.xlu0 %188
    %190 = vrot.lane.b32.xlu0 %v183, 15
    %v191 = vpop.permute.xlu0 %190
    %vm192 = vcmp.lt.s32.totalorder %v111, 15
    %v193 = vsel %vm192, %v189, %v191
    %v194 = vsel %vm192, %v187, %v189
    %v195 = vsel %vm192, %v185, %v187
    %v196 = vsel %vm192, %v191, %v185
    %v197 = vld [vmem:[#allocation10] ss:$2 sm:$0xf]
    %v198 = vld [vmem:[%s118] ss:$2 sm:$0xf]
    %vm199 = vcmp.ge.s32.totalorder %v197, 1
    %vm200 = vcmp.lt.s32.totalorder %v198, 15
    %vm201 = vmand %vm199, %vm200
    %v202 = vsel %vm201, 1, 0
    %v203 = vcvt.s32.f32 %v202
    %v205 = vperm.slane %v203, 0
    %v206 = vperm.slane %v203, 1
    %v207 = vperm.slane %v203, 2
    %v208 = vperm.slane %v203, 3
    %v213 = vmul.f32 %v196, %v205
    %v214 = vmul.f32 %v195, %v206
    %v215 = vmul.f32 %v194, %v207
    %v216 = vmul.f32 %v193, %v208
    %217 = vst [vmem:[#allocation2 + $0x140] sm:$0xff] %v213
    %218 = vst [vmem:[#allocation2 + $0x148] sm:$0xff] %v214
    %219 = vst [vmem:[#allocation2 + $0x150] sm:$0xff] %v215
    %220 = vst [vmem:[#allocation2 + $0x158] sm:$0xff] %v216
    %v221 = vld [vmem:[#allocation4] sm:$0xff]
    %v222 = vld [vmem:[#allocation4 + $0x8] sm:$0xff]
    %v223 = vld [vmem:[#allocation4 + $0x10] sm:$0xff]
    %v224 = vld [vmem:[#allocation4 + $0x18] sm:$0xff]
    %225 = vrot.lane.b32.xlu0 %v221, 1
    %v226 = vpop.permute.xlu0 %225
    %227 = vrot.lane.b32.xlu0 %v222, 1
    %v228 = vpop.permute.xlu0 %227
    %229 = vrot.lane.b32.xlu0 %v223, 1
    %v230 = vpop.permute.xlu0 %229
    %231 = vrot.lane.b32.xlu0 %v224, 1
    %v232 = vpop.permute.xlu0 %231
    %vm233 = vcmp.lt.s32.totalorder %v111, 1
    %v234 = vsel %vm233, %v230, %v232
    %v235 = vsel %vm233, %v228, %v230
    %v236 = vsel %vm233, %v226, %v228
    %v237 = vsel %vm233, %v232, %v226
    %v238 = vld [vmem:[%s118] ss:$2 sm:$0xf]
    %vm239 = vcmp.ge.s32.totalorder %v238, 1
    %v240 = vsel %vm239, 1, 0
    %v241 = vcvt.s32.f32 %v240
    %v243 = vperm.slane %v241, 0
    %v244 = vperm.slane %v241, 1
    %v245 = vperm.slane %v241, 2
    %v246 = vperm.slane %v241, 3
    %v251 = vmul.f32 %v237, %v243
    %v252 = vmul.f32 %v236, %v244
    %v253 = vmul.f32 %v235, %v245
    %v254 = vmul.f32 %v234, %v246
    %255 = vst [vmem:[#allocation2 + $0x1e0] sm:$0xff] %v251
    %256 = vst [vmem:[#allocation2 + $0x1e8] sm:$0xff] %v252
    %257 = vst [vmem:[#allocation2 + $0x1f0] sm:$0xff] %v253
    %258 = vst [vmem:[#allocation2 + $0x1f8] sm:$0xff] %v254
    %v259 = vld [vmem:[#allocation4] sm:$0xff]
    %v260 = vld [vmem:[#allocation4 + $0x8] sm:$0xff]
    %v261 = vld [vmem:[#allocation4 + $0x10] sm:$0xff]
    %v262 = vld [vmem:[#allocation4 + $0x18] sm:$0xff]
    %263 = vst [vmem:[#allocation2 + $0x280] sm:$0xff] %v259
    %264 = vst [vmem:[#allocation2 + $0x288] sm:$0xff] %v260
    %265 = vst [vmem:[#allocation2 + $0x290] sm:$0xff] %v261
    %266 = vst [vmem:[#allocation2 + $0x298] sm:$0xff] %v262
    %v267 = vld [vmem:[#allocation4] sm:$0xff]
    %v268 = vld [vmem:[#allocation4 + $0x8] sm:$0xff]
    %v269 = vld [vmem:[#allocation4 + $0x10] sm:$0xff]
    %v270 = vld [vmem:[#allocation4 + $0x18] sm:$0xff]
    %271 = vrot.lane.b32.xlu0 %v267, 127
    %v272 = vpop.permute.xlu0 %271
    %273 = vrot.lane.b32.xlu0 %v268, 127
    %v274 = vpop.permute.xlu0 %273
    %275 = vrot.lane.b32.xlu0 %v269, 127
    %v276 = vpop.permute.xlu0 %275
    %277 = vrot.lane.b32.xlu0 %v270, 127
    %v278 = vpop.permute.xlu0 %277
    %vm279 = vcmp.lt.s32.totalorder %v111, 127
    %v280 = vsel %vm279, %v276, %v278
    %v281 = vsel %vm279, %v274, %v276
    %v282 = vsel %vm279, %v272, %v274
    %v283 = vsel %vm279, %v278, %v272
    %v284 = vld [vmem:[%s118] ss:$2 sm:$0xf]
    %vm285 = vcmp.lt.s32.totalorder %v284, 15
    %v286 = vsel %vm285, 1, 0
    %v287 = vcvt.s32.f32 %v286
    %v289 = vperm.slane %v287, 0
    %v290 = vperm.slane %v287, 1
    %v291 = vperm.slane %v287, 2
    %v292 = vperm.slane %v287, 3
    %v297 = vmul.f32 %v282, %v289
    %v298 = vmul.f32 %v281, %v290
    %v299 = vmul.f32 %v280, %v291
    %v300 = vmul.f32 %v283, %v292
    %301 = vst [vmem:[#allocation2 + $0x320] sm:$0xff] %v297
    %302 = vst [vmem:[#allocation2 + $0x328] sm:$0xff] %v298
    %303 = vst [vmem:[#allocation2 + $0x330] sm:$0xff] %v299
    %304 = vst [vmem:[#allocation2 + $0x338] sm:$0xff] %v300
    %v305 = vld [vmem:[#allocation4] sm:$0xff]
    %v306 = vld [vmem:[#allocation4 + $0x8] sm:$0xff]
    %v307 = vld [vmem:[#allocation4 + $0x10] sm:$0xff]
    %v308 = vld [vmem:[#allocation4 + $0x18] sm:$0xff]
    %309 = vrot.lane.b32.xlu0 %v305, 113
    %v310 = vpop.permute.xlu0 %309
    %311 = vrot.lane.b32.xlu0 %v306, 113
    %v312 = vpop.permute.xlu0 %311
    %313 = vrot.lane.b32.xlu0 %v307, 113
    %v314 = vpop.permute.xlu0 %313
    %315 = vrot.lane.b32.xlu0 %v308, 113
    %v316 = vpop.permute.xlu0 %315
    %vm317 = vcmp.lt.s32.totalorder %v111, 113
    %v318 = vsel %vm317, %v314, %v316
    %v319 = vsel %vm317, %v312, %v314
    %v320 = vsel %vm317, %v310, %v312
    %v321 = vsel %vm317, %v316, %v310
    %v322 = vld [vmem:[#allocation10] ss:$2 sm:$0xf]
    %v323 = vld [vmem:[%s118] ss:$2 sm:$0xf]
    %vm324 = vcmp.lt.s32.totalorder %v322, 15
    %vm325 = vcmp.ge.s32.totalorder %v323, 1
    %vm326 = vmand %vm324, %vm325
    %v327 = vsel %vm326, 1, 0
    %v328 = vcvt.s32.f32 %v327
    %v330 = vperm.slane %v328, 0
    %v331 = vperm.slane %v328, 1
    %v332 = vperm.slane %v328, 2
    %v333 = vperm.slane %v328, 3
    %v338 = vmul.f32 %v320, %v330
    %v339 = vmul.f32 %v319, %v331
    %v340 = vmul.f32 %v318, %v332
    %v341 = vmul.f32 %v321, %v333
    %342 = vst [vmem:[#allocation2 + $0x3c0] sm:$0xff] %v338
    %343 = vst [vmem:[#allocation2 + $0x3c8] sm:$0xff] %v339
    %344 = vst [vmem:[#allocation2 + $0x3d0] sm:$0xff] %v340
    %345 = vst [vmem:[#allocation2 + $0x3d8] sm:$0xff] %v341
    %v346 = vld [vmem:[#allocation4] sm:$0xff]
    %v347 = vld [vmem:[#allocation4 + $0x8] sm:$0xff]
    %v348 = vld [vmem:[#allocation4 + $0x10] sm:$0xff]
    %v349 = vld [vmem:[#allocation4 + $0x18] sm:$0xff]
    %350 = vrot.lane.b32.xlu0 %v346, 112
    %v351 = vpop.permute.xlu0 %350
    %352 = vrot.lane.b32.xlu0 %v347, 112
    %v353 = vpop.permute.xlu0 %352
    %354 = vrot.lane.b32.xlu0 %v348, 112
    %v355 = vpop.permute.xlu0 %354
    %356 = vrot.lane.b32.xlu0 %v349, 112
    %v357 = vpop.permute.xlu0 %356
    %vm358 = vcmp.lt.s32.totalorder %v111, 112
    %v359 = vsel %vm358, %v355, %v357
    %v360 = vsel %vm358, %v353, %v355
    %v361 = vsel %vm358, %v351, %v353
    %v362 = vsel %vm358, %v357, %v351
    %v363 = vld [vmem:[#allocation10] ss:$2 sm:$0xf]
    %vm364 = vcmp.lt.s32.totalorder %v363, 15
    %v365 = vsel %vm364, 1, 0
    %v366 = vcvt.s32.f32 %v365
    %v368 = vperm.slane %v366, 0
    %v369 = vperm.slane %v366, 1
    %v370 = vperm.slane %v366, 2
    %v371 = vperm.slane %v366, 3
    %v376 = vmul.f32 %v361, %v368
    %v377 = vmul.f32 %v360, %v369
    %v378 = vmul.f32 %v359, %v370
    %v379 = vmul.f32 %v362, %v371
    %380 = vst [vmem:[#allocation2 + $0x460] sm:$0xff] %v376
    %381 = vst [vmem:[#allocation2 + $0x468] sm:$0xff] %v377
    %382 = vst [vmem:[#allocation2 + $0x470] sm:$0xff] %v378
    %383 = vst [vmem:[#allocation2 + $0x478] sm:$0xff] %v379
    %v384 = vld [vmem:[#allocation4] sm:$0xff]
    %v385 = vld [vmem:[#allocation4 + $0x8] sm:$0xff]
    %v386 = vld [vmem:[#allocation4 + $0x10] sm:$0xff]
    %v387 = vld [vmem:[#allocation4 + $0x18] sm:$0xff]
    %388 = vrot.lane.b32.xlu0 %v384, 111
    %v389 = vpop.permute.xlu0 %388
    %390 = vrot.lane.b32.xlu0 %v385, 111
    %v391 = vpop.permute.xlu0 %390
    %392 = vrot.lane.b32.xlu0 %v386, 111
    %v393 = vpop.permute.xlu0 %392
    %394 = vrot.lane.b32.xlu0 %v387, 111
    %v395 = vpop.permute.xlu0 %394
    %vm396 = vcmp.lt.s32.totalorder %v111, 111
    %v397 = vsel %vm396, %v393, %v395
    %v398 = vsel %vm396, %v391, %v393
    %v399 = vsel %vm396, %v389, %v391
    %v400 = vsel %vm396, %v395, %v389
    %v401 = vld [vmem:[#allocation10] ss:$2 sm:$0xf]
    %v402 = vld [vmem:[%s118] ss:$2 sm:$0xf]
    %vm403 = vcmp.lt.s32.totalorder %v401, 15
    %vm404 = vcmp.lt.s32.totalorder %v402, 15
    %vm405 = vmand %vm403, %vm404
    %v406 = vsel %vm405, 1, 0
    %v407 = vcvt.s32.f32 %v406
    %v409 = vperm.slane %v407, 0
    %v410 = vperm.slane %v407, 1
    %v411 = vperm.slane %v407, 2
    %v412 = vperm.slane %v407, 3
    %v417 = vmul.f32 %v399, %v409
    %v418 = vmul.f32 %v398, %v410
    %v419 = vmul.f32 %v397, %v411
    %v420 = vmul.f32 %v400, %v412
    %421 = vst [vmem:[#allocation2 + $0x500] sm:$0xff] %v417
    %422 = vst [vmem:[#allocation2 + $0x508] sm:$0xff] %v418
    %423 = vst [vmem:[#allocation2 + $0x510] sm:$0xff] %v419
    %424 = vst [vmem:[#allocation2 + $0x518] sm:$0xff] %v420
    %v425 = vld [vmem:[#allocation7] sm:$0xff]
    %v426 = vld [vmem:[#allocation7 + $0x8] sm:$0xff]
    %v427 = vld [vmem:[#allocation7 + $0x10] sm:$0xff]
    %v428 = vld [vmem:[#allocation7 + $0x18] sm:$0xff]
    %v429 = vld [vmem:[#allocation7 + $0x20] sm:$0xff]
    %v430 = vld [vmem:[#allocation7 + $0x28] sm:$0xff]
    %v431 = vld [vmem:[#allocation7 + $0x30] sm:$0xff]
    %v432 = vld [vmem:[#allocation7 + $0x38] sm:$0xff]
    %v433 = vld [vmem:[#allocation7 + $0x40] sm:$0xff]
    %v434 = vld [vmem:[#allocation7 + $0x48] sm:$0xff]
    %v435 = vld [vmem:[#allocation7 + $0x50] sm:$0xff]
    %v436 = vld [vmem:[#allocation7 + $0x58] sm:$0xff]
    %v437 = vld [vmem:[#allocation7 + $0x60] sm:$0xff]
    %v438 = vld [vmem:[#allocation7 + $0x68] sm:$0xff]
    %v439 = vld [vmem:[#allocation7 + $0x70] sm:$0xff]
    %v440 = vld [vmem:[#allocation7 + $0x78] sm:$0xff]
    %441 = vrot.lane.b32.xlu0 %v425, 17
    %v442 = vpop.permute.xlu0 %441
    %443 = vrot.lane.b32.xlu0 %v429, 17
    %v444 = vpop.permute.xlu0 %443
    %445 = vrot.lane.b32.xlu0 %v433, 17
    %v446 = vpop.permute.xlu0 %445
    %447 = vrot.lane.b32.xlu0 %v437, 17
    %v448 = vpop.permute.xlu0 %447
    %449 = vrot.lane.b32.xlu0 %v426, 17
    %v450 = vpop.permute.xlu0 %449
    %451 = vrot.lane.b32.xlu0 %v430, 17
    %v452 = vpop.permute.xlu0 %451
    %453 = vrot.lane.b32.xlu0 %v434, 17
    %v454 = vpop.permute.xlu0 %453
    %455 = vrot.lane.b32.xlu0 %v438, 17
    %v456 = vpop.permute.xlu0 %455
    %457 = vrot.lane.b32.xlu0 %v427, 17
    %v458 = vpop.permute.xlu0 %457
    %459 = vrot.lane.b32.xlu0 %v431, 17
    %v460 = vpop.permute.xlu0 %459
    %461 = vrot.lane.b32.xlu0 %v435, 17
    %v462 = vpop.permute.xlu0 %461
    %463 = vrot.lane.b32.xlu0 %v439, 17
    %v464 = vpop.permute.xlu0 %463
    %465 = vrot.lane.b32.xlu0 %v428, 17
    %v466 = vpop.permute.xlu0 %465
    %467 = vrot.lane.b32.xlu0 %v432, 17
    %v468 = vpop.permute.xlu0 %467
    %469 = vrot.lane.b32.xlu0 %v436, 17
    %v470 = vpop.permute.xlu0 %469
    %471 = vrot.lane.b32.xlu0 %v440, 17
    %v472 = vpop.permute.xlu0 %471
    %v473 = vsel %vm112, %v458, %v466
    %v474 = vsel %vm112, %v460, %v468
    %v475 = vsel %vm112, %v462, %v470
    %v476 = vsel %vm112, %v464, %v472
    %v477 = vsel %vm112, %v450, %v458
    %v478 = vsel %vm112, %v452, %v460
    %v479 = vsel %vm112, %v454, %v462
    %v480 = vsel %vm112, %v456, %v464
    %v481 = vsel %vm112, %v442, %v450
    %v482 = vsel %vm112, %v444, %v452
    %v483 = vsel %vm112, %v446, %v454
    %v484 = vsel %vm112, %v448, %v456
    %v485 = vsel %vm112, %v466, %v442
    %v486 = vsel %vm112, %v468, %v444
    %v487 = vsel %vm112, %v470, %v446
    %v488 = vsel %vm112, %v472, %v448
    %v489 = vld [vmem:[#allocation10] ss:$2 sm:$0xf]
    %v490 = vld [vmem:[%s118] ss:$2 sm:$0xf]
    %vm491 = vcmp.ge.s32.totalorder %v489, 1
    %vm492 = vcmp.ge.s32.totalorder %v490, 1
    %vm493 = vmand %vm491, %vm492
    %v494 = vsel %vm493, 1, 0
    %v495 = vcvt.s32.f32 %v494
    %v497 = vperm.slane %v495, 0
    %v498 = vperm.slane %v495, 1
    %v499 = vperm.slane %v495, 2
    %v500 = vperm.slane %v495, 3
    %v505 = vmul.f32 %v485, %v497
    %v506 = vmul.f32 %v481, %v498
    %v507 = vmul.f32 %v477, %v499
    %v508 = vmul.f32 %v473, %v500
    %v509 = vmul.f32 %v486, %v497
    %v510 = vmul.f32 %v482, %v498
    %v511 = vmul.f32 %v478, %v499
    %v512 = vmul.f32 %v474, %v500
    %v513 = vmul.f32 %v487, %v497
    %v514 = vmul.f32 %v483, %v498
    %v515 = vmul.f32 %v479, %v499
    %v516 = vmul.f32 %v475, %v500
    %v517 = vmul.f32 %v488, %v497
    %v518 = vmul.f32 %v484, %v498
    %v519 = vmul.f32 %v480, %v499
    %v520 = vmul.f32 %v476, %v500
    %521 = vst [vmem:[#allocation2 + $0x20] sm:$0xff] %v505
    %522 = vst [vmem:[#allocation2 + $0x28] sm:$0xff] %v506
    %523 = vst [vmem:[#allocation2 + $0x30] sm:$0xff] %v507
    %524 = vst [vmem:[#allocation2 + $0x38] sm:$0xff] %v508
    %525 = vst [vmem:[#allocation2 + $0x40] sm:$0xff] %v509
    %526 = vst [vmem:[#allocation2 + $0x48] sm:$0xff] %v510
    %527 = vst [vmem:[#allocation2 + $0x50] sm:$0xff] %v511
    %528 = vst [vmem:[#allocation2 + $0x58] sm:$0xff] %v512
    %529 = vst [vmem:[#allocation2 + $0x60] sm:$0xff] %v513
    %530 = vst [vmem:[#allocation2 + $0x68] sm:$0xff] %v514
    %531 = vst [vmem:[#allocation2 + $0x70] sm:$0xff] %v515
    %532 = vst [vmem:[#allocation2 + $0x78] sm:$0xff] %v516
    %533 = vst [vmem:[#allocation2 + $0x80] sm:$0xff] %v517
    %534 = vst [vmem:[#allocation2 + $0x88] sm:$0xff] %v518
    %535 = vst [vmem:[#allocation2 + $0x90] sm:$0xff] %v519
    %536 = vst [vmem:[#allocation2 + $0x98] sm:$0xff] %v520
    %v537 = vld [vmem:[#allocation7] sm:$0xff]
    %v538 = vld [vmem:[#allocation7 + $0x8] sm:$0xff]
    %v539 = vld [vmem:[#allocation7 + $0x10] sm:$0xff]
    %v540 = vld [vmem:[#allocation7 + $0x18] sm:$0xff]
    %v541 = vld [vmem:[#allocation7 + $0x20] sm:$0xff]
    %v542 = vld [vmem:[#allocation7 + $0x28] sm:$0xff]
    %v543 = vld [vmem:[#allocation7 + $0x30] sm:$0xff]
    %v544 = vld [vmem:[#allocation7 + $0x38] sm:$0xff]
    %v545 = vld [vmem:[#allocation7 + $0x40] sm:$0xff]
    %v546 = vld [vmem:[#allocation7 + $0x48] sm:$0xff]
    %v547 = vld [vmem:[#allocation7 + $0x50] sm:$0xff]
    %v548 = vld [vmem:[#allocation7 + $0x58] sm:$0xff]
    %v549 = vld [vmem:[#allocation7 + $0x60] sm:$0xff]
    %v550 = vld [vmem:[#allocation7 + $0x68] sm:$0xff]
    %v551 = vld [vmem:[#allocation7 + $0x70] sm:$0xff]
    %v552 = vld [vmem:[#allocation7 + $0x78] sm:$0xff]
    %553 = vrot.lane.b32.xlu0 %v537, 16
    %v554 = vpop.permute.xlu0 %553
    %555 = vrot.lane.b32.xlu0 %v541, 16
    %v556 = vpop.permute.xlu0 %555
    %557 = vrot.lane.b32.xlu0 %v545, 16
    %v558 = vpop.permute.xlu0 %557
    %559 = vrot.lane.b32.xlu0 %v549, 16
    %v560 = vpop.permute.xlu0 %559
    %561 = vrot.lane.b32.xlu0 %v538, 16
    %v562 = vpop.permute.xlu0 %561
    %563 = vrot.lane.b32.xlu0 %v542, 16
    %v564 = vpop.permute.xlu0 %563
    %565 = vrot.lane.b32.xlu0 %v546, 16
    %v566 = vpop.permute.xlu0 %565
    %567 = vrot.lane.b32.xlu0 %v550, 16
    %v568 = vpop.permute.xlu0 %567
    %569 = vrot.lane.b32.xlu0 %v539, 16
    %v570 = vpop.permute.xlu0 %569
    %571 = vrot.lane.b32.xlu0 %v543, 16
    %v572 = vpop.permute.xlu0 %571
    %573 = vrot.lane.b32.xlu0 %v547, 16
    %v574 = vpop.permute.xlu0 %573
    %575 = vrot.lane.b32.xlu0 %v551, 16
    %v576 = vpop.permute.xlu0 %575
    %577 = vrot.lane.b32.xlu0 %v540, 16
    %v578 = vpop.permute.xlu0 %577
    %579 = vrot.lane.b32.xlu0 %v544, 16
    %v580 = vpop.permute.xlu0 %579
    %581 = vrot.lane.b32.xlu0 %v548, 16
    %v582 = vpop.permute.xlu0 %581
    %583 = vrot.lane.b32.xlu0 %v552, 16
    %v584 = vpop.permute.xlu0 %583
    %v585 = vsel %vm154, %v570, %v578
    %v586 = vsel %vm154, %v572, %v580
    %v587 = vsel %vm154, %v574, %v582
    %v588 = vsel %vm154, %v576, %v584
    %v589 = vsel %vm154, %v562, %v570
    %v590 = vsel %vm154, %v564, %v572
    %v591 = vsel %vm154, %v566, %v574
    %v592 = vsel %vm154, %v568, %v576
    %v593 = vsel %vm154, %v554, %v562
    %v594 = vsel %vm154, %v556, %v564
    %v595 = vsel %vm154, %v558, %v566
    %v596 = vsel %vm154, %v560, %v568
    %v597 = vsel %vm154, %v578, %v554
    %v598 = vsel %vm154, %v580, %v556
    %v599 = vsel %vm154, %v582, %v558
    %v600 = vsel %vm154, %v584, %v560
    %v601 = vld [vmem:[#allocation10] ss:$2 sm:$0xf]
    %vm602 = vcmp.ge.s32.totalorder %v601, 1
    %v603 = vsel %vm602, 1, 0
    %v604 = vcvt.s32.f32 %v603
    %v606 = vperm.slane %v604, 0
    %v607 = vperm.slane %v604, 1
    %v608 = vperm.slane %v604, 2
    %v609 = vperm.slane %v604, 3
    %v614 = vmul.f32 %v597, %v606
    %v615 = vmul.f32 %v593, %v607
    %v616 = vmul.f32 %v589, %v608
    %v617 = vmul.f32 %v585, %v609
    %v618 = vmul.f32 %v598, %v606
    %v619 = vmul.f32 %v594, %v607
    %v620 = vmul.f32 %v590, %v608
    %v621 = vmul.f32 %v586, %v609
    %v622 = vmul.f32 %v599, %v606
    %v623 = vmul.f32 %v595, %v607
    %v624 = vmul.f32 %v591, %v608
    %v625 = vmul.f32 %v587, %v609
    %v626 = vmul.f32 %v600, %v606
    %v627 = vmul.f32 %v596, %v607
    %v628 = vmul.f32 %v592, %v608
    %v629 = vmul.f32 %v588, %v609
    %630 = vst [vmem:[#allocation2 + $0xc0] sm:$0xff] %v614
    %631 = vst [vmem:[#allocation2 + $0xc8] sm:$0xff] %v615
    %632 = vst [vmem:[#allocation2 + $0xd0] sm:$0xff] %v616
    %633 = vst [vmem:[#allocation2 + $0xd8] sm:$0xff] %v617
    %634 = vst [vmem:[#allocation2 + $0xe0] sm:$0xff] %v618
    %635 = vst [vmem:[#allocation2 + $0xe8] sm:$0xff] %v619
    %636 = vst [vmem:[#allocation2 + $0xf0] sm:$0xff] %v620
    %637 = vst [vmem:[#allocation2 + $0xf8] sm:$0xff] %v621
    %638 = vst [vmem:[#allocation2 + $0x100] sm:$0xff] %v622
    %639 = vst [vmem:[#allocation2 + $0x108] sm:$0xff] %v623
    %640 = vst [vmem:[#allocation2 + $0x110] sm:$0xff] %v624
    %641 = vst [vmem:[#allocation2 + $0x118] sm:$0xff] %v625
    %642 = vst [vmem:[#allocation2 + $0x120] sm:$0xff] %v626
    %643 = vst [vmem:[#allocation2 + $0x128] sm:$0xff] %v627
    %644 = vst [vmem:[#allocation2 + $0x130] sm:$0xff] %v628
    %645 = vst [vmem:[#allocation2 + $0x138] sm:$0xff] %v629
    %v646 = vld [vmem:[#allocation7] sm:$0xff]
    %v647 = vld [vmem:[#allocation7 + $0x8] sm:$0xff]
    %v648 = vld [vmem:[#allocation7 + $0x10] sm:$0xff]
    %v649 = vld [vmem:[#allocation7 + $0x18] sm:$0xff]
    %v650 = vld [vmem:[#allocation7 + $0x20] sm:$0xff]
    %v651 = vld [vmem:[#allocation7 + $0x28] sm:$0xff]
    %v652 = vld [vmem:[#allocation7 + $0x30] sm:$0xff]
    %v653 = vld [vmem:[#allocation7 + $0x38] sm:$0xff]
    %v654 = vld [vmem:[#allocation7 + $0x40] sm:$0xff]
    %v655 = vld [vmem:[#allocation7 + $0x48] sm:$0xff]
    %v656 = vld [vmem:[#allocation7 + $0x50] sm:$0xff]
    %v657 = vld [vmem:[#allocation7 + $0x58] sm:$0xff]
    %v658 = vld [vmem:[#allocation7 + $0x60] sm:$0xff]
    %v659 = vld [vmem:[#allocation7 + $0x68] sm:$0xff]
    %v660 = vld [vmem:[#allocation7 + $0x70] sm:$0xff]
    %v661 = vld [vmem:[#allocation7 + $0x78] sm:$0xff]
    %662 = vrot.lane.b32.xlu0 %v646, 15
    %v663 = vpop.permute.xlu0 %662
    %664 = vrot.lane.b32.xlu0 %v650, 15
    %v665 = vpop.permute.xlu0 %664
    %666 = vrot.lane.b32.xlu0 %v654, 15
    %v667 = vpop.permute.xlu0 %666
    %668 = vrot.lane.b32.xlu0 %v658, 15
    %v669 = vpop.permute.xlu0 %668
    %670 = vrot.lane.b32.xlu0 %v647, 15
    %v671 = vpop.permute.xlu0 %670
    %672 = vrot.lane.b32.xlu0 %v651, 15
    %v673 = vpop.permute.xlu0 %672
    %674 = vrot.lane.b32.xlu0 %v655, 15
    %v675 = vpop.permute.xlu0 %674
    %676 = vrot.lane.b32.xlu0 %v659, 15
    %v677 = vpop.permute.xlu0 %676
    %678 = vrot.lane.b32.xlu0 %v648, 15
    %v679 = vpop.permute.xlu0 %678
    %680 = vrot.lane.b32.xlu0 %v652, 15
    %v681 = vpop.permute.xlu0 %680
    %682 = vrot.lane.b32.xlu0 %v656, 15
    %v683 = vpop.permute.xlu0 %682
    %684 = vrot.lane.b32.xlu0 %v660, 15
    %v685 = vpop.permute.xlu0 %684
    %686 = vrot.lane.b32.xlu0 %v649, 15
    %v687 = vpop.permute.xlu0 %686
    %688 = vrot.lane.b32.xlu0 %v653, 15
    %v689 = vpop.permute.xlu0 %688
    %690 = vrot.lane.b32.xlu0 %v657, 15
    %v691 = vpop.permute.xlu0 %690
    %692 = vrot.lane.b32.xlu0 %v661, 15
    %v693 = vpop.permute.xlu0 %692
    %v694 = vsel %vm192, %v679, %v687
    %v695 = vsel %vm192, %v681, %v689
    %v696 = vsel %vm192, %v683, %v691
    %v697 = vsel %vm192, %v685, %v693
    %v698 = vsel %vm192, %v671, %v679
    %v699 = vsel %vm192, %v673, %v681
    %v700 = vsel %vm192, %v675, %v683
    %v701 = vsel %vm192, %v677, %v685
    %v702 = vsel %vm192, %v663, %v671
    %v703 = vsel %vm192, %v665, %v673
    %v704 = vsel %vm192, %v667, %v675
    %v705 = vsel %vm192, %v669, %v677
    %v706 = vsel %vm192, %v687, %v663
    %v707 = vsel %vm192, %v689, %v665
    %v708 = vsel %vm192, %v691, %v667
    %v709 = vsel %vm192, %v693, %v669
    %v710 = vld [vmem:[#allocation10] ss:$2 sm:$0xf]
    %v711 = vld [vmem:[%s118] ss:$2 sm:$0xf]
    %vm712 = vcmp.ge.s32.totalorder %v710, 1
    %vm713 = vcmp.lt.s32.totalorder %v711, 15
    %vm714 = vmand %vm712, %vm713
    %v715 = vsel %vm714, 1, 0
    %v716 = vcvt.s32.f32 %v715
    %v718 = vperm.slane %v716, 0
    %v719 = vperm.slane %v716, 1
    %v720 = vperm.slane %v716, 2
    %v721 = vperm.slane %v716, 3
    %v726 = vmul.f32 %v706, %v718
    %v727 = vmul.f32 %v702, %v719
    %v728 = vmul.f32 %v698, %v720
    %v729 = vmul.f32 %v694, %v721
    %v730 = vmul.f32 %v707, %v718
    %v731 = vmul.f32 %v703, %v719
    %v732 = vmul.f32 %v699, %v720
    %v733 = vmul.f32 %v695, %v721
    %v734 = vmul.f32 %v708, %v718
    %v735 = vmul.f32 %v704, %v719
    %v736 = vmul.f32 %v700, %v720
    %v737 = vmul.f32 %v696, %v721
    %v738 = vmul.f32 %v709, %v718
    %v739 = vmul.f32 %v705, %v719
    %v740 = vmul.f32 %v701, %v720
    %v741 = vmul.f32 %v697, %v721
    %742 = vst [vmem:[#allocation2 + $0x160] sm:$0xff] %v726
    %743 = vst [vmem:[#allocation2 + $0x168] sm:$0xff] %v727
    %744 = vst [vmem:[#allocation2 + $0x170] sm:$0xff] %v728
    %745 = vst [vmem:[#allocation2 + $0x178] sm:$0xff] %v729
    %746 = vst [vmem:[#allocation2 + $0x180] sm:$0xff] %v730
    %747 = vst [vmem:[#allocation2 + $0x188] sm:$0xff] %v731
    %748 = vst [vmem:[#allocation2 + $0x190] sm:$0xff] %v732
    %749 = vst [vmem:[#allocation2 + $0x198] sm:$0xff] %v733
    %750 = vst [vmem:[#allocation2 + $0x1a0] sm:$0xff] %v734
    %751 = vst [vmem:[#allocation2 + $0x1a8] sm:$0xff] %v735
    %752 = vst [vmem:[#allocation2 + $0x1b0] sm:$0xff] %v736
    %753 = vst [vmem:[#allocation2 + $0x1b8] sm:$0xff] %v737
    %754 = vst [vmem:[#allocation2 + $0x1c0] sm:$0xff] %v738
    %755 = vst [vmem:[#allocation2 + $0x1c8] sm:$0xff] %v739
    %756 = vst [vmem:[#allocation2 + $0x1d0] sm:$0xff] %v740
    %757 = vst [vmem:[#allocation2 + $0x1d8] sm:$0xff] %v741
    %v758 = vld [vmem:[#allocation7] sm:$0xff]
    %v759 = vld [vmem:[#allocation7 + $0x8] sm:$0xff]
    %v760 = vld [vmem:[#allocation7 + $0x10] sm:$0xff]
    %v761 = vld [vmem:[#allocation7 + $0x18] sm:$0xff]
    %v762 = vld [vmem:[#allocation7 + $0x20] sm:$0xff]
    %v763 = vld [vmem:[#allocation7 + $0x28] sm:$0xff]
    %v764 = vld [vmem:[#allocation7 + $0x30] sm:$0xff]
    %v765 = vld [vmem:[#allocation7 + $0x38] sm:$0xff]
    %v766 = vld [vmem:[#allocation7 + $0x40] sm:$0xff]
    %v767 = vld [vmem:[#allocation7 + $0x48] sm:$0xff]
    %v768 = vld [vmem:[#allocation7 + $0x50] sm:$0xff]
    %v769 = vld [vmem:[#allocation7 + $0x58] sm:$0xff]
    %v770 = vld [vmem:[#allocation7 + $0x60] sm:$0xff]
    %v771 = vld [vmem:[#allocation7 + $0x68] sm:$0xff]
    %v772 = vld [vmem:[#allocation7 + $0x70] sm:$0xff]
    %v773 = vld [vmem:[#allocation7 + $0x78] sm:$0xff]
    %774 = vrot.lane.b32.xlu0 %v758, 1
    %v775 = vpop.permute.xlu0 %774
    %776 = vrot.lane.b32.xlu0 %v762, 1
    %v777 = vpop.permute.xlu0 %776
    %778 = vrot.lane.b32.xlu0 %v766, 1
    %v779 = vpop.permute.xlu0 %778
    %780 = vrot.lane.b32.xlu0 %v770, 1
    %v781 = vpop.permute.xlu0 %780
    %782 = vrot.lane.b32.xlu0 %v759, 1
    %v783 = vpop.permute.xlu0 %782
    %784 = vrot.lane.b32.xlu0 %v763, 1
    %v785 = vpop.permute.xlu0 %784
    %786 = vrot.lane.b32.xlu0 %v767, 1
    %v787 = vpop.permute.xlu0 %786
    %788 = vrot.lane.b32.xlu0 %v771, 1
    %v789 = vpop.permute.xlu0 %788
    %790 = vrot.lane.b32.xlu0 %v760, 1
    %v791 = vpop.permute.xlu0 %790
    %792 = vrot.lane.b32.xlu0 %v764, 1
    %v793 = vpop.permute.xlu0 %792
    %794 = vrot.lane.b32.xlu0 %v768, 1
    %v795 = vpop.permute.xlu0 %794
    %796 = vrot.lane.b32.xlu0 %v772, 1
    %v797 = vpop.permute.xlu0 %796
    %798 = vrot.lane.b32.xlu0 %v761, 1
    %v799 = vpop.permute.xlu0 %798
    %800 = vrot.lane.b32.xlu0 %v765, 1
    %v801 = vpop.permute.xlu0 %800
    %802 = vrot.lane.b32.xlu0 %v769, 1
    %v803 = vpop.permute.xlu0 %802
    %804 = vrot.lane.b32.xlu0 %v773, 1
    %v805 = vpop.permute.xlu0 %804
    %v806 = vsel %vm233, %v791, %v799
    %v807 = vsel %vm233, %v793, %v801
    %v808 = vsel %vm233, %v795, %v803
    %v809 = vsel %vm233, %v797, %v805
    %v810 = vsel %vm233, %v783, %v791
    %v811 = vsel %vm233, %v785, %v793
    %v812 = vsel %vm233, %v787, %v795
    %v813 = vsel %vm233, %v789, %v797
    %v814 = vsel %vm233, %v775, %v783
    %v815 = vsel %vm233, %v777, %v785
    %v816 = vsel %vm233, %v779, %v787
    %v817 = vsel %vm233, %v781, %v789
    %v818 = vsel %vm233, %v799, %v775
    %v819 = vsel %vm233, %v801, %v777
    %v820 = vsel %vm233, %v803, %v779
    %v821 = vsel %vm233, %v805, %v781
    %v822 = vld [vmem:[%s118] ss:$2 sm:$0xf]
    %vm823 = vcmp.ge.s32.totalorder %v822, 1
    %v824 = vsel %vm823, 1, 0
    %v825 = vcvt.s32.f32 %v824
    %v827 = vperm.slane %v825, 0
    %v828 = vperm.slane %v825, 1
    %v829 = vperm.slane %v825, 2
    %v830 = vperm.slane %v825, 3
    %v835 = vmul.f32 %v818, %v827
    %v836 = vmul.f32 %v814, %v828
    %v837 = vmul.f32 %v810, %v829
    %v838 = vmul.f32 %v806, %v830
    %v839 = vmul.f32 %v819, %v827
    %v840 = vmul.f32 %v815, %v828
    %v841 = vmul.f32 %v811, %v829
    %v842 = vmul.f32 %v807, %v830
    %v843 = vmul.f32 %v820, %v827
    %v844 = vmul.f32 %v816, %v828
    %v845 = vmul.f32 %v812, %v829
    %v846 = vmul.f32 %v808, %v830
    %v847 = vmul.f32 %v821, %v827
    %v848 = vmul.f32 %v817, %v828
    %v849 = vmul.f32 %v813, %v829
    %v850 = vmul.f32 %v809, %v830
    %851 = vst [vmem:[#allocation2 + $0x200] sm:$0xff] %v835
    %852 = vst [vmem:[#allocation2 + $0x208] sm:$0xff] %v836
    %853 = vst [vmem:[#allocation2 + $0x210] sm:$0xff] %v837
    %854 = vst [vmem:[#allocation2 + $0x218] sm:$0xff] %v838
    %855 = vst [vmem:[#allocation2 + $0x220] sm:$0xff] %v839
    %856 = vst [vmem:[#allocation2 + $0x228] sm:$0xff] %v840
    %857 = vst [vmem:[#allocation2 + $0x230] sm:$0xff] %v841
    %858 = vst [vmem:[#allocation2 + $0x238] sm:$0xff] %v842
    %859 = vst [vmem:[#allocation2 + $0x240] sm:$0xff] %v843
    %860 = vst [vmem:[#allocation2 + $0x248] sm:$0xff] %v844
    %861 = vst [vmem:[#allocation2 + $0x250] sm:$0xff] %v845
    %862 = vst [vmem:[#allocation2 + $0x258] sm:$0xff] %v846
    %863 = vst [vmem:[#allocation2 + $0x260] sm:$0xff] %v847
    %864 = vst [vmem:[#allocation2 + $0x268] sm:$0xff] %v848
    %865 = vst [vmem:[#allocation2 + $0x270] sm:$0xff] %v849
    %866 = vst [vmem:[#allocation2 + $0x278] sm:$0xff] %v850
    %v867 = vld [vmem:[#allocation7] sm:$0xff]
    %v868 = vld [vmem:[#allocation7 + $0x8] sm:$0xff]
    %v869 = vld [vmem:[#allocation7 + $0x10] sm:$0xff]
    %v870 = vld [vmem:[#allocation7 + $0x18] sm:$0xff]
    %v871 = vld [vmem:[#allocation7 + $0x20] sm:$0xff]
    %v872 = vld [vmem:[#allocation7 + $0x28] sm:$0xff]
    %v873 = vld [vmem:[#allocation7 + $0x30] sm:$0xff]
    %v874 = vld [vmem:[#allocation7 + $0x38] sm:$0xff]
    %v875 = vld [vmem:[#allocation7 + $0x40] sm:$0xff]
    %v876 = vld [vmem:[#allocation7 + $0x48] sm:$0xff]
    %v877 = vld [vmem:[#allocation7 + $0x50] sm:$0xff]
    %v878 = vld [vmem:[#allocation7 + $0x58] sm:$0xff]
    %v879 = vld [vmem:[#allocation7 + $0x60] sm:$0xff]
    %v880 = vld [vmem:[#allocation7 + $0x68] sm:$0xff]
    %v881 = vld [vmem:[#allocation7 + $0x70] sm:$0xff]
    %v882 = vld [vmem:[#allocation7 + $0x78] sm:$0xff]
    %883 = vst [vmem:[#allocation2 + $0x2a0] sm:$0xff] %v867
    %884 = vst [vmem:[#allocation2 + $0x2a8] sm:$0xff] %v868
    %885 = vst [vmem:[#allocation2 + $0x2b0] sm:$0xff] %v869
    %886 = vst [vmem:[#allocation2 + $0x2b8] sm:$0xff] %v870
    %887 = vst [vmem:[#allocation2 + $0x2c0] sm:$0xff] %v871
    %888 = vst [vmem:[#allocation2 + $0x2c8] sm:$0xff] %v872
    %889 = vst [vmem:[#allocation2 + $0x2d0] sm:$0xff] %v873
    %890 = vst [vmem:[#allocation2 + $0x2d8] sm:$0xff] %v874
    %891 = vst [vmem:[#allocation2 + $0x2e0] sm:$0xff] %v875
    %892 = vst [vmem:[#allocation2 + $0x2e8] sm:$0xff] %v876
    %893 = vst [vmem:[#allocation2 + $0x2f0] sm:$0xff] %v877
    %894 = vst [vmem:[#allocation2 + $0x2f8] sm:$0xff] %v878
    %895 = vst [vmem:[#allocation2 + $0x300] sm:$0xff] %v879
    %896 = vst [vmem:[#allocation2 + $0x308] sm:$0xff] %v880
    %897 = vst [vmem:[#allocation2 + $0x310] sm:$0xff] %v881
    %898 = vst [vmem:[#allocation2 + $0x318] sm:$0xff] %v882
    %v899 = vld [vmem:[#allocation7] sm:$0xff]
    %v900 = vld [vmem:[#allocation7 + $0x8] sm:$0xff]
    %v901 = vld [vmem:[#allocation7 + $0x10] sm:$0xff]
    %v902 = vld [vmem:[#allocation7 + $0x18] sm:$0xff]
    %v903 = vld [vmem:[#allocation7 + $0x20] sm:$0xff]
    %v904 = vld [vmem:[#allocation7 + $0x28] sm:$0xff]
    %v905 = vld [vmem:[#allocation7 + $0x30] sm:$0xff]
    %v906 = vld [vmem:[#allocation7 + $0x38] sm:$0xff]
    %v907 = vld [vmem:[#allocation7 + $0x40] sm:$0xff]
    %v908 = vld [vmem:[#allocation7 + $0x48] sm:$0xff]
    %v909 = vld [vmem:[#allocation7 + $0x50] sm:$0xff]
    %v910 = vld [vmem:[#allocation7 + $0x58] sm:$0xff]
    %v911 = vld [vmem:[#allocation7 + $0x60] sm:$0xff]
    %v912 = vld [vmem:[#allocation7 + $0x68] sm:$0xff]
    %v913 = vld [vmem:[#allocation7 + $0x70] sm:$0xff]
    %v914 = vld [vmem:[#allocation7 + $0x78] sm:$0xff]
    %915 = vrot.lane.b32.xlu0 %v899, 127
    %v916 = vpop.permute.xlu0 %915
    %917 = vrot.lane.b32.xlu0 %v903, 127
    %v918 = vpop.permute.xlu0 %917
    %919 = vrot.lane.b32.xlu0 %v907, 127
    %v920 = vpop.permute.xlu0 %919
    %921 = vrot.lane.b32.xlu0 %v911, 127
    %v922 = vpop.permute.xlu0 %921
    %923 = vrot.lane.b32.xlu0 %v900, 127
    %v924 = vpop.permute.xlu0 %923
    %925 = vrot.lane.b32.xlu0 %v904, 127
    %v926 = vpop.permute.xlu0 %925
    %927 = vrot.lane.b32.xlu0 %v908, 127
    %v928 = vpop.permute.xlu0 %927
    %929 = vrot.lane.b32.xlu0 %v912, 127
    %v930 = vpop.permute.xlu0 %929
    %931 = vrot.lane.b32.xlu0 %v901, 127
    %v932 = vpop.permute.xlu0 %931
    %933 = vrot.lane.b32.xlu0 %v905, 127
    %v934 = vpop.permute.xlu0 %933
    %935 = vrot.lane.b32.xlu0 %v909, 127
    %v936 = vpop.permute.xlu0 %935
    %937 = vrot.lane.b32.xlu0 %v913, 127
    %v938 = vpop.permute.xlu0 %937
    %939 = vrot.lane.b32.xlu0 %v902, 127
    %v940 = vpop.permute.xlu0 %939
    %941 = vrot.lane.b32.xlu0 %v906, 127
    %v942 = vpop.permute.xlu0 %941
    %943 = vrot.lane.b32.xlu0 %v910, 127
    %v944 = vpop.permute.xlu0 %943
    %945 = vrot.lane.b32.xlu0 %v914, 127
    %v946 = vpop.permute.xlu0 %945
    %v947 = vsel %vm279, %v932, %v940
    %v948 = vsel %vm279, %v934, %v942
    %v949 = vsel %vm279, %v936, %v944
    %v950 = vsel %vm279, %v938, %v946
    %v951 = vsel %vm279, %v924, %v932
    %v952 = vsel %vm279, %v926, %v934
    %v953 = vsel %vm279, %v928, %v936
    %v954 = vsel %vm279, %v930, %v938
    %v955 = vsel %vm279, %v916, %v924
    %v956 = vsel %vm279, %v918, %v926
    %v957 = vsel %vm279, %v920, %v928
    %v958 = vsel %vm279, %v922, %v930
    %v959 = vsel %vm279, %v940, %v916
    %v960 = vsel %vm279, %v942, %v918
    %v961 = vsel %vm279, %v944, %v920
    %v962 = vsel %vm279, %v946, %v922
    %v963 = vld [vmem:[%s118] ss:$2 sm:$0xf]
    %vm964 = vcmp.lt.s32.totalorder %v963, 15
    %v965 = vsel %vm964, 1, 0
    %v966 = vcvt.s32.f32 %v965
    %v968 = vperm.slane %v966, 0
    %v969 = vperm.slane %v966, 1
    %v970 = vperm.slane %v966, 2
    %v971 = vperm.slane %v966, 3
    %v976 = vmul.f32 %v955, %v968
    %v977 = vmul.f32 %v951, %v969
    %v978 = vmul.f32 %v947, %v970
    %v979 = vmul.f32 %v959, %v971
    %v980 = vmul.f32 %v956, %v968
    %v981 = vmul.f32 %v952, %v969
    %v982 = vmul.f32 %v948, %v970
    %v983 = vmul.f32 %v960, %v971
    %v984 = vmul.f32 %v957, %v968
    %v985 = vmul.f32 %v953, %v969
    %v986 = vmul.f32 %v949, %v970
    %v987 = vmul.f32 %v961, %v971
    %v988 = vmul.f32 %v958, %v968
    %v989 = vmul.f32 %v954, %v969
    %v990 = vmul.f32 %v950, %v970
    %v991 = vmul.f32 %v962, %v971
    %992 = vst [vmem:[#allocation2 + $0x340] sm:$0xff] %v976
    %993 = vst [vmem:[#allocation2 + $0x348] sm:$0xff] %v977
    %994 = vst [vmem:[#allocation2 + $0x350] sm:$0xff] %v978
    %995 = vst [vmem:[#allocation2 + $0x358] sm:$0xff] %v979
    %996 = vst [vmem:[#allocation2 + $0x360] sm:$0xff] %v980
    %997 = vst [vmem:[#allocation2 + $0x368] sm:$0xff] %v981
    %998 = vst [vmem:[#allocation2 + $0x370] sm:$0xff] %v982
    %999 = vst [vmem:[#allocation2 + $0x378] sm:$0xff] %v983
    %1000 = vst [vmem:[#allocation2 + $0x380] sm:$0xff] %v984
    %1001 = vst [vmem:[#allocation2 + $0x388] sm:$0xff] %v985
    %1002 = vst [vmem:[#allocation2 + $0x390] sm:$0xff] %v986
    %1003 = vst [vmem:[#allocation2 + $0x398] sm:$0xff] %v987
    %1004 = vst [vmem:[#allocation2 + $0x3a0] sm:$0xff] %v988
    %1005 = vst [vmem:[#allocation2 + $0x3a8] sm:$0xff] %v989
    %1006 = vst [vmem:[#allocation2 + $0x3b0] sm:$0xff] %v990
    %1007 = vst [vmem:[#allocation2 + $0x3b8] sm:$0xff] %v991
    %v1008 = vld [vmem:[#allocation7] sm:$0xff]
    %v1009 = vld [vmem:[#allocation7 + $0x8] sm:$0xff]
    %v1010 = vld [vmem:[#allocation7 + $0x10] sm:$0xff]
    %v1011 = vld [vmem:[#allocation7 + $0x18] sm:$0xff]
    %v1012 = vld [vmem:[#allocation7 + $0x20] sm:$0xff]
    %v1013 = vld [vmem:[#allocation7 + $0x28] sm:$0xff]
    %v1014 = vld [vmem:[#allocation7 + $0x30] sm:$0xff]
    %v1015 = vld [vmem:[#allocation7 + $0x38] sm:$0xff]
    %v1016 = vld [vmem:[#allocation7 + $0x40] sm:$0xff]
    %v1017 = vld [vmem:[#allocation7 + $0x48] sm:$0xff]
    %v1018 = vld [vmem:[#allocation7 + $0x50] sm:$0xff]
    %v1019 = vld [vmem:[#allocation7 + $0x58] sm:$0xff]
    %v1020 = vld [vmem:[#allocation7 + $0x60] sm:$0xff]
    %v1021 = vld [vmem:[#allocation7 + $0x68] sm:$0xff]
    %v1022 = vld [vmem:[#allocation7 + $0x70] sm:$0xff]
    %v1023 = vld [vmem:[#allocation7 + $0x78] sm:$0xff]
    %1024 = vrot.lane.b32.xlu0 %v1008, 113
    %v1025 = vpop.permute.xlu0 %1024
    %1026 = vrot.lane.b32.xlu0 %v1012, 113
    %v1027 = vpop.permute.xlu0 %1026
    %1028 = vrot.lane.b32.xlu0 %v1016, 113
    %v1029 = vpop.permute.xlu0 %1028
    %1030 = vrot.lane.b32.xlu0 %v1020, 113
    %v1031 = vpop.permute.xlu0 %1030
    %1032 = vrot.lane.b32.xlu0 %v1009, 113
    %v1033 = vpop.permute.xlu0 %1032
    %1034 = vrot.lane.b32.xlu0 %v1013, 113
    %v1035 = vpop.permute.xlu0 %1034
    %1036 = vrot.lane.b32.xlu0 %v1017, 113
    %v1037 = vpop.permute.xlu0 %1036
    %1038 = vrot.lane.b32.xlu0 %v1021, 113
    %v1039 = vpop.permute.xlu0 %1038
    %1040 = vrot.lane.b32.xlu0 %v1010, 113
    %v1041 = vpop.permute.xlu0 %1040
    %1042 = vrot.lane.b32.xlu0 %v1014, 113
    %v1043 = vpop.permute.xlu0 %1042
    %1044 = vrot.lane.b32.xlu0 %v1018, 113
    %v1045 = vpop.permute.xlu0 %1044
    %1046 = vrot.lane.b32.xlu0 %v1022, 113
    %v1047 = vpop.permute.xlu0 %1046
    %1048 = vrot.lane.b32.xlu0 %v1011, 113
    %v1049 = vpop.permute.xlu0 %1048
    %1050 = vrot.lane.b32.xlu0 %v1015, 113
    %v1051 = vpop.permute.xlu0 %1050
    %1052 = vrot.lane.b32.xlu0 %v1019, 113
    %v1053 = vpop.permute.xlu0 %1052
    %1054 = vrot.lane.b32.xlu0 %v1023, 113
    %v1055 = vpop.permute.xlu0 %1054
    %v1056 = vsel %vm317, %v1041, %v1049
    %v1057 = vsel %vm317, %v1043, %v1051
    %v1058 = vsel %vm317, %v1045, %v1053
    %v1059 = vsel %vm317, %v1047, %v1055
    %v1060 = vsel %vm317, %v1033, %v1041
    %v1061 = vsel %vm317, %v1035, %v1043
    %v1062 = vsel %vm317, %v1037, %v1045
    %v1063 = vsel %vm317, %v1039, %v1047
    %v1064 = vsel %vm317, %v1025, %v1033
    %v1065 = vsel %vm317, %v1027, %v1035
    %v1066 = vsel %vm317, %v1029, %v1037
    %v1067 = vsel %vm317, %v1031, %v1039
    %v1068 = vsel %vm317, %v1049, %v1025
    %v1069 = vsel %vm317, %v1051, %v1027
    %v1070 = vsel %vm317, %v1053, %v1029
    %v1071 = vsel %vm317, %v1055, %v1031
    %v1072 = vld [vmem:[#allocation10] ss:$2 sm:$0xf]
    %v1073 = vld [vmem:[%s118] ss:$2 sm:$0xf]
    %vm1074 = vcmp.lt.s32.totalorder %v1072, 15
    %vm1075 = vcmp.ge.s32.totalorder %v1073, 1
    %vm1076 = vmand %vm1074, %vm1075
    %v1077 = vsel %vm1076, 1, 0
    %v1078 = vcvt.s32.f32 %v1077
    %v1080 = vperm.slane %v1078, 0
    %v1081 = vperm.slane %v1078, 1
    %v1082 = vperm.slane %v1078, 2
    %v1083 = vperm.slane %v1078, 3
    %v1088 = vmul.f32 %v1064, %v1080
    %v1089 = vmul.f32 %v1060, %v1081
    %v1090 = vmul.f32 %v1056, %v1082
    %v1091 = vmul.f32 %v1068, %v1083
    %v1092 = vmul.f32 %v1065, %v1080
    %v1093 = vmul.f32 %v1061, %v1081
    %v1094 = vmul.f32 %v1057, %v1082
    %v1095 = vmul.f32 %v1069, %v1083
    %v1096 = vmul.f32 %v1066, %v1080
    %v1097 = vmul.f32 %v1062, %v1081
    %v1098 = vmul.f32 %v1058, %v1082
    %v1099 = vmul.f32 %v1070, %v1083
    %v1100 = vmul.f32 %v1067, %v1080
    %v1101 = vmul.f32 %v1063, %v1081
    %v1102 = vmul.f32 %v1059, %v1082
    %v1103 = vmul.f32 %v1071, %v1083
    %1104 = vst [vmem:[#allocation2 + $0x3e0] sm:$0xff] %v1088
    %1105 = vst [vmem:[#allocation2 + $0x3e8] sm:$0xff] %v1089
    %1106 = vst [vmem:[#allocation2 + $0x3f0] sm:$0xff] %v1090
    %1107 = vst [vmem:[#allocation2 + $0x3f8] sm:$0xff] %v1091
    %1108 = vst [vmem:[#allocation2 + $0x400] sm:$0xff] %v1092
    %1109 = vst [vmem:[#allocation2 + $0x408] sm:$0xff] %v1093
    %1110 = vst [vmem:[#allocation2 + $0x410] sm:$0xff] %v1094
    %1111 = vst [vmem:[#allocation2 + $0x418] sm:$0xff] %v1095
    %1112 = vst [vmem:[#allocation2 + $0x420] sm:$0xff] %v1096
    %1113 = vst [vmem:[#allocation2 + $0x428] sm:$0xff] %v1097
    %1114 = vst [vmem:[#allocation2 + $0x430] sm:$0xff] %v1098
    %1115 = vst [vmem:[#allocation2 + $0x438] sm:$0xff] %v1099
    %1116 = vst [vmem:[#allocation2 + $0x440] sm:$0xff] %v1100
    %1117 = vst [vmem:[#allocation2 + $0x448] sm:$0xff] %v1101
    %1118 = vst [vmem:[#allocation2 + $0x450] sm:$0xff] %v1102
    %1119 = vst [vmem:[#allocation2 + $0x458] sm:$0xff] %v1103
    %v1120 = vld [vmem:[#allocation7] sm:$0xff]
    %v1121 = vld [vmem:[#allocation7 + $0x8] sm:$0xff]
    %v1122 = vld [vmem:[#allocation7 + $0x10] sm:$0xff]
    %v1123 = vld [vmem:[#allocation7 + $0x18] sm:$0xff]
    %v1124 = vld [vmem:[#allocation7 + $0x20] sm:$0xff]
    %v1125 = vld [vmem:[#allocation7 + $0x28] sm:$0xff]
    %v1126 = vld [vmem:[#allocation7 + $0x30] sm:$0xff]
    %v1127 = vld [vmem:[#allocation7 + $0x38] sm:$0xff]
    %v1128 = vld [vmem:[#allocation7 + $0x40] sm:$0xff]
    %v1129 = vld [vmem:[#allocation7 + $0x48] sm:$0xff]
    %v1130 = vld [vmem:[#allocation7 + $0x50] sm:$0xff]
    %v1131 = vld [vmem:[#allocation7 + $0x58] sm:$0xff]
    %v1132 = vld [vmem:[#allocation7 + $0x60] sm:$0xff]
    %v1133 = vld [vmem:[#allocation7 + $0x68] sm:$0xff]
    %v1134 = vld [vmem:[#allocation7 + $0x70] sm:$0xff]
    %v1135 = vld [vmem:[#allocation7 + $0x78] sm:$0xff]
    %1136 = vrot.lane.b32.xlu0 %v1120, 112
    %v1137 = vpop.permute.xlu0 %1136
    %1138 = vrot.lane.b32.xlu0 %v1124, 112
    %v1139 = vpop.permute.xlu0 %1138
    %1140 = vrot.lane.b32.xlu0 %v1128, 112
    %v1141 = vpop.permute.xlu0 %1140
    %1142 = vrot.lane.b32.xlu0 %v1132, 112
    %v1143 = vpop.permute.xlu0 %1142
    %1144 = vrot.lane.b32.xlu0 %v1121, 112
    %v1145 = vpop.permute.xlu0 %1144
    %1146 = vrot.lane.b32.xlu0 %v1125, 112
    %v1147 = vpop.permute.xlu0 %1146
    %1148 = vrot.lane.b32.xlu0 %v1129, 112
    %v1149 = vpop.permute.xlu0 %1148
    %1150 = vrot.lane.b32.xlu0 %v1133, 112
    %v1151 = vpop.permute.xlu0 %1150
    %1152 = vrot.lane.b32.xlu0 %v1122, 112
    %v1153 = vpop.permute.xlu0 %1152
    %1154 = vrot.lane.b32.xlu0 %v1126, 112
    %v1155 = vpop.permute.xlu0 %1154
    %1156 = vrot.lane.b32.xlu0 %v1130, 112
    %v1157 = vpop.permute.xlu0 %1156
    %1158 = vrot.lane.b32.xlu0 %v1134, 112
    %v1159 = vpop.permute.xlu0 %1158
    %1160 = vrot.lane.b32.xlu0 %v1123, 112
    %v1161 = vpop.permute.xlu0 %1160
    %1162 = vrot.lane.b32.xlu0 %v1127, 112
    %v1163 = vpop.permute.xlu0 %1162
    %1164 = vrot.lane.b32.xlu0 %v1131, 112
    %v1165 = vpop.permute.xlu0 %1164
    %1166 = vrot.lane.b32.xlu0 %v1135, 112
    %v1167 = vpop.permute.xlu0 %1166
    %v1168 = vsel %vm358, %v1153, %v1161
    %v1169 = vsel %vm358, %v1155, %v1163
    %v1170 = vsel %vm358, %v1157, %v1165
    %v1171 = vsel %vm358, %v1159, %v1167
    %v1172 = vsel %vm358, %v1145, %v1153
    %v1173 = vsel %vm358, %v1147, %v1155
    %v1174 = vsel %vm358, %v1149, %v1157
    %v1175 = vsel %vm358, %v1151, %v1159
    %v1176 = vsel %vm358, %v1137, %v1145
    %v1177 = vsel %vm358, %v1139, %v1147
    %v1178 = vsel %vm358, %v1141, %v1149
    %v1179 = vsel %vm358, %v1143, %v1151
    %v1180 = vsel %vm358, %v1161, %v1137
    %v1181 = vsel %vm358, %v1163, %v1139
    %v1182 = vsel %vm358, %v1165, %v1141
    %v1183 = vsel %vm358, %v1167, %v1143
    %v1184 = vld [vmem:[#allocation10] ss:$2 sm:$0xf]
    %vm1185 = vcmp.lt.s32.totalorder %v1184, 15
    %v1186 = vsel %vm1185, 1, 0
    %v1187 = vcvt.s32.f32 %v1186
    %v1189 = vperm.slane %v1187, 0
    %v1190 = vperm.slane %v1187, 1
    %v1191 = vperm.slane %v1187, 2
    %v1192 = vperm.slane %v1187, 3
    %v1197 = vmul.f32 %v1176, %v1189
    %v1198 = vmul.f32 %v1172, %v1190
    %v1199 = vmul.f32 %v1168, %v1191
    %v1200 = vmul.f32 %v1180, %v1192
    %v1201 = vmul.f32 %v1177, %v1189
    %v1202 = vmul.f32 %v1173, %v1190
    %v1203 = vmul.f32 %v1169, %v1191
    %v1204 = vmul.f32 %v1181, %v1192
    %v1205 = vmul.f32 %v1178, %v1189
    %v1206 = vmul.f32 %v1174, %v1190
    %v1207 = vmul.f32 %v1170, %v1191
    %v1208 = vmul.f32 %v1182, %v1192
    %v1209 = vmul.f32 %v1179, %v1189
    %v1210 = vmul.f32 %v1175, %v1190
    %v1211 = vmul.f32 %v1171, %v1191
    %v1212 = vmul.f32 %v1183, %v1192
    %1213 = vst [vmem:[#allocation2 + $0x480] sm:$0xff] %v1197
    %1214 = vst [vmem:[#allocation2 + $0x488] sm:$0xff] %v1198
    %1215 = vst [vmem:[#allocation2 + $0x490] sm:$0xff] %v1199
    %1216 = vst [vmem:[#allocation2 + $0x498] sm:$0xff] %v1200
    %1217 = vst [vmem:[#allocation2 + $0x4a0] sm:$0xff] %v1201
    %1218 = vst [vmem:[#allocation2 + $0x4a8] sm:$0xff] %v1202
    %1219 = vst [vmem:[#allocation2 + $0x4b0] sm:$0xff] %v1203
    %1220 = vst [vmem:[#allocation2 + $0x4b8] sm:$0xff] %v1204
    %1221 = vst [vmem:[#allocation2 + $0x4c0] sm:$0xff] %v1205
    %1222 = vst [vmem:[#allocation2 + $0x4c8] sm:$0xff] %v1206
    %1223 = vst [vmem:[#allocation2 + $0x4d0] sm:$0xff] %v1207
    %1224 = vst [vmem:[#allocation2 + $0x4d8] sm:$0xff] %v1208
    %1225 = vst [vmem:[#allocation2 + $0x4e0] sm:$0xff] %v1209
    %1226 = vst [vmem:[#allocation2 + $0x4e8] sm:$0xff] %v1210
    %1227 = vst [vmem:[#allocation2 + $0x4f0] sm:$0xff] %v1211
    %1228 = vst [vmem:[#allocation2 + $0x4f8] sm:$0xff] %v1212
    %v1229 = vld [vmem:[#allocation7] sm:$0xff]
    %v1230 = vld [vmem:[#allocation7 + $0x8] sm:$0xff]
    %v1231 = vld [vmem:[#allocation7 + $0x10] sm:$0xff]
    %v1232 = vld [vmem:[#allocation7 + $0x18] sm:$0xff]
    %v1233 = vld [vmem:[#allocation7 + $0x20] sm:$0xff]
    %v1234 = vld [vmem:[#allocation7 + $0x28] sm:$0xff]
    %v1235 = vld [vmem:[#allocation7 + $0x30] sm:$0xff]
    %v1236 = vld [vmem:[#allocation7 + $0x38] sm:$0xff]
    %v1237 = vld [vmem:[#allocation7 + $0x40] sm:$0xff]
    %v1238 = vld [vmem:[#allocation7 + $0x48] sm:$0xff]
    %v1239 = vld [vmem:[#allocation7 + $0x50] sm:$0xff]
    %v1240 = vld [vmem:[#allocation7 + $0x58] sm:$0xff]
    %v1241 = vld [vmem:[#allocation7 + $0x60] sm:$0xff]
    %v1242 = vld [vmem:[#allocation7 + $0x68] sm:$0xff]
    %v1243 = vld [vmem:[#allocation7 + $0x70] sm:$0xff]
    %v1244 = vld [vmem:[#allocation7 + $0x78] sm:$0xff]
    %1245 = vrot.lane.b32.xlu0 %v1229, 111
    %v1246 = vpop.permute.xlu0 %1245
    %1247 = vrot.lane.b32.xlu0 %v1233, 111
    %v1248 = vpop.permute.xlu0 %1247
    %1249 = vrot.lane.b32.xlu0 %v1237, 111
    %v1250 = vpop.permute.xlu0 %1249
    %1251 = vrot.lane.b32.xlu0 %v1241, 111
    %v1252 = vpop.permute.xlu0 %1251
    %1253 = vrot.lane.b32.xlu0 %v1230, 111
    %v1254 = vpop.permute.xlu0 %1253
    %1255 = vrot.lane.b32.xlu0 %v1234, 111
    %v1256 = vpop.permute.xlu0 %1255
    %1257 = vrot.lane.b32.xlu0 %v1238, 111
    %v1258 = vpop.permute.xlu0 %1257
    %1259 = vrot.lane.b32.xlu0 %v1242, 111
    %v1260 = vpop.permute.xlu0 %1259
    %1261 = vrot.lane.b32.xlu0 %v1231, 111
    %v1262 = vpop.permute.xlu0 %1261
    %1263 = vrot.lane.b32.xlu0 %v1235, 111
    %v1264 = vpop.permute.xlu0 %1263
    %1265 = vrot.lane.b32.xlu0 %v1239, 111
    %v1266 = vpop.permute.xlu0 %1265
    %1267 = vrot.lane.b32.xlu0 %v1243, 111
    %v1268 = vpop.permute.xlu0 %1267
    %1269 = vrot.lane.b32.xlu0 %v1232, 111
    %v1270 = vpop.permute.xlu0 %1269
    %1271 = vrot.lane.b32.xlu0 %v1236, 111
    %v1272 = vpop.permute.xlu0 %1271
    %1273 = vrot.lane.b32.xlu0 %v1240, 111
    %v1274 = vpop.permute.xlu0 %1273
    %1275 = vrot.lane.b32.xlu0 %v1244, 111
    %v1276 = vpop.permute.xlu0 %1275
    %v1277 = vsel %vm396, %v1262, %v1270
    %v1278 = vsel %vm396, %v1264, %v1272
    %v1279 = vsel %vm396, %v1266, %v1274
    %v1280 = vsel %vm396, %v1268, %v1276
    %v1281 = vsel %vm396, %v1254, %v1262
    %v1282 = vsel %vm396, %v1256, %v1264
    %v1283 = vsel %vm396, %v1258, %v1266
    %v1284 = vsel %vm396, %v1260, %v1268
    %v1285 = vsel %vm396, %v1246, %v1254
    %v1286 = vsel %vm396, %v1248, %v1256
    %v1287 = vsel %vm396, %v1250, %v1258
    %v1288 = vsel %vm396, %v1252, %v1260
    %v1289 = vsel %vm396, %v1270, %v1246
    %v1290 = vsel %vm396, %v1272, %v1248
    %v1291 = vsel %vm396, %v1274, %v1250
    %v1292 = vsel %vm396, %v1276, %v1252
    %v1293 = vld [vmem:[#allocation10] ss:$2 sm:$0xf]
    %v1294 = vld [vmem:[%s118] ss:$2 sm:$0xf]
    %vm1295 = vcmp.lt.s32.totalorder %v1293, 15
    %vm1296 = vcmp.lt.s32.totalorder %v1294, 15
    %vm1297 = vmand %vm1295, %vm1296
    %v1298 = vsel %vm1297, 1, 0
    %v1299 = vcvt.s32.f32 %v1298
    %v1301 = vperm.slane %v1299, 0
    %v1302 = vperm.slane %v1299, 1
    %v1303 = vperm.slane %v1299, 2
    %v1304 = vperm.slane %v1299, 3
    %v1309 = vmul.f32 %v1285, %v1301
    %v1310 = vmul.f32 %v1281, %v1302
    %v1311 = vmul.f32 %v1277, %v1303
    %v1312 = vmul.f32 %v1289, %v1304
    %v1313 = vmul.f32 %v1286, %v1301
    %v1314 = vmul.f32 %v1282, %v1302
    %v1315 = vmul.f32 %v1278, %v1303
    %v1316 = vmul.f32 %v1290, %v1304
    %v1317 = vmul.f32 %v1287, %v1301
    %v1318 = vmul.f32 %v1283, %v1302
    %v1319 = vmul.f32 %v1279, %v1303
    %v1320 = vmul.f32 %v1291, %v1304
    %v1321 = vmul.f32 %v1288, %v1301
    %v1322 = vmul.f32 %v1284, %v1302
    %v1323 = vmul.f32 %v1280, %v1303
    %v1324 = vmul.f32 %v1292, %v1304
    %1325 = vst [vmem:[#allocation2 + $0x520] sm:$0xff] %v1309
    %1326 = vst [vmem:[#allocation2 + $0x528] sm:$0xff] %v1310
    %1327 = vst [vmem:[#allocation2 + $0x530] sm:$0xff] %v1311
    %1328 = vst [vmem:[#allocation2 + $0x538] sm:$0xff] %v1312
    %1329 = vst [vmem:[#allocation2 + $0x540] sm:$0xff] %v1313
    %1330 = vst [vmem:[#allocation2 + $0x548] sm:$0xff] %v1314
    %1331 = vst [vmem:[#allocation2 + $0x550] sm:$0xff] %v1315
    %1332 = vst [vmem:[#allocation2 + $0x558] sm:$0xff] %v1316
    %1333 = vst [vmem:[#allocation2 + $0x560] sm:$0xff] %v1317
    %1334 = vst [vmem:[#allocation2 + $0x568] sm:$0xff] %v1318
    %1335 = vst [vmem:[#allocation2 + $0x570] sm:$0xff] %v1319
    %1336 = vst [vmem:[#allocation2 + $0x578] sm:$0xff] %v1320
    %1337 = vst [vmem:[#allocation2 + $0x580] sm:$0xff] %v1321
    %1338 = vst [vmem:[#allocation2 + $0x588] sm:$0xff] %v1322
    %1339 = vst [vmem:[#allocation2 + $0x590] sm:$0xff] %v1323
    %1340 = vst [vmem:[#allocation2 + $0x598] sm:$0xff] %v1324
    %v1341 = vld [vmem:[#allocation9] sm:$0xff]
    %v1342 = vld [vmem:[#allocation9 + $0x8] sm:$0xff]
    %v1343 = vld [vmem:[#allocation9 + $0x10] sm:$0xff]
    %v1344 = vld [vmem:[#allocation9 + $0x18] sm:$0xff]
    %v1345 = vld [vmem:[#allocation9 + $0x20] sm:$0xff]
    %v1346 = vld [vmem:[#allocation9 + $0x28] sm:$0xff]
    %v1347 = vld [vmem:[#allocation9 + $0x30] sm:$0xff]
    %v1348 = vld [vmem:[#allocation9 + $0x38] sm:$0xff]
    %v1349 = vld [vmem:[#allocation9 + $0x40] sm:$0xff]
    %v1350 = vld [vmem:[#allocation9 + $0x48] sm:$0xff]
    %v1351 = vld [vmem:[#allocation9 + $0x50] sm:$0xff]
    %v1352 = vld [vmem:[#allocation9 + $0x58] sm:$0xff]
    %v1353 = vld [vmem:[#allocation9 + $0x60] sm:$0xff]
    %v1354 = vld [vmem:[#allocation9 + $0x68] sm:$0xff]
    %v1355 = vld [vmem:[#allocation9 + $0x70] sm:$0xff]
    %v1356 = vld [vmem:[#allocation9 + $0x78] sm:$0xff]
    %v1357 = vld [vmem:[#allocation9 + $0x80] sm:$0xff]
    %v1358 = vld [vmem:[#allocation9 + $0x88] sm:$0xff]
    %v1359 = vld [vmem:[#allocation9 + $0x90] sm:$0xff]
    %v1360 = vld [vmem:[#allocation9 + $0x98] sm:$0xff]
    %v1361 = vld [vmem:[#allocation9 + $0xa0] sm:$0xff]
    %v1362 = vld [vmem:[#allocation9 + $0xa8] sm:$0xff]
    %v1363 = vld [vmem:[#allocation9 + $0xb0] sm:$0xff]
    %v1364 = vld [vmem:[#allocation9 + $0xb8] sm:$0xff]
    %v1365 = vld [vmem:[#allocation2] sm:$0xff]
    %v1366 = vld [vmem:[#allocation2 + $0x8] sm:$0xff]
    %v1367 = vld [vmem:[#allocation2 + $0x10] sm:$0xff]
    %v1368 = vld [vmem:[#allocation2 + $0x18] sm:$0xff]
    %v1369 = vld [vmem:[#allocation2 + $0x20] sm:$0xff]
    %v1370 = vld [vmem:[#allocation2 + $0x28] sm:$0xff]
    %v1371 = vld [vmem:[#allocation2 + $0x30] sm:$0xff]
    %v1372 = vld [vmem:[#allocation2 + $0x38] sm:$0xff]
    %v1373 = vld [vmem:[#allocation2 + $0x40] sm:$0xff]
    %v1374 = vld [vmem:[#allocation2 + $0x48] sm:$0xff]
    %v1375 = vld [vmem:[#allocation2 + $0x50] sm:$0xff]
    %v1376 = vld [vmem:[#allocation2 + $0x58] sm:$0xff]
    %v1377 = vld [vmem:[#allocation2 + $0x60] sm:$0xff]
    %v1378 = vld [vmem:[#allocation2 + $0x68] sm:$0xff]
    %v1379 = vld [vmem:[#allocation2 + $0x70] sm:$0xff]
    %v1380 = vld [vmem:[#allocation2 + $0x78] sm:$0xff]
    %v1381 = vld [vmem:[#allocation2 + $0x80] sm:$0xff]
    %v1382 = vld [vmem:[#allocation2 + $0x88] sm:$0xff]
    %v1383 = vld [vmem:[#allocation2 + $0x90] sm:$0xff]
    %v1384 = vld [vmem:[#allocation2 + $0x98] sm:$0xff]
    %v1385 = vld [vmem:[#allocation2 + $0xa0] sm:$0xff]
    %v1386 = vld [vmem:[#allocation2 + $0xa8] sm:$0xff]
    %v1387 = vld [vmem:[#allocation2 + $0xb0] sm:$0xff]
    %v1388 = vld [vmem:[#allocation2 + $0xb8] sm:$0xff]
    %v1389 = vld [vmem:[#allocation2 + $0xc0] sm:$0xff]
    %v1390 = vld [vmem:[#allocation2 + $0xc8] sm:$0xff]
    %v1391 = vld [vmem:[#allocation2 + $0xd0] sm:$0xff]
    %v1392 = vld [vmem:[#allocation2 + $0xd8] sm:$0xff]
    %v1393 = vld [vmem:[#allocation2 + $0xe0] sm:$0xff]
    %v1394 = vld [vmem:[#allocation2 + $0xe8] sm:$0xff]
    %v1395 = vld [vmem:[#allocation2 + $0xf0] sm:$0xff]
    %v1396 = vld [vmem:[#allocation2 + $0xf8] sm:$0xff]
    %v1397 = vld [vmem:[#allocation2 + $0x100] sm:$0xff]
    %v1398 = vld [vmem:[#allocation2 + $0x108] sm:$0xff]
    %v1399 = vld [vmem:[#allocation2 + $0x110] sm:$0xff]
    %v1400 = vld [vmem:[#allocation2 + $0x118] sm:$0xff]
    %v1401 = vld [vmem:[#allocation2 + $0x120] sm:$0xff]
    %v1402 = vld [vmem:[#allocation2 + $0x128] sm:$0xff]
    %v1403 = vld [vmem:[#allocation2 + $0x130] sm:$0xff]
    %v1404 = vld [vmem:[#allocation2 + $0x138] sm:$0xff]
    %v1405 = vld [vmem:[#allocation2 + $0x140] sm:$0xff]
    %v1406 = vld [vmem:[#allocation2 + $0x148] sm:$0xff]
    %v1407 = vld [vmem:[#allocation2 + $0x150] sm:$0xff]
    %v1408 = vld [vmem:[#allocation2 + $0x158] sm:$0xff]
    %v1409 = vld [vmem:[#allocation2 + $0x160] sm:$0xff]
    %v1410 = vld [vmem:[#allocation2 + $0x168] sm:$0xff]
    %v1411 = vld [vmem:[#allocation2 + $0x170] sm:$0xff]
    %v1412 = vld [vmem:[#allocation2 + $0x178] sm:$0xff]
    %v1413 = vld [vmem:[#allocation2 + $0x180] sm:$0xff]
    %v1414 = vld [vmem:[#allocation2 + $0x188] sm:$0xff]
    %v1415 = vld [vmem:[#allocation2 + $0x190] sm:$0xff]
    %v1416 = vld [vmem:[#allocation2 + $0x198] sm:$0xff]
    %v1417 = vld [vmem:[#allocation2 + $0x1a0] sm:$0xff]
    %v1418 = vld [vmem:[#allocation2 + $0x1a8] sm:$0xff]
    %v1419 = vld [vmem:[#allocation2 + $0x1b0] sm:$0xff]
    %v1420 = vld [vmem:[#allocation2 + $0x1b8] sm:$0xff]
    %v1421 = vld [vmem:[#allocation2 + $0x1c0] sm:$0xff]
    %v1422 = vld [vmem:[#allocation2 + $0x1c8] sm:$0xff]
    %v1423 = vld [vmem:[#allocation2 + $0x1d0] sm:$0xff]
    %v1424 = vld [vmem:[#allocation2 + $0x1d8] sm:$0xff]
    %v1425 = vld [vmem:[#allocation2 + $0x1e0] sm:$0xff]
    %v1426 = vld [vmem:[#allocation2 + $0x1e8] sm:$0xff]
    %v1427 = vld [vmem:[#allocation2 + $0x1f0] sm:$0xff]
    %v1428 = vld [vmem:[#allocation2 + $0x1f8] sm:$0xff]
    %v1429 = vld [vmem:[#allocation2 + $0x200] sm:$0xff]
    %v1430 = vld [vmem:[#allocation2 + $0x208] sm:$0xff]
    %v1431 = vld [vmem:[#allocation2 + $0x210] sm:$0xff]
    %v1432 = vld [vmem:[#allocation2 + $0x218] sm:$0xff]
    %v1433 = vld [vmem:[#allocation2 + $0x220] sm:$0xff]
    %v1434 = vld [vmem:[#allocation2 + $0x228] sm:$0xff]
    %v1435 = vld [vmem:[#allocation2 + $0x230] sm:$0xff]
    %v1436 = vld [vmem:[#allocation2 + $0x238] sm:$0xff]
    %v1437 = vld [vmem:[#allocation2 + $0x240] sm:$0xff]
    %v1438 = vld [vmem:[#allocation2 + $0x248] sm:$0xff]
    %v1439 = vld [vmem:[#allocation2 + $0x250] sm:$0xff]
    %v1440 = vld [vmem:[#allocation2 + $0x258] sm:$0xff]
    %v1441 = vld [vmem:[#allocation2 + $0x260] sm:$0xff]
    %v1442 = vld [vmem:[#allocation2 + $0x268] sm:$0xff]
    %v1443 = vld [vmem:[#allocation2 + $0x270] sm:$0xff]
    %v1444 = vld [vmem:[#allocation2 + $0x278] sm:$0xff]
    %v1445 = vld [vmem:[#allocation2 + $0x280] sm:$0xff]
    %v1446 = vld [vmem:[#allocation2 + $0x288] sm:$0xff]
    %v1447 = vld [vmem:[#allocation2 + $0x290] sm:$0xff]
    %v1448 = vld [vmem:[#allocation2 + $0x298] sm:$0xff]
    %v1449 = vld [vmem:[#allocation2 + $0x2a0] sm:$0xff]
    %v1450 = vld [vmem:[#allocation2 + $0x2a8] sm:$0xff]
    %v1451 = vld [vmem:[#allocation2 + $0x2b0] sm:$0xff]
    %v1452 = vld [vmem:[#allocation2 + $0x2b8] sm:$0xff]
    %v1453 = vld [vmem:[#allocation2 + $0x2c0] sm:$0xff]
    %v1454 = vld [vmem:[#allocation2 + $0x2c8] sm:$0xff]
    %v1455 = vld [vmem:[#allocation2 + $0x2d0] sm:$0xff]
    %v1456 = vld [vmem:[#allocation2 + $0x2d8] sm:$0xff]
    %v1457 = vld [vmem:[#allocation2 + $0x2e0] sm:$0xff]
    %v1458 = vld [vmem:[#allocation2 + $0x2e8] sm:$0xff]
    %v1459 = vld [vmem:[#allocation2 + $0x2f0] sm:$0xff]
    %v1460 = vld [vmem:[#allocation2 + $0x2f8] sm:$0xff]
    %v1461 = vld [vmem:[#allocation2 + $0x300] sm:$0xff]
    %v1462 = vld [vmem:[#allocation2 + $0x308] sm:$0xff]
    %v1463 = vld [vmem:[#allocation2 + $0x310] sm:$0xff]
    %v1464 = vld [vmem:[#allocation2 + $0x318] sm:$0xff]
    %v1465 = vld [vmem:[#allocation2 + $0x320] sm:$0xff]
    %v1466 = vld [vmem:[#allocation2 + $0x328] sm:$0xff]
    %v1467 = vld [vmem:[#allocation2 + $0x330] sm:$0xff]
    %v1468 = vld [vmem:[#allocation2 + $0x338] sm:$0xff]
    %v1469 = vld [vmem:[#allocation2 + $0x340] sm:$0xff]
    %v1470 = vld [vmem:[#allocation2 + $0x348] sm:$0xff]
    %v1471 = vld [vmem:[#allocation2 + $0x350] sm:$0xff]
    %v1472 = vld [vmem:[#allocation2 + $0x358] sm:$0xff]
    %v1473 = vld [vmem:[#allocation2 + $0x360] sm:$0xff]
    %v1474 = vld [vmem:[#allocation2 + $0x368] sm:$0xff]
    %v1475 = vld [vmem:[#allocation2 + $0x370] sm:$0xff]
    %v1476 = vld [vmem:[#allocation2 + $0x378] sm:$0xff]
    %v1477 = vld [vmem:[#allocation2 + $0x380] sm:$0xff]
    %v1478 = vld [vmem:[#allocation2 + $0x388] sm:$0xff]
    %v1479 = vld [vmem:[#allocation2 + $0x390] sm:$0xff]
    %v1480 = vld [vmem:[#allocation2 + $0x398] sm:$0xff]
    %v1481 = vld [vmem:[#allocation2 + $0x3a0] sm:$0xff]
    %v1482 = vld [vmem:[#allocation2 + $0x3a8] sm:$0xff]
    %v1483 = vld [vmem:[#allocation2 + $0x3b0] sm:$0xff]
    %v1484 = vld [vmem:[#allocation2 + $0x3b8] sm:$0xff]
    %v1485 = vld [vmem:[#allocation2 + $0x3c0] sm:$0xff]
    %v1486 = vld [vmem:[#allocation2 + $0x3c8] sm:$0xff]
    %v1487 = vld [vmem:[#allocation2 + $0x3d0] sm:$0xff]
    %v1488 = vld [vmem:[#allocation2 + $0x3d8] sm:$0xff]
    %v1489 = vld [vmem:[#allocation2 + $0x3e0] sm:$0xff]
    %v1490 = vld [vmem:[#allocation2 + $0x3e8] sm:$0xff]
    %v1491 = vld [vmem:[#allocation2 + $0x3f0] sm:$0xff]
    %v1492 = vld [vmem:[#allocation2 + $0x3f8] sm:$0xff]
    %v1493 = vld [vmem:[#allocation2 + $0x400] sm:$0xff]
    %v1494 = vld [vmem:[#allocation2 + $0x408] sm:$0xff]
    %v1495 = vld [vmem:[#allocation2 + $0x410] sm:$0xff]
    %v1496 = vld [vmem:[#allocation2 + $0x418] sm:$0xff]
    %v1497 = vld [vmem:[#allocation2 + $0x420] sm:$0xff]
    %v1498 = vld [vmem:[#allocation2 + $0x428] sm:$0xff]
    %v1499 = vld [vmem:[#allocation2 + $0x430] sm:$0xff]
    %v1500 = vld [vmem:[#allocation2 + $0x438] sm:$0xff]
    %v1501 = vld [vmem:[#allocation2 + $0x440] sm:$0xff]
    %v1502 = vld [vmem:[#allocation2 + $0x448] sm:$0xff]
    %v1503 = vld [vmem:[#allocation2 + $0x450] sm:$0xff]
    %v1504 = vld [vmem:[#allocation2 + $0x458] sm:$0xff]
    %v1505 = vld [vmem:[#allocation2 + $0x460] sm:$0xff]
    %v1506 = vld [vmem:[#allocation2 + $0x468] sm:$0xff]
    %v1507 = vld [vmem:[#allocation2 + $0x470] sm:$0xff]
    %v1508 = vld [vmem:[#allocation2 + $0x478] sm:$0xff]
    %v1509 = vld [vmem:[#allocation2 + $0x480] sm:$0xff]
    %v1510 = vld [vmem:[#allocation2 + $0x488] sm:$0xff]
    %v1511 = vld [vmem:[#allocation2 + $0x490] sm:$0xff]
    %v1512 = vld [vmem:[#allocation2 + $0x498] sm:$0xff]
    %v1513 = vld [vmem:[#allocation2 + $0x4a0] sm:$0xff]
    %v1514 = vld [vmem:[#allocation2 + $0x4a8] sm:$0xff]
    %v1515 = vld [vmem:[#allocation2 + $0x4b0] sm:$0xff]
    %v1516 = vld [vmem:[#allocation2 + $0x4b8] sm:$0xff]
    %v1517 = vld [vmem:[#allocation2 + $0x4c0] sm:$0xff]
    %v1518 = vld [vmem:[#allocation2 + $0x4c8] sm:$0xff]
    %v1519 = vld [vmem:[#allocation2 + $0x4d0] sm:$0xff]
    %v1520 = vld [vmem:[#allocation2 + $0x4d8] sm:$0xff]
    %v1521 = vld [vmem:[#allocation2 + $0x4e0] sm:$0xff]
    %v1522 = vld [vmem:[#allocation2 + $0x4e8] sm:$0xff]
    %v1523 = vld [vmem:[#allocation2 + $0x4f0] sm:$0xff]
    %v1524 = vld [vmem:[#allocation2 + $0x4f8] sm:$0xff]
    %v1525 = vld [vmem:[#allocation2 + $0x500] sm:$0xff]
    %v1526 = vld [vmem:[#allocation2 + $0x508] sm:$0xff]
    %v1527 = vld [vmem:[#allocation2 + $0x510] sm:$0xff]
    %v1528 = vld [vmem:[#allocation2 + $0x518] sm:$0xff]
    %v1529 = vld [vmem:[#allocation2 + $0x520] sm:$0xff]
    %v1530 = vld [vmem:[#allocation2 + $0x528] sm:$0xff]
    %v1531 = vld [vmem:[#allocation2 + $0x530] sm:$0xff]
    %v1532 = vld [vmem:[#allocation2 + $0x538] sm:$0xff]
    %v1533 = vld [vmem:[#allocation2 + $0x540] sm:$0xff]
    %v1534 = vld [vmem:[#allocation2 + $0x548] sm:$0xff]
    %v1535 = vld [vmem:[#allocation2 + $0x550] sm:$0xff]
    %v1536 = vld [vmem:[#allocation2 + $0x558] sm:$0xff]
    %v1537 = vld [vmem:[#allocation2 + $0x560] sm:$0xff]
    %v1538 = vld [vmem:[#allocation2 + $0x568] sm:$0xff]
    %v1539 = vld [vmem:[#allocation2 + $0x570] sm:$0xff]
    %v1540 = vld [vmem:[#allocation2 + $0x578] sm:$0xff]
    %v1541 = vld [vmem:[#allocation2 + $0x580] sm:$0xff]
    %v1542 = vld [vmem:[#allocation2 + $0x588] sm:$0xff]
    %v1543 = vld [vmem:[#allocation2 + $0x590] sm:$0xff]
    %v1544 = vld [vmem:[#allocation2 + $0x598] sm:$0xff]
    %v1545 = vld [vmem:[#allocation2 + $0x5a0] sm:$0xff]
    %v1546 = vld [vmem:[#allocation2 + $0x5a8] sm:$0xff]
    %v1547 = vld [vmem:[#allocation2 + $0x5b0] sm:$0xff]
    %v1548 = vld [vmem:[#allocation2 + $0x5b8] sm:$0xff]
    %v1549 = vld [vmem:[#allocation2 + $0x5c0] sm:$0xff]
    %v1550 = vld [vmem:[#allocation2 + $0x5c8] sm:$0xff]
    %v1551 = vld [vmem:[#allocation2 + $0x5d0] sm:$0xff]
    %v1552 = vld [vmem:[#allocation2 + $0x5d8] sm:$0xff]
    %v1553 = vld [vmem:[#allocation2 + $0x5e0] sm:$0xff]
    %v1554 = vld [vmem:[#allocation2 + $0x5e8] sm:$0xff]
    %v1555 = vld [vmem:[#allocation2 + $0x5f0] sm:$0xff]
    %v1556 = vld [vmem:[#allocation2 + $0x5f8] sm:$0xff]
    %v1557 = vld [vmem:[%s4] sm:$0xff]
    %v1558 = vld [vmem:[%s4 + $0x8] sm:$0xff]
    %v1559 = vld [vmem:[%s4 + $0x10] sm:$0xff]
    %v1560 = vld [vmem:[%s4 + $0x18] sm:$0xff]
    %v1561 = vld [vmem:[%s4 + $0x20] sm:$0xff]
    %v1562 = vld [vmem:[%s4 + $0x28] sm:$0xff]
    %v1563 = vld [vmem:[%s4 + $0x30] sm:$0xff]
    %v1564 = vld [vmem:[%s4 + $0x38] sm:$0xff]
    %1566 = vset.pattern.permute.xlu0 0
    %1567 = vperm.xlu0 %1566, %v1557
    %v1568 = vpop.permute.xlu0 %1567
    %1571 = vset.pattern.permute.xlu0 0
    %1572 = vperm.xlu0 %1571, %v1558
    %v1573 = vpop.permute.xlu0 %1572
    %1576 = vset.pattern.permute.xlu0 0
    %1577 = vperm.xlu0 %1576, %v1559
    %v1578 = vpop.permute.xlu0 %1577
    %1581 = vset.pattern.permute.xlu0 0
    %1582 = vperm.xlu0 %1581, %v1560
    %v1583 = vpop.permute.xlu0 %1582
    %1586 = vset.pattern.permute.xlu0 0
    %1587 = vperm.xlu0 %1586, %v1561
    %v1588 = vpop.permute.xlu0 %1587
    %1591 = vset.pattern.permute.xlu0 0
    %1592 = vperm.xlu0 %1591, %v1562
    %v1593 = vpop.permute.xlu0 %1592
    %1596 = vset.pattern.permute.xlu0 0
    %1597 = vperm.xlu0 %1596, %v1563
    %v1598 = vpop.permute.xlu0 %1597
    %1601 = vset.pattern.permute.xlu0 0
    %1602 = vperm.xlu0 %1601, %v1564
    %v1603 = vpop.permute.xlu0 %1602
    %1605 = vmatpush.msra.mxu0 %v1425
    %1606 = vmatpush.msra.mxu0 %v1421
    %1607 = vmatpush.msra.mxu0 %v1417
    %1608 = vmatpush.msra.mxu0 %v1413
    %1609 = vmatpush.msra.mxu0 %v1409
    %1610 = vmatpush.msra.mxu0 %v1405
    %1611 = vmatpush.msra.mxu0 %v1401
    %1612 = vmatpush.msra.mxu0 %v1397
    %1613 = vmatpush.msra.mxu0 %v1393
    %1614 = vmatpush.msra.mxu0 %v1389
    %1615 = vmatpush.msra.mxu0 %v1385
    %1616 = vmatpush.msra.mxu0 %v1381
    %1617 = vmatpush.msra.mxu0 %v1377
    %1618 = vmatpush.msra.mxu0 %v1373
    %1619 = vmatpush.msra.mxu0 %v1369
    %1620 = vmatpush.msra.mxu0 %v1365
    %1621 = vmatmul.f32.gmra.mxu0 %v1341
    %v1622 = vpop.f32.mrf.mxu0
    %v1623 = vadd.f32 %v1568, %v1622
    %1624 = vmatmul.f32.gmra.mxu0 %v1344
    %v1625 = vpop.f32.mrf.mxu0
    %v1626 = vadd.f32 %v1573, %v1625
    %1627 = vmatmul.f32.gmra.mxu0 %v1347
    %v1628 = vpop.f32.mrf.mxu0
    %v1629 = vadd.f32 %v1578, %v1628
    %1630 = vmatmul.f32.gmra.mxu0 %v1350
    %v1631 = vpop.f32.mrf.mxu0
    %v1632 = vadd.f32 %v1583, %v1631
    %1633 = vmatmul.f32.gmra.mxu0 %v1353
    %v1634 = vpop.f32.mrf.mxu0
    %v1635 = vadd.f32 %v1588, %v1634
    %1636 = vmatmul.f32.gmra.mxu0 %v1356
    %v1637 = vpop.f32.mrf.mxu0
    %v1638 = vadd.f32 %v1593, %v1637
    %1639 = vmatmul.f32.gmra.mxu0 %v1359
    %v1640 = vpop.f32.mrf.mxu0
    %v1641 = vadd.f32 %v1598, %v1640
    %1642 = vmatmul.f32.gmra.mxu0 %v1362
    %v1643 = vpop.f32.mrf.mxu0
    %v1644 = vadd.f32 %v1603, %v1643
    %1645 = vdwg.mxu0
    %1646 = vmatpush.msra.mxu0 %v1489
    %1647 = vmatpush.msra.mxu0 %v1485
    %1648 = vmatpush.msra.mxu0 %v1481
    %1649 = vmatpush.msra.mxu0 %v1477
    %1650 = vmatpush.msra.mxu0 %v1473
    %1651 = vmatpush.msra.mxu0 %v1469
    %1652 = vmatpush.msra.mxu0 %v1465
    %1653 = vmatpush.msra.mxu0 %v1461
    %1654 = vmatpush.msra.mxu0 %v1457
    %1655 = vmatpush.msra.mxu0 %v1453
    %1656 = vmatpush.msra.mxu0 %v1449
    %1657 = vmatpush.msra.mxu0 %v1445
    %1658 = vmatpush.msra.mxu0 %v1441
    %1659 = vmatpush.msra.mxu0 %v1437
    %1660 = vmatpush.msra.mxu0 %v1433
    %1661 = vmatpush.msra.mxu0 %v1429
    %1662 = vmatmul.f32.gmra.mxu0 %v1342
    %v1663 = vpop.f32.mrf.mxu0
    %v1664 = vadd.f32 %v1623, %v1663
    %1665 = vmatmul.f32.gmra.mxu0 %v1345
    %v1666 = vpop.f32.mrf.mxu0
    %v1667 = vadd.f32 %v1626, %v1666
    %1668 = vmatmul.f32.gmra.mxu0 %v1348
    %v1669 = vpop.f32.mrf.mxu0
    %v1670 = vadd.f32 %v1629, %v1669
    %1671 = vmatmul.f32.gmra.mxu0 %v1351
    %v1672 = vpop.f32.mrf.mxu0
    %v1673 = vadd.f32 %v1632, %v1672
    %1674 = vmatmul.f32.gmra.mxu0 %v1354
    %v1675 = vpop.f32.mrf.mxu0
    %v1676 = vadd.f32 %v1635, %v1675
    %1677 = vmatmul.f32.gmra.mxu0 %v1357
    %v1678 = vpop.f32.mrf.mxu0
    %v1679 = vadd.f32 %v1638, %v1678
    %1680 = vmatmul.f32.gmra.mxu0 %v1360
    %v1681 = vpop.f32.mrf.mxu0
    %v1682 = vadd.f32 %v1641, %v1681
    %1683 = vmatmul.f32.gmra.mxu0 %v1363
    %v1684 = vpop.f32.mrf.mxu0
    %v1685 = vadd.f32 %v1644, %v1684
    %1686 = vdwg.mxu0
    %1687 = vmatpush.msra.mxu0 %v1553
    %1688 = vmatpush.msra.mxu0 %v1549
    %1689 = vmatpush.msra.mxu0 %v1545
    %1690 = vmatpush.msra.mxu0 %v1541
    %1691 = vmatpush.msra.mxu0 %v1537
    %1692 = vmatpush.msra.mxu0 %v1533
    %1693 = vmatpush.msra.mxu0 %v1529
    %1694 = vmatpush.msra.mxu0 %v1525
    %1695 = vmatpush.msra.mxu0 %v1521
    %1696 = vmatpush.msra.mxu0 %v1517
    %1697 = vmatpush.msra.mxu0 %v1513
    %1698 = vmatpush.msra.mxu0 %v1509
    %1699 = vmatpush.msra.mxu0 %v1505
    %1700 = vmatpush.msra.mxu0 %v1501
    %1701 = vmatpush.msra.mxu0 %v1497
    %1702 = vmatpush.msra.mxu0 %v1493
    %1703 = vmatmul.f32.gmra.mxu0 %v1343
    %v1704 = vpop.f32.mrf.mxu0
    %v1705 = vadd.f32 %v1664, %v1704
    %1706 = vmatmul.f32.gmra.mxu0 %v1346
    %v1707 = vpop.f32.mrf.mxu0
    %v1708 = vadd.f32 %v1667, %v1707
    %1709 = vmatmul.f32.gmra.mxu0 %v1349
    %v1710 = vpop.f32.mrf.mxu0
    %v1711 = vadd.f32 %v1670, %v1710
    %1712 = vmatmul.f32.gmra.mxu0 %v1352
    %v1713 = vpop.f32.mrf.mxu0
    %v1714 = vadd.f32 %v1673, %v1713
    %1715 = vmatmul.f32.gmra.mxu0 %v1355
    %v1716 = vpop.f32.mrf.mxu0
    %v1717 = vadd.f32 %v1676, %v1716
    %1718 = vmatmul.f32.gmra.mxu0 %v1358
    %v1719 = vpop.f32.mrf.mxu0
    %v1720 = vadd.f32 %v1679, %v1719
    %1721 = vmatmul.f32.gmra.mxu0 %v1361
    %v1722 = vpop.f32.mrf.mxu0
    %v1723 = vadd.f32 %v1682, %v1722
    %1724 = vmatmul.f32.gmra.mxu0 %v1364
    %v1725 = vpop.f32.mrf.mxu0
    %v1726 = vadd.f32 %v1685, %v1725
    %1727 = vdwg.mxu0
    %1728 = vmatpush.msra.mxu0 %v1426
    %1729 = vmatpush.msra.mxu0 %v1422
    %1730 = vmatpush.msra.mxu0 %v1418
    %1731 = vmatpush.msra.mxu0 %v1414
    %1732 = vmatpush.msra.mxu0 %v1410
    %1733 = vmatpush.msra.mxu0 %v1406
    %1734 = vmatpush.msra.mxu0 %v1402
    %1735 = vmatpush.msra.mxu0 %v1398
    %1736 = vmatpush.msra.mxu0 %v1394
    %1737 = vmatpush.msra.mxu0 %v1390
    %1738 = vmatpush.msra.mxu0 %v1386
    %1739 = vmatpush.msra.mxu0 %v1382
    %1740 = vmatpush.msra.mxu0 %v1378
    %1741 = vmatpush.msra.mxu0 %v1374
    %1742 = vmatpush.msra.mxu0 %v1370
    %1743 = vmatpush.msra.mxu0 %v1366
    %1744 = vmatmul.f32.gmra.mxu0 %v1341
    %v1745 = vpop.f32.mrf.mxu0
    %v1746 = vadd.f32 %v1568, %v1745
    %1747 = vmatmul.f32.gmra.mxu0 %v1344
    %v1748 = vpop.f32.mrf.mxu0
    %v1749 = vadd.f32 %v1573, %v1748
    %1750 = vmatmul.f32.gmra.mxu0 %v1347
    %v1751 = vpop.f32.mrf.mxu0
    %v1752 = vadd.f32 %v1578, %v1751
    %1753 = vmatmul.f32.gmra.mxu0 %v1350
    %v1754 = vpop.f32.mrf.mxu0
    %v1755 = vadd.f32 %v1583, %v1754
    %1756 = vmatmul.f32.gmra.mxu0 %v1353
    %v1757 = vpop.f32.mrf.mxu0
    %v1758 = vadd.f32 %v1588, %v1757
    %1759 = vmatmul.f32.gmra.mxu0 %v1356
    %v1760 = vpop.f32.mrf.mxu0
    %v1761 = vadd.f32 %v1593, %v1760
    %1762 = vmatmul.f32.gmra.mxu0 %v1359
    %v1763 = vpop.f32.mrf.mxu0
    %v1764 = vadd.f32 %v1598, %v1763
    %1765 = vmatmul.f32.gmra.mxu0 %v1362
    %v1766 = vpop.f32.mrf.mxu0
    %v1767 = vadd.f32 %v1603, %v1766
    %1768 = vdwg.mxu0
    %1769 = vmatpush.msra.mxu0 %v1490
    %1770 = vmatpush.msra.mxu0 %v1486
    %1771 = vmatpush.msra.mxu0 %v1482
    %1772 = vmatpush.msra.mxu0 %v1478
    %1773 = vmatpush.msra.mxu0 %v1474
    %1774 = vmatpush.msra.mxu0 %v1470
    %1775 = vmatpush.msra.mxu0 %v1466
    %1776 = vmatpush.msra.mxu0 %v1462
    %1777 = vmatpush.msra.mxu0 %v1458
    %1778 = vmatpush.msra.mxu0 %v1454
    %1779 = vmatpush.msra.mxu0 %v1450
    %1780 = vmatpush.msra.mxu0 %v1446
    %1781 = vmatpush.msra.mxu0 %v1442
    %1782 = vmatpush.msra.mxu0 %v1438
    %1783 = vmatpush.msra.mxu0 %v1434
    %1784 = vmatpush.msra.mxu0 %v1430
    %1785 = vmatmul.f32.gmra.mxu0 %v1342
    %v1786 = vpop.f32.mrf.mxu0
    %v1787 = vadd.f32 %v1746, %v1786
    %1788 = vmatmul.f32.gmra.mxu0 %v1345
    %v1789 = vpop.f32.mrf.mxu0
    %v1790 = vadd.f32 %v1749, %v1789
    %1791 = vmatmul.f32.gmra.mxu0 %v1348
    %v1792 = vpop.f32.mrf.mxu0
    %v1793 = vadd.f32 %v1752, %v1792
    %1794 = vmatmul.f32.gmra.mxu0 %v1351
    %v1795 = vpop.f32.mrf.mxu0
    %v1796 = vadd.f32 %v1755, %v1795
    %1797 = vmatmul.f32.gmra.mxu0 %v1354
    %v1798 = vpop.f32.mrf.mxu0
    %v1799 = vadd.f32 %v1758, %v1798
    %1800 = vmatmul.f32.gmra.mxu0 %v1357
    %v1801 = vpop.f32.mrf.mxu0
    %v1802 = vadd.f32 %v1761, %v1801
    %1803 = vmatmul.f32.gmra.mxu0 %v1360
    %v1804 = vpop.f32.mrf.mxu0
    %v1805 = vadd.f32 %v1764, %v1804
    %1806 = vmatmul.f32.gmra.mxu0 %v1363
    %v1807 = vpop.f32.mrf.mxu0
    %v1808 = vadd.f32 %v1767, %v1807
    %1809 = vdwg.mxu0
    %1810 = vmatpush.msra.mxu0 %v1554
    %1811 = vmatpush.msra.mxu0 %v1550
    %1812 = vmatpush.msra.mxu0 %v1546
    %1813 = vmatpush.msra.mxu0 %v1542
    %1814 = vmatpush.msra.mxu0 %v1538
    %1815 = vmatpush.msra.mxu0 %v1534
    %1816 = vmatpush.msra.mxu0 %v1530
    %1817 = vmatpush.msra.mxu0 %v1526
    %1818 = vmatpush.msra.mxu0 %v1522
    %1819 = vmatpush.msra.mxu0 %v1518
    %1820 = vmatpush.msra.mxu0 %v1514
    %1821 = vmatpush.msra.mxu0 %v1510
    %1822 = vmatpush.msra.mxu0 %v1506
    %1823 = vmatpush.msra.mxu0 %v1502
    %1824 = vmatpush.msra.mxu0 %v1498
    %1825 = vmatpush.msra.mxu0 %v1494
    %1826 = vmatmul.f32.gmra.mxu0 %v1343
    %v1827 = vpop.f32.mrf.mxu0
    %v1828 = vadd.f32 %v1787, %v1827
    %1829 = vmatmul.f32.gmra.mxu0 %v1346
    %v1830 = vpop.f32.mrf.mxu0
    %v1831 = vadd.f32 %v1790, %v1830
    %1832 = vmatmul.f32.gmra.mxu0 %v1349
    %v1833 = vpop.f32.mrf.mxu0
    %v1834 = vadd.f32 %v1793, %v1833
    %1835 = vmatmul.f32.gmra.mxu0 %v1352
    %v1836 = vpop.f32.mrf.mxu0
    %v1837 = vadd.f32 %v1796, %v1836
    %1838 = vmatmul.f32.gmra.mxu0 %v1355
    %v1839 = vpop.f32.mrf.mxu0
    %v1840 = vadd.f32 %v1799, %v1839
    %1841 = vmatmul.f32.gmra.mxu0 %v1358
    %v1842 = vpop.f32.mrf.mxu0
    %v1843 = vadd.f32 %v1802, %v1842
    %1844 = vmatmul.f32.gmra.mxu0 %v1361
    %v1845 = vpop.f32.mrf.mxu0
    %v1846 = vadd.f32 %v1805, %v1845
    %1847 = vmatmul.f32.gmra.mxu0 %v1364
    %v1848 = vpop.f32.mrf.mxu0
    %v1849 = vadd.f32 %v1808, %v1848
    %1850 = vdwg.mxu0
    %1851 = vmatpush.msra.mxu0 %v1427
    %1852 = vmatpush.msra.mxu0 %v1423
    %1853 = vmatpush.msra.mxu0 %v1419
    %1854 = vmatpush.msra.mxu0 %v1415
    %1855 = vmatpush.msra.mxu0 %v1411
    %1856 = vmatpush.msra.mxu0 %v1407
    %1857 = vmatpush.msra.mxu0 %v1403
    %1858 = vmatpush.msra.mxu0 %v1399
    %1859 = vmatpush.msra.mxu0 %v1395
    %1860 = vmatpush.msra.mxu0 %v1391
    %1861 = vmatpush.msra.mxu0 %v1387
    %1862 = vmatpush.msra.mxu0 %v1383
    %1863 = vmatpush.msra.mxu0 %v1379
    %1864 = vmatpush.msra.mxu0 %v1375
    %1865 = vmatpush.msra.mxu0 %v1371
    %1866 = vmatpush.msra.mxu0 %v1367
    %1867 = vmatmul.f32.gmra.mxu0 %v1341
    %v1868 = vpop.f32.mrf.mxu0
    %v1869 = vadd.f32 %v1568, %v1868
    %1870 = vmatmul.f32.gmra.mxu0 %v1344
    %v1871 = vpop.f32.mrf.mxu0
    %v1872 = vadd.f32 %v1573, %v1871
    %1873 = vmatmul.f32.gmra.mxu0 %v1347
    %v1874 = vpop.f32.mrf.mxu0
    %v1875 = vadd.f32 %v1578, %v1874
    %1876 = vmatmul.f32.gmra.mxu0 %v1350
    %v1877 = vpop.f32.mrf.mxu0
    %v1878 = vadd.f32 %v1583, %v1877
    %1879 = vmatmul.f32.gmra.mxu0 %v1353
    %v1880 = vpop.f32.mrf.mxu0
    %v1881 = vadd.f32 %v1588, %v1880
    %1882 = vmatmul.f32.gmra.mxu0 %v1356
    %v1883 = vpop.f32.mrf.mxu0
    %v1884 = vadd.f32 %v1593, %v1883
    %1885 = vmatmul.f32.gmra.mxu0 %v1359
    %v1886 = vpop.f32.mrf.mxu0
    %v1887 = vadd.f32 %v1598, %v1886
    %1888 = vmatmul.f32.gmra.mxu0 %v1362
    %v1889 = vpop.f32.mrf.mxu0
    %v1890 = vadd.f32 %v1603, %v1889
    %1891 = vdwg.mxu0
    %1892 = vmatpush.msra.mxu0 %v1491
    %1893 = vmatpush.msra.mxu0 %v1487
    %1894 = vmatpush.msra.mxu0 %v1483
    %1895 = vmatpush.msra.mxu0 %v1479
    %1896 = vmatpush.msra.mxu0 %v1475
    %1897 = vmatpush.msra.mxu0 %v1471
    %1898 = vmatpush.msra.mxu0 %v1467
    %1899 = vmatpush.msra.mxu0 %v1463
    %1900 = vmatpush.msra.mxu0 %v1459
    %1901 = vmatpush.msra.mxu0 %v1455
    %1902 = vmatpush.msra.mxu0 %v1451
    %1903 = vmatpush.msra.mxu0 %v1447
    %1904 = vmatpush.msra.mxu0 %v1443
    %1905 = vmatpush.msra.mxu0 %v1439
    %1906 = vmatpush.msra.mxu0 %v1435
    %1907 = vmatpush.msra.mxu0 %v1431
    %1908 = vmatmul.f32.gmra.mxu0 %v1342
    %v1909 = vpop.f32.mrf.mxu0
    %v1910 = vadd.f32 %v1869, %v1909
    %1911 = vmatmul.f32.gmra.mxu0 %v1345
    %v1912 = vpop.f32.mrf.mxu0
    %v1913 = vadd.f32 %v1872, %v1912
    %1914 = vmatmul.f32.gmra.mxu0 %v1348
    %v1915 = vpop.f32.mrf.mxu0
    %v1916 = vadd.f32 %v1875, %v1915
    %1917 = vmatmul.f32.gmra.mxu0 %v1351
    %v1918 = vpop.f32.mrf.mxu0
    %v1919 = vadd.f32 %v1878, %v1918
    %1920 = vmatmul.f32.gmra.mxu0 %v1354
    %v1921 = vpop.f32.mrf.mxu0
    %v1922 = vadd.f32 %v1881, %v1921
    %1923 = vmatmul.f32.gmra.mxu0 %v1357
    %v1924 = vpop.f32.mrf.mxu0
    %v1925 = vadd.f32 %v1884, %v1924
    %1926 = vmatmul.f32.gmra.mxu0 %v1360
    %v1927 = vpop.f32.mrf.mxu0
    %v1928 = vadd.f32 %v1887, %v1927
    %1929 = vmatmul.f32.gmra.mxu0 %v1363
    %v1930 = vpop.f32.mrf.mxu0
    %v1931 = vadd.f32 %v1890, %v1930
    %1932 = vdwg.mxu0
    %1933 = vmatpush.msra.mxu0 %v1555
    %1934 = vmatpush.msra.mxu0 %v1551
    %1935 = vmatpush.msra.mxu0 %v1547
    %1936 = vmatpush.msra.mxu0 %v1543
    %1937 = vmatpush.msra.mxu0 %v1539
    %1938 = vmatpush.msra.mxu0 %v1535
    %1939 = vmatpush.msra.mxu0 %v1531
    %1940 = vmatpush.msra.mxu0 %v1527
    %1941 = vmatpush.msra.mxu0 %v1523
    %1942 = vmatpush.msra.mxu0 %v1519
    %1943 = vmatpush.msra.mxu0 %v1515
    %1944 = vmatpush.msra.mxu0 %v1511
    %1945 = vmatpush.msra.mxu0 %v1507
    %1946 = vmatpush.msra.mxu0 %v1503
    %1947 = vmatpush.msra.mxu0 %v1499
    %1948 = vmatpush.msra.mxu0 %v1495
    %1949 = vmatmul.f32.gmra.mxu0 %v1343
    %v1950 = vpop.f32.mrf.mxu0
    %v1951 = vadd.f32 %v1910, %v1950
    %1952 = vmatmul.f32.gmra.mxu0 %v1346
    %v1953 = vpop.f32.mrf.mxu0
    %v1954 = vadd.f32 %v1913, %v1953
    %1955 = vmatmul.f32.gmra.mxu0 %v1349
    %v1956 = vpop.f32.mrf.mxu0
    %v1957 = vadd.f32 %v1916, %v1956
    %1958 = vmatmul.f32.gmra.mxu0 %v1352
    %v1959 = vpop.f32.mrf.mxu0
    %v1960 = vadd.f32 %v1919, %v1959
    %1961 = vmatmul.f32.gmra.mxu0 %v1355
    %v1962 = vpop.f32.mrf.mxu0
    %v1963 = vadd.f32 %v1922, %v1962
    %1964 = vmatmul.f32.gmra.mxu0 %v1358
    %v1965 = vpop.f32.mrf.mxu0
    %v1966 = vadd.f32 %v1925, %v1965
    %1967 = vmatmul.f32.gmra.mxu0 %v1361
    %v1968 = vpop.f32.mrf.mxu0
    %v1969 = vadd.f32 %v1928, %v1968
    %1970 = vmatmul.f32.gmra.mxu0 %v1364
    %v1971 = vpop.f32.mrf.mxu0
    %v1972 = vadd.f32 %v1931, %v1971
    %1973 = vdwg.mxu0
    %1974 = vmatpush.msra.mxu0 %v1428
    %1975 = vmatpush.msra.mxu0 %v1424
    %1976 = vmatpush.msra.mxu0 %v1420
    %1977 = vmatpush.msra.mxu0 %v1416
    %1978 = vmatpush.msra.mxu0 %v1412
    %1979 = vmatpush.msra.mxu0 %v1408
    %1980 = vmatpush.msra.mxu0 %v1404
    %1981 = vmatpush.msra.mxu0 %v1400
    %1982 = vmatpush.msra.mxu0 %v1396
    %1983 = vmatpush.msra.mxu0 %v1392
    %1984 = vmatpush.msra.mxu0 %v1388
    %1985 = vmatpush.msra.mxu0 %v1384
    %1986 = vmatpush.msra.mxu0 %v1380
    %1987 = vmatpush.msra.mxu0 %v1376
    %1988 = vmatpush.msra.mxu0 %v1372
    %1989 = vmatpush.msra.mxu0 %v1368
    %1990 = vmatmul.f32.gmra.mxu0 %v1341
    %v1991 = vpop.f32.mrf.mxu0
    %v1992 = vadd.f32 %v1568, %v1991
    %1993 = vmatmul.f32.gmra.mxu0 %v1344
    %v1994 = vpop.f32.mrf.mxu0
    %v1995 = vadd.f32 %v1573, %v1994
    %1996 = vmatmul.f32.gmra.mxu0 %v1347
    %v1997 = vpop.f32.mrf.mxu0
    %v1998 = vadd.f32 %v1578, %v1997
    %1999 = vmatmul.f32.gmra.mxu0 %v1350
    %v2000 = vpop.f32.mrf.mxu0
    %v2001 = vadd.f32 %v1583, %v2000
    %2002 = vmatmul.f32.gmra.mxu0 %v1353
    %v2003 = vpop.f32.mrf.mxu0
    %v2004 = vadd.f32 %v1588, %v2003
    %2005 = vmatmul.f32.gmra.mxu0 %v1356
    %v2006 = vpop.f32.mrf.mxu0
    %v2007 = vadd.f32 %v1593, %v2006
    %2008 = vmatmul.f32.gmra.mxu0 %v1359
    %v2009 = vpop.f32.mrf.mxu0
    %v2010 = vadd.f32 %v1598, %v2009
    %2011 = vmatmul.f32.gmra.mxu0 %v1362
    %v2012 = vpop.f32.mrf.mxu0
    %v2013 = vadd.f32 %v1603, %v2012
    %2014 = vdwg.mxu0
    %2015 = vmatpush.msra.mxu0 %v1492
    %2016 = vmatpush.msra.mxu0 %v1488
    %2017 = vmatpush.msra.mxu0 %v1484
    %2018 = vmatpush.msra.mxu0 %v1480
    %2019 = vmatpush.msra.mxu0 %v1476
    %2020 = vmatpush.msra.mxu0 %v1472
    %2021 = vmatpush.msra.mxu0 %v1468
    %2022 = vmatpush.msra.mxu0 %v1464
    %2023 = vmatpush.msra.mxu0 %v1460
    %2024 = vmatpush.msra.mxu0 %v1456
    %2025 = vmatpush.msra.mxu0 %v1452
    %2026 = vmatpush.msra.mxu0 %v1448
    %2027 = vmatpush.msra.mxu0 %v1444
    %2028 = vmatpush.msra.mxu0 %v1440
    %2029 = vmatpush.msra.mxu0 %v1436
    %2030 = vmatpush.msra.mxu0 %v1432
    %2031 = vmatmul.f32.gmra.mxu0 %v1342
    %v2032 = vpop.f32.mrf.mxu0
    %v2033 = vadd.f32 %v1992, %v2032
    %2034 = vmatmul.f32.gmra.mxu0 %v1345
    %v2035 = vpop.f32.mrf.mxu0
    %v2036 = vadd.f32 %v1995, %v2035
    %2037 = vmatmul.f32.gmra.mxu0 %v1348
    %v2038 = vpop.f32.mrf.mxu0
    %v2039 = vadd.f32 %v1998, %v2038
    %2040 = vmatmul.f32.gmra.mxu0 %v1351
    %v2041 = vpop.f32.mrf.mxu0
    %v2042 = vadd.f32 %v2001, %v2041
    %2043 = vmatmul.f32.gmra.mxu0 %v1354
    %v2044 = vpop.f32.mrf.mxu0
    %v2045 = vadd.f32 %v2004, %v2044
    %2046 = vmatmul.f32.gmra.mxu0 %v1357
    %v2047 = vpop.f32.mrf.mxu0
    %v2048 = vadd.f32 %v2007, %v2047
    %2049 = vmatmul.f32.gmra.mxu0 %v1360
    %v2050 = vpop.f32.mrf.mxu0
    %v2051 = vadd.f32 %v2010, %v2050
    %2052 = vmatmul.f32.gmra.mxu0 %v1363
    %v2053 = vpop.f32.mrf.mxu0
    %v2054 = vadd.f32 %v2013, %v2053
    %2055 = vdwg.mxu0
    %2056 = vmatpush.msra.mxu0 %v1556
    %2057 = vmatpush.msra.mxu0 %v1552
    %2058 = vmatpush.msra.mxu0 %v1548
    %2059 = vmatpush.msra.mxu0 %v1544
    %2060 = vmatpush.msra.mxu0 %v1540
    %2061 = vmatpush.msra.mxu0 %v1536
    %2062 = vmatpush.msra.mxu0 %v1532
    %2063 = vmatpush.msra.mxu0 %v1528
    %2064 = vmatpush.msra.mxu0 %v1524
    %2065 = vmatpush.msra.mxu0 %v1520
    %2066 = vmatpush.msra.mxu0 %v1516
    %2067 = vmatpush.msra.mxu0 %v1512
    %2068 = vmatpush.msra.mxu0 %v1508
    %2069 = vmatpush.msra.mxu0 %v1504
    %2070 = vmatpush.msra.mxu0 %v1500
    %2071 = vmatpush.msra.mxu0 %v1496
    %2072 = vmatmul.f32.gmra.mxu0 %v1343
    %v2073 = vpop.f32.mrf.mxu0
    %v2074 = vadd.f32 %v2033, %v2073
    %2075 = vmatmul.f32.gmra.mxu0 %v1346
    %v2076 = vpop.f32.mrf.mxu0
    %v2077 = vadd.f32 %v2036, %v2076
    %2078 = vmatmul.f32.gmra.mxu0 %v1349
    %v2079 = vpop.f32.mrf.mxu0
    %v2080 = vadd.f32 %v2039, %v2079
    %2081 = vmatmul.f32.gmra.mxu0 %v1352
    %v2082 = vpop.f32.mrf.mxu0
    %v2083 = vadd.f32 %v2042, %v2082
    %2084 = vmatmul.f32.gmra.mxu0 %v1355
    %v2085 = vpop.f32.mrf.mxu0
    %v2086 = vadd.f32 %v2045, %v2085
    %2087 = vmatmul.f32.gmra.mxu0 %v1358
    %v2088 = vpop.f32.mrf.mxu0
    %v2089 = vadd.f32 %v2048, %v2088
    %2090 = vmatmul.f32.gmra.mxu0 %v1361
    %v2091 = vpop.f32.mrf.mxu0
    %v2092 = vadd.f32 %v2051, %v2091
    %2093 = vmatmul.f32.gmra.mxu0 %v1364
    %v2094 = vpop.f32.mrf.mxu0
    %v2095 = vadd.f32 %v2054, %v2094
    %2096 = vdwg.mxu0
    %v2097 = vxor.u32 %v1705, 2147483648
    %v2098 = vxor.u32 %v1828, 2147483648
    %v2099 = vxor.u32 %v1951, 2147483648
    %v2100 = vxor.u32 %v2074, 2147483648
    %v2101 = vxor.u32 %v1708, 2147483648
    %v2102 = vxor.u32 %v1831, 2147483648
    %v2103 = vxor.u32 %v1954, 2147483648
    %v2104 = vxor.u32 %v2077, 2147483648
    %v2105 = vxor.u32 %v1711, 2147483648
    %v2106 = vxor.u32 %v1834, 2147483648
    %v2107 = vxor.u32 %v1957, 2147483648
    %v2108 = vxor.u32 %v2080, 2147483648
    %v2109 = vxor.u32 %v1714, 2147483648
    %v2110 = vxor.u32 %v1837, 2147483648
    %v2111 = vxor.u32 %v1960, 2147483648
    %v2112 = vxor.u32 %v2083, 2147483648
    %v2113 = vmul.f32 %v2097, 1.442695
    %v2114 = vpow.pop %v2113
    %v2115 = vmul.f32 %v2098, 1.442695
    %v2116 = vpow.pop %v2115
    %v2117 = vmul.f32 %v2099, 1.442695
    %v2118 = vpow.pop %v2117
    %v2119 = vmul.f32 %v2100, 1.442695
    %v2120 = vpow.pop %v2119
    %v2121 = vmul.f32 %v2101, 1.442695
    %v2122 = vpow.pop %v2121
    %v2123 = vmul.f32 %v2102, 1.442695
    %v2124 = vpow.pop %v2123
    %v2125 = vmul.f32 %v2103, 1.442695
    %v2126 = vpow.pop %v2125
    %v2127 = vmul.f32 %v2104, 1.442695
    %v2128 = vpow.pop %v2127
    %v2129 = vmul.f32 %v2105, 1.442695
    %v2130 = vpow.pop %v2129
    %v2131 = vmul.f32 %v2106, 1.442695
    %v2132 = vpow.pop %v2131
    %v2133 = vmul.f32 %v2107, 1.442695
    %v2134 = vpow.pop %v2133
    %v2135 = vmul.f32 %v2108, 1.442695
    %v2136 = vpow.pop %v2135
    %v2137 = vmul.f32 %v2109, 1.442695
    %v2138 = vpow.pop %v2137
    %v2139 = vmul.f32 %v2110, 1.442695
    %v2140 = vpow.pop %v2139
    %v2141 = vmul.f32 %v2111, 1.442695
    %v2142 = vpow.pop %v2141
    %v2143 = vmul.f32 %v2112, 1.442695
    %v2144 = vpow.pop %v2143
    %v2145 = vadd.f32 %v2114, 1.0
    %v2146 = vadd.f32 %v2116, 1.0
    %v2147 = vadd.f32 %v2118, 1.0
    %v2148 = vadd.f32 %v2120, 1.0
    %v2149 = vadd.f32 %v2122, 1.0
    %v2150 = vadd.f32 %v2124, 1.0
    %v2151 = vadd.f32 %v2126, 1.0
    %v2152 = vadd.f32 %v2128, 1.0
    %v2153 = vadd.f32 %v2130, 1.0
    %v2154 = vadd.f32 %v2132, 1.0
    %v2155 = vadd.f32 %v2134, 1.0
    %v2156 = vadd.f32 %v2136, 1.0
    %v2157 = vadd.f32 %v2138, 1.0
    %v2158 = vadd.f32 %v2140, 1.0
    %v2159 = vadd.f32 %v2142, 1.0
    %v2160 = vadd.f32 %v2144, 1.0
    %v2161 = vrcp.pop %v2145
    %v2162 = vmul.f32 %v2145, %v2161
    %v2163 = vsub.f32 1.0, %v2162
    %v2164 = vmul.f32 %v2161, %v2163
    %v2165 = vadd.f32 %v2161, %v2164
    %vm2166 = vweird.f32 %v2145
    %vm2167 = vweird.f32 %v2161
    %vm2168 = vmor %vm2166, %vm2167
    %v2169 = vsel %vm2168, %v2161, %v2165
    %v2170 = vand.u32 2147483647, %v2145
    %vm2171 = vcmp.eq.f32.partialorder %v2170, 8.507059e+37
    %v2172 = vand.u32 %v2145, 2147483648
    %v2173 = vor.u32 1.1754944e-38, %v2172
    %v2174 = vsel %vm2171, %v2173, %v2169
    %v2175 = vmul.f32 1.0, %v2174
    %v2176 = vrcp.pop %v2146
    %v2177 = vmul.f32 %v2146, %v2176
    %v2178 = vsub.f32 1.0, %v2177
    %v2179 = vmul.f32 %v2176, %v2178
    %v2180 = vadd.f32 %v2176, %v2179
    %vm2181 = vweird.f32 %v2146
    %vm2182 = vweird.f32 %v2176
    %vm2183 = vmor %vm2181, %vm2182
    %v2184 = vsel %vm2183, %v2176, %v2180
    %v2185 = vand.u32 2147483647, %v2146
    %vm2186 = vcmp.eq.f32.partialorder %v2185, 8.507059e+37
    %v2187 = vand.u32 %v2146, 2147483648
    %v2188 = vor.u32 1.1754944e-38, %v2187
    %v2189 = vsel %vm2186, %v2188, %v2184
    %v2190 = vmul.f32 1.0, %v2189
    %v2191 = vrcp.pop %v2147
    %v2192 = vmul.f32 %v2147, %v2191
    %v2193 = vsub.f32 1.0, %v2192
    %v2194 = vmul.f32 %v2191, %v2193
    %v2195 = vadd.f32 %v2191, %v2194
    %vm2196 = vweird.f32 %v2147
    %vm2197 = vweird.f32 %v2191
    %vm2198 = vmor %vm2196, %vm2197
    %v2199 = vsel %vm2198, %v2191, %v2195
    %v2200 = vand.u32 2147483647, %v2147
    %vm2201 = vcmp.eq.f32.partialorder %v2200, 8.507059e+37
    %v2202 = vand.u32 %v2147, 2147483648
    %v2203 = vor.u32 1.1754944e-38, %v2202
    %v2204 = vsel %vm2201, %v2203, %v2199
    %v2205 = vmul.f32 1.0, %v2204
    %v2206 = vrcp.pop %v2148
    %v2207 = vmul.f32 %v2148, %v2206
    %v2208 = vsub.f32 1.0, %v2207
    %v2209 = vmul.f32 %v2206, %v2208
    %v2210 = vadd.f32 %v2206, %v2209
    %vm2211 = vweird.f32 %v2148
    %vm2212 = vweird.f32 %v2206
    %vm2213 = vmor %vm2211, %vm2212
    %v2214 = vsel %vm2213, %v2206, %v2210
    %v2215 = vand.u32 2147483647, %v2148
    %vm2216 = vcmp.eq.f32.partialorder %v2215, 8.507059e+37
    %v2217 = vand.u32 %v2148, 2147483648
    %v2218 = vor.u32 1.1754944e-38, %v2217
    %v2219 = vsel %vm2216, %v2218, %v2214
    %v2220 = vmul.f32 1.0, %v2219
    %v2221 = vrcp.pop %v2149
    %v2222 = vmul.f32 %v2149, %v2221
    %v2223 = vsub.f32 1.0, %v2222
    %v2224 = vmul.f32 %v2221, %v2223
    %v2225 = vadd.f32 %v2221, %v2224
    %vm2226 = vweird.f32 %v2149
    %vm2227 = vweird.f32 %v2221
    %vm2228 = vmor %vm2226, %vm2227
    %v2229 = vsel %vm2228, %v2221, %v2225
    %v2230 = vand.u32 2147483647, %v2149
    %vm2231 = vcmp.eq.f32.partialorder %v2230, 8.507059e+37
    %v2232 = vand.u32 %v2149, 2147483648
    %v2233 = vor.u32 1.1754944e-38, %v2232
    %v2234 = vsel %vm2231, %v2233, %v2229
    %v2235 = vmul.f32 1.0, %v2234
    %v2236 = vrcp.pop %v2150
    %v2237 = vmul.f32 %v2150, %v2236
    %v2238 = vsub.f32 1.0, %v2237
    %v2239 = vmul.f32 %v2236, %v2238
    %v2240 = vadd.f32 %v2236, %v2239
    %vm2241 = vweird.f32 %v2150
    %vm2242 = vweird.f32 %v2236
    %vm2243 = vmor %vm2241, %vm2242
    %v2244 = vsel %vm2243, %v2236, %v2240
    %v2245 = vand.u32 2147483647, %v2150
    %vm2246 = vcmp.eq.f32.partialorder %v2245, 8.507059e+37
    %v2247 = vand.u32 %v2150, 2147483648
    %v2248 = vor.u32 1.1754944e-38, %v2247
    %v2249 = vsel %vm2246, %v2248, %v2244
    %v2250 = vmul.f32 1.0, %v2249
    %v2251 = vrcp.pop %v2151
    %v2252 = vmul.f32 %v2151, %v2251
    %v2253 = vsub.f32 1.0, %v2252
    %v2254 = vmul.f32 %v2251, %v2253
    %v2255 = vadd.f32 %v2251, %v2254
    %vm2256 = vweird.f32 %v2151
    %vm2257 = vweird.f32 %v2251
    %vm2258 = vmor %vm2256, %vm2257
    %v2259 = vsel %vm2258, %v2251, %v2255
    %v2260 = vand.u32 2147483647, %v2151
    %vm2261 = vcmp.eq.f32.partialorder %v2260, 8.507059e+37
    %v2262 = vand.u32 %v2151, 2147483648
    %v2263 = vor.u32 1.1754944e-38, %v2262
    %v2264 = vsel %vm2261, %v2263, %v2259
    %v2265 = vmul.f32 1.0, %v2264
    %v2266 = vrcp.pop %v2152
    %v2267 = vmul.f32 %v2152, %v2266
    %v2268 = vsub.f32 1.0, %v2267
    %v2269 = vmul.f32 %v2266, %v2268
    %v2270 = vadd.f32 %v2266, %v2269
    %vm2271 = vweird.f32 %v2152
    %vm2272 = vweird.f32 %v2266
    %vm2273 = vmor %vm2271, %vm2272
    %v2274 = vsel %vm2273, %v2266, %v2270
    %v2275 = vand.u32 2147483647, %v2152
    %vm2276 = vcmp.eq.f32.partialorder %v2275, 8.507059e+37
    %v2277 = vand.u32 %v2152, 2147483648
    %v2278 = vor.u32 1.1754944e-38, %v2277
    %v2279 = vsel %vm2276, %v2278, %v2274
    %v2280 = vmul.f32 1.0, %v2279
    %v2281 = vrcp.pop %v2153
    %v2282 = vmul.f32 %v2153, %v2281
    %v2283 = vsub.f32 1.0, %v2282
    %v2284 = vmul.f32 %v2281, %v2283
    %v2285 = vadd.f32 %v2281, %v2284
    %vm2286 = vweird.f32 %v2153
    %vm2287 = vweird.f32 %v2281
    %vm2288 = vmor %vm2286, %vm2287
    %v2289 = vsel %vm2288, %v2281, %v2285
    %v2290 = vand.u32 2147483647, %v2153
    %vm2291 = vcmp.eq.f32.partialorder %v2290, 8.507059e+37
    %v2292 = vand.u32 %v2153, 2147483648
    %v2293 = vor.u32 1.1754944e-38, %v2292
    %v2294 = vsel %vm2291, %v2293, %v2289
    %v2295 = vmul.f32 1.0, %v2294
    %v2296 = vrcp.pop %v2154
    %v2297 = vmul.f32 %v2154, %v2296
    %v2298 = vsub.f32 1.0, %v2297
    %v2299 = vmul.f32 %v2296, %v2298
    %v2300 = vadd.f32 %v2296, %v2299
    %vm2301 = vweird.f32 %v2154
    %vm2302 = vweird.f32 %v2296
    %vm2303 = vmor %vm2301, %vm2302
    %v2304 = vsel %vm2303, %v2296, %v2300
    %v2305 = vand.u32 2147483647, %v2154
    %vm2306 = vcmp.eq.f32.partialorder %v2305, 8.507059e+37
    %v2307 = vand.u32 %v2154, 2147483648
    %v2308 = vor.u32 1.1754944e-38, %v2307
    %v2309 = vsel %vm2306, %v2308, %v2304
    %v2310 = vmul.f32 1.0, %v2309
    %v2311 = vrcp.pop %v2155
    %v2312 = vmul.f32 %v2155, %v2311
    %v2313 = vsub.f32 1.0, %v2312
    %v2314 = vmul.f32 %v2311, %v2313
    %v2315 = vadd.f32 %v2311, %v2314
    %vm2316 = vweird.f32 %v2155
    %vm2317 = vweird.f32 %v2311
    %vm2318 = vmor %vm2316, %vm2317
    %v2319 = vsel %vm2318, %v2311, %v2315
    %v2320 = vand.u32 2147483647, %v2155
    %vm2321 = vcmp.eq.f32.partialorder %v2320, 8.507059e+37
    %v2322 = vand.u32 %v2155, 2147483648
    %v2323 = vor.u32 1.1754944e-38, %v2322
    %v2324 = vsel %vm2321, %v2323, %v2319
    %v2325 = vmul.f32 1.0, %v2324
    %v2326 = vrcp.pop %v2156
    %v2327 = vmul.f32 %v2156, %v2326
    %v2328 = vsub.f32 1.0, %v2327
    %v2329 = vmul.f32 %v2326, %v2328
    %v2330 = vadd.f32 %v2326, %v2329
    %vm2331 = vweird.f32 %v2156
    %vm2332 = vweird.f32 %v2326
    %vm2333 = vmor %vm2331, %vm2332
    %v2334 = vsel %vm2333, %v2326, %v2330
    %v2335 = vand.u32 2147483647, %v2156
    %vm2336 = vcmp.eq.f32.partialorder %v2335, 8.507059e+37
    %v2337 = vand.u32 %v2156, 2147483648
    %v2338 = vor.u32 1.1754944e-38, %v2337
    %v2339 = vsel %vm2336, %v2338, %v2334
    %v2340 = vmul.f32 1.0, %v2339
    %v2341 = vrcp.pop %v2157
    %v2342 = vmul.f32 %v2157, %v2341
    %v2343 = vsub.f32 1.0, %v2342
    %v2344 = vmul.f32 %v2341, %v2343
    %v2345 = vadd.f32 %v2341, %v2344
    %vm2346 = vweird.f32 %v2157
    %vm2347 = vweird.f32 %v2341
    %vm2348 = vmor %vm2346, %vm2347
    %v2349 = vsel %vm2348, %v2341, %v2345
    %v2350 = vand.u32 2147483647, %v2157
    %vm2351 = vcmp.eq.f32.partialorder %v2350, 8.507059e+37
    %v2352 = vand.u32 %v2157, 2147483648
    %v2353 = vor.u32 1.1754944e-38, %v2352
    %v2354 = vsel %vm2351, %v2353, %v2349
    %v2355 = vmul.f32 1.0, %v2354
    %v2356 = vrcp.pop %v2158
    %v2357 = vmul.f32 %v2158, %v2356
    %v2358 = vsub.f32 1.0, %v2357
    %v2359 = vmul.f32 %v2356, %v2358
    %v2360 = vadd.f32 %v2356, %v2359
    %vm2361 = vweird.f32 %v2158
    %vm2362 = vweird.f32 %v2356
    %vm2363 = vmor %vm2361, %vm2362
    %v2364 = vsel %vm2363, %v2356, %v2360
    %v2365 = vand.u32 2147483647, %v2158
    %vm2366 = vcmp.eq.f32.partialorder %v2365, 8.507059e+37
    %v2367 = vand.u32 %v2158, 2147483648
    %v2368 = vor.u32 1.1754944e-38, %v2367
    %v2369 = vsel %vm2366, %v2368, %v2364
    %v2370 = vmul.f32 1.0, %v2369
    %v2371 = vrcp.pop %v2159
    %v2372 = vmul.f32 %v2159, %v2371
    %v2373 = vsub.f32 1.0, %v2372
    %v2374 = vmul.f32 %v2371, %v2373
    %v2375 = vadd.f32 %v2371, %v2374
    %vm2376 = vweird.f32 %v2159
    %vm2377 = vweird.f32 %v2371
    %vm2378 = vmor %vm2376, %vm2377
    %v2379 = vsel %vm2378, %v2371, %v2375
    %v2380 = vand.u32 2147483647, %v2159
    %vm2381 = vcmp.eq.f32.partialorder %v2380, 8.507059e+37
    %v2382 = vand.u32 %v2159, 2147483648
    %v2383 = vor.u32 1.1754944e-38, %v2382
    %v2384 = vsel %vm2381, %v2383, %v2379
    %v2385 = vmul.f32 1.0, %v2384
    %v2386 = vrcp.pop %v2160
    %v2387 = vmul.f32 %v2160, %v2386
    %v2388 = vsub.f32 1.0, %v2387
    %v2389 = vmul.f32 %v2386, %v2388
    %v2390 = vadd.f32 %v2386, %v2389
    %vm2391 = vweird.f32 %v2160
    %vm2392 = vweird.f32 %v2386
    %vm2393 = vmor %vm2391, %vm2392
    %v2394 = vsel %vm2393, %v2386, %v2390
    %v2395 = vand.u32 2147483647, %v2160
    %vm2396 = vcmp.eq.f32.partialorder %v2395, 8.507059e+37
    %v2397 = vand.u32 %v2160, 2147483648
    %v2398 = vor.u32 1.1754944e-38, %v2397
    %v2399 = vsel %vm2396, %v2398, %v2394
    %v2400 = vmul.f32 1.0, %v2399
    %2401 = vst [vmem:[#allocation3] sm:$0xff] %v2175
    %2402 = vst [vmem:[#allocation3 + $0x8] sm:$0xff] %v2190
    %2403 = vst [vmem:[#allocation3 + $0x10] sm:$0xff] %v2205
    %2404 = vst [vmem:[#allocation3 + $0x18] sm:$0xff] %v2220
    %2405 = vst [vmem:[#allocation3 + $0x20] sm:$0xff] %v2235
    %2406 = vst [vmem:[#allocation3 + $0x28] sm:$0xff] %v2250
    %2407 = vst [vmem:[#allocation3 + $0x30] sm:$0xff] %v2265
    %2408 = vst [vmem:[#allocation3 + $0x38] sm:$0xff] %v2280
    %2409 = vst [vmem:[#allocation3 + $0x40] sm:$0xff] %v2295
    %2410 = vst [vmem:[#allocation3 + $0x48] sm:$0xff] %v2310
    %2411 = vst [vmem:[#allocation3 + $0x50] sm:$0xff] %v2325
    %2412 = vst [vmem:[#allocation3 + $0x58] sm:$0xff] %v2340
    %2413 = vst [vmem:[#allocation3 + $0x60] sm:$0xff] %v2355
    %2414 = vst [vmem:[#allocation3 + $0x68] sm:$0xff] %v2370
    %2415 = vst [vmem:[#allocation3 + $0x70] sm:$0xff] %v2385
    %2416 = vst [vmem:[#allocation3 + $0x78] sm:$0xff] %v2400
    %v2417 = vxor.u32 %v1717, 2147483648
    %v2418 = vxor.u32 %v1840, 2147483648
    %v2419 = vxor.u32 %v1963, 2147483648
    %v2420 = vxor.u32 %v2086, 2147483648
    %v2421 = vxor.u32 %v1720, 2147483648
    %v2422 = vxor.u32 %v1843, 2147483648
    %v2423 = vxor.u32 %v1966, 2147483648
    %v2424 = vxor.u32 %v2089, 2147483648
    %v2425 = vxor.u32 %v1723, 2147483648
    %v2426 = vxor.u32 %v1846, 2147483648
    %v2427 = vxor.u32 %v1969, 2147483648
    %v2428 = vxor.u32 %v2092, 2147483648
    %v2429 = vxor.u32 %v1726, 2147483648
    %v2430 = vxor.u32 %v1849, 2147483648
    %v2431 = vxor.u32 %v1972, 2147483648
    %v2432 = vxor.u32 %v2095, 2147483648
    %v2433 = vmul.f32 %v2417, 1.442695
    %v2434 = vpow.pop %v2433
    %v2435 = vmul.f32 %v2418, 1.442695
    %v2436 = vpow.pop %v2435
    %v2437 = vmul.f32 %v2419, 1.442695
    %v2438 = vpow.pop %v2437
    %v2439 = vmul.f32 %v2420, 1.442695
    %v2440 = vpow.pop %v2439
    %v2441 = vmul.f32 %v2421, 1.442695
    %v2442 = vpow.pop %v2441
    %v2443 = vmul.f32 %v2422, 1.442695
    %v2444 = vpow.pop %v2443
    %v2445 = vmul.f32 %v2423, 1.442695
    %v2446 = vpow.pop %v2445
    %v2447 = vmul.f32 %v2424, 1.442695
    %v2448 = vpow.pop %v2447
    %v2449 = vmul.f32 %v2425, 1.442695
    %v2450 = vpow.pop %v2449
    %v2451 = vmul.f32 %v2426, 1.442695
    %v2452 = vpow.pop %v2451
    %v2453 = vmul.f32 %v2427, 1.442695
    %v2454 = vpow.pop %v2453
    %v2455 = vmul.f32 %v2428, 1.442695
    %v2456 = vpow.pop %v2455
    %v2457 = vmul.f32 %v2429, 1.442695
    %v2458 = vpow.pop %v2457
    %v2459 = vmul.f32 %v2430, 1.442695
    %v2460 = vpow.pop %v2459
    %v2461 = vmul.f32 %v2431, 1.442695
    %v2462 = vpow.pop %v2461
    %v2463 = vmul.f32 %v2432, 1.442695
    %v2464 = vpow.pop %v2463
    %v2465 = vadd.f32 %v2434, 1.0
    %v2466 = vadd.f32 %v2436, 1.0
    %v2467 = vadd.f32 %v2438, 1.0
    %v2468 = vadd.f32 %v2440, 1.0
    %v2469 = vadd.f32 %v2442, 1.0
    %v2470 = vadd.f32 %v2444, 1.0
    %v2471 = vadd.f32 %v2446, 1.0
    %v2472 = vadd.f32 %v2448, 1.0
    %v2473 = vadd.f32 %v2450, 1.0
    %v2474 = vadd.f32 %v2452, 1.0
    %v2475 = vadd.f32 %v2454, 1.0
    %v2476 = vadd.f32 %v2456, 1.0
    %v2477 = vadd.f32 %v2458, 1.0
    %v2478 = vadd.f32 %v2460, 1.0
    %v2479 = vadd.f32 %v2462, 1.0
    %v2480 = vadd.f32 %v2464, 1.0
    %v2481 = vrcp.pop %v2465
    %v2482 = vmul.f32 %v2465, %v2481
    %v2483 = vsub.f32 1.0, %v2482
    %v2484 = vmul.f32 %v2481, %v2483
    %v2485 = vadd.f32 %v2481, %v2484
    %vm2486 = vweird.f32 %v2465
    %vm2487 = vweird.f32 %v2481
    %vm2488 = vmor %vm2486, %vm2487
    %v2489 = vsel %vm2488, %v2481, %v2485
    %v2490 = vand.u32 2147483647, %v2465
    %vm2491 = vcmp.eq.f32.partialorder %v2490, 8.507059e+37
    %v2492 = vand.u32 %v2465, 2147483648
    %v2493 = vor.u32 1.1754944e-38, %v2492
    %v2494 = vsel %vm2491, %v2493, %v2489
    %v2495 = vmul.f32 1.0, %v2494
    %v2496 = vrcp.pop %v2466
    %v2497 = vmul.f32 %v2466, %v2496
    %v2498 = vsub.f32 1.0, %v2497
    %v2499 = vmul.f32 %v2496, %v2498
    %v2500 = vadd.f32 %v2496, %v2499
    %vm2501 = vweird.f32 %v2466
    %vm2502 = vweird.f32 %v2496
    %vm2503 = vmor %vm2501, %vm2502
    %v2504 = vsel %vm2503, %v2496, %v2500
    %v2505 = vand.u32 2147483647, %v2466
    %vm2506 = vcmp.eq.f32.partialorder %v2505, 8.507059e+37
    %v2507 = vand.u32 %v2466, 2147483648
    %v2508 = vor.u32 1.1754944e-38, %v2507
    %v2509 = vsel %vm2506, %v2508, %v2504
    %v2510 = vmul.f32 1.0, %v2509
    %v2511 = vrcp.pop %v2467
    %v2512 = vmul.f32 %v2467, %v2511
    %v2513 = vsub.f32 1.0, %v2512
    %v2514 = vmul.f32 %v2511, %v2513
    %v2515 = vadd.f32 %v2511, %v2514
    %vm2516 = vweird.f32 %v2467
    %vm2517 = vweird.f32 %v2511
    %vm2518 = vmor %vm2516, %vm2517
    %v2519 = vsel %vm2518, %v2511, %v2515
    %v2520 = vand.u32 2147483647, %v2467
    %vm2521 = vcmp.eq.f32.partialorder %v2520, 8.507059e+37
    %v2522 = vand.u32 %v2467, 2147483648
    %v2523 = vor.u32 1.1754944e-38, %v2522
    %v2524 = vsel %vm2521, %v2523, %v2519
    %v2525 = vmul.f32 1.0, %v2524
    %v2526 = vrcp.pop %v2468
    %v2527 = vmul.f32 %v2468, %v2526
    %v2528 = vsub.f32 1.0, %v2527
    %v2529 = vmul.f32 %v2526, %v2528
    %v2530 = vadd.f32 %v2526, %v2529
    %vm2531 = vweird.f32 %v2468
    %vm2532 = vweird.f32 %v2526
    %vm2533 = vmor %vm2531, %vm2532
    %v2534 = vsel %vm2533, %v2526, %v2530
    %v2535 = vand.u32 2147483647, %v2468
    %vm2536 = vcmp.eq.f32.partialorder %v2535, 8.507059e+37
    %v2537 = vand.u32 %v2468, 2147483648
    %v2538 = vor.u32 1.1754944e-38, %v2537
    %v2539 = vsel %vm2536, %v2538, %v2534
    %v2540 = vmul.f32 1.0, %v2539
    %v2541 = vrcp.pop %v2469
    %v2542 = vmul.f32 %v2469, %v2541
    %v2543 = vsub.f32 1.0, %v2542
    %v2544 = vmul.f32 %v2541, %v2543
    %v2545 = vadd.f32 %v2541, %v2544
    %vm2546 = vweird.f32 %v2469
    %vm2547 = vweird.f32 %v2541
    %vm2548 = vmor %vm2546, %vm2547
    %v2549 = vsel %vm2548, %v2541, %v2545
    %v2550 = vand.u32 2147483647, %v2469
    %vm2551 = vcmp.eq.f32.partialorder %v2550, 8.507059e+37
    %v2552 = vand.u32 %v2469, 2147483648
    %v2553 = vor.u32 1.1754944e-38, %v2552
    %v2554 = vsel %vm2551, %v2553, %v2549
    %v2555 = vmul.f32 1.0, %v2554
    %v2556 = vrcp.pop %v2470
    %v2557 = vmul.f32 %v2470, %v2556
    %v2558 = vsub.f32 1.0, %v2557
    %v2559 = vmul.f32 %v2556, %v2558
    %v2560 = vadd.f32 %v2556, %v2559
    %vm2561 = vweird.f32 %v2470
    %vm2562 = vweird.f32 %v2556
    %vm2563 = vmor %vm2561, %vm2562
    %v2564 = vsel %vm2563, %v2556, %v2560
    %v2565 = vand.u32 2147483647, %v2470
    %vm2566 = vcmp.eq.f32.partialorder %v2565, 8.507059e+37
    %v2567 = vand.u32 %v2470, 2147483648
    %v2568 = vor.u32 1.1754944e-38, %v2567
    %v2569 = vsel %vm2566, %v2568, %v2564
    %v2570 = vmul.f32 1.0, %v2569
    %v2571 = vrcp.pop %v2471
    %v2572 = vmul.f32 %v2471, %v2571
    %v2573 = vsub.f32 1.0, %v2572
    %v2574 = vmul.f32 %v2571, %v2573
    %v2575 = vadd.f32 %v2571, %v2574
    %vm2576 = vweird.f32 %v2471
    %vm2577 = vweird.f32 %v2571
    %vm2578 = vmor %vm2576, %vm2577
    %v2579 = vsel %vm2578, %v2571, %v2575
    %v2580 = vand.u32 2147483647, %v2471
    %vm2581 = vcmp.eq.f32.partialorder %v2580, 8.507059e+37
    %v2582 = vand.u32 %v2471, 2147483648
    %v2583 = vor.u32 1.1754944e-38, %v2582
    %v2584 = vsel %vm2581, %v2583, %v2579
    %v2585 = vmul.f32 1.0, %v2584
    %v2586 = vrcp.pop %v2472
    %v2587 = vmul.f32 %v2472, %v2586
    %v2588 = vsub.f32 1.0, %v2587
    %v2589 = vmul.f32 %v2586, %v2588
    %v2590 = vadd.f32 %v2586, %v2589
    %vm2591 = vweird.f32 %v2472
    %vm2592 = vweird.f32 %v2586
    %vm2593 = vmor %vm2591, %vm2592
    %v2594 = vsel %vm2593, %v2586, %v2590
    %v2595 = vand.u32 2147483647, %v2472
    %vm2596 = vcmp.eq.f32.partialorder %v2595, 8.507059e+37
    %v2597 = vand.u32 %v2472, 2147483648
    %v2598 = vor.u32 1.1754944e-38, %v2597
    %v2599 = vsel %vm2596, %v2598, %v2594
    %v2600 = vmul.f32 1.0, %v2599
    %v2601 = vrcp.pop %v2473
    %v2602 = vmul.f32 %v2473, %v2601
    %v2603 = vsub.f32 1.0, %v2602
    %v2604 = vmul.f32 %v2601, %v2603
    %v2605 = vadd.f32 %v2601, %v2604
    %vm2606 = vweird.f32 %v2473
    %vm2607 = vweird.f32 %v2601
    %vm2608 = vmor %vm2606, %vm2607
    %v2609 = vsel %vm2608, %v2601, %v2605
    %v2610 = vand.u32 2147483647, %v2473
    %vm2611 = vcmp.eq.f32.partialorder %v2610, 8.507059e+37
    %v2612 = vand.u32 %v2473, 2147483648
    %v2613 = vor.u32 1.1754944e-38, %v2612
    %v2614 = vsel %vm2611, %v2613, %v2609
    %v2615 = vmul.f32 1.0, %v2614
    %v2616 = vrcp.pop %v2474
    %v2617 = vmul.f32 %v2474, %v2616
    %v2618 = vsub.f32 1.0, %v2617
    %v2619 = vmul.f32 %v2616, %v2618
    %v2620 = vadd.f32 %v2616, %v2619
    %vm2621 = vweird.f32 %v2474
    %vm2622 = vweird.f32 %v2616
    %vm2623 = vmor %vm2621, %vm2622
    %v2624 = vsel %vm2623, %v2616, %v2620
    %v2625 = vand.u32 2147483647, %v2474
    %vm2626 = vcmp.eq.f32.partialorder %v2625, 8.507059e+37
    %v2627 = vand.u32 %v2474, 2147483648
    %v2628 = vor.u32 1.1754944e-38, %v2627
    %v2629 = vsel %vm2626, %v2628, %v2624
    %v2630 = vmul.f32 1.0, %v2629
    %v2631 = vrcp.pop %v2475
    %v2632 = vmul.f32 %v2475, %v2631
    %v2633 = vsub.f32 1.0, %v2632
    %v2634 = vmul.f32 %v2631, %v2633
    %v2635 = vadd.f32 %v2631, %v2634
    %vm2636 = vweird.f32 %v2475
    %vm2637 = vweird.f32 %v2631
    %vm2638 = vmor %vm2636, %vm2637
    %v2639 = vsel %vm2638, %v2631, %v2635
    %v2640 = vand.u32 2147483647, %v2475
    %vm2641 = vcmp.eq.f32.partialorder %v2640, 8.507059e+37
    %v2642 = vand.u32 %v2475, 2147483648
    %v2643 = vor.u32 1.1754944e-38, %v2642
    %v2644 = vsel %vm2641, %v2643, %v2639
    %v2645 = vmul.f32 1.0, %v2644
    %v2646 = vrcp.pop %v2476
    %v2647 = vmul.f32 %v2476, %v2646
    %v2648 = vsub.f32 1.0, %v2647
    %v2649 = vmul.f32 %v2646, %v2648
    %v2650 = vadd.f32 %v2646, %v2649
    %vm2651 = vweird.f32 %v2476
    %vm2652 = vweird.f32 %v2646
    %vm2653 = vmor %vm2651, %vm2652
    %v2654 = vsel %vm2653, %v2646, %v2650
    %v2655 = vand.u32 2147483647, %v2476
    %vm2656 = vcmp.eq.f32.partialorder %v2655, 8.507059e+37
    %v2657 = vand.u32 %v2476, 2147483648
    %v2658 = vor.u32 1.1754944e-38, %v2657
    %v2659 = vsel %vm2656, %v2658, %v2654
    %v2660 = vmul.f32 1.0, %v2659
    %v2661 = vrcp.pop %v2477
    %v2662 = vmul.f32 %v2477, %v2661
    %v2663 = vsub.f32 1.0, %v2662
    %v2664 = vmul.f32 %v2661, %v2663
    %v2665 = vadd.f32 %v2661, %v2664
    %vm2666 = vweird.f32 %v2477
    %vm2667 = vweird.f32 %v2661
    %vm2668 = vmor %vm2666, %vm2667
    %v2669 = vsel %vm2668, %v2661, %v2665
    %v2670 = vand.u32 2147483647, %v2477
    %vm2671 = vcmp.eq.f32.partialorder %v2670, 8.507059e+37
    %v2672 = vand.u32 %v2477, 2147483648
    %v2673 = vor.u32 1.1754944e-38, %v2672
    %v2674 = vsel %vm2671, %v2673, %v2669
    %v2675 = vmul.f32 1.0, %v2674
    %v2676 = vrcp.pop %v2478
    %v2677 = vmul.f32 %v2478, %v2676
    %v2678 = vsub.f32 1.0, %v2677
    %v2679 = vmul.f32 %v2676, %v2678
    %v2680 = vadd.f32 %v2676, %v2679
    %vm2681 = vweird.f32 %v2478
    %vm2682 = vweird.f32 %v2676
    %vm2683 = vmor %vm2681, %vm2682
    %v2684 = vsel %vm2683, %v2676, %v2680
    %v2685 = vand.u32 2147483647, %v2478
    %vm2686 = vcmp.eq.f32.partialorder %v2685, 8.507059e+37
    %v2687 = vand.u32 %v2478, 2147483648
    %v2688 = vor.u32 1.1754944e-38, %v2687
    %v2689 = vsel %vm2686, %v2688, %v2684
    %v2690 = vmul.f32 1.0, %v2689
    %v2691 = vrcp.pop %v2479
    %v2692 = vmul.f32 %v2479, %v2691
    %v2693 = vsub.f32 1.0, %v2692
    %v2694 = vmul.f32 %v2691, %v2693
    %v2695 = vadd.f32 %v2691, %v2694
    %vm2696 = vweird.f32 %v2479
    %vm2697 = vweird.f32 %v2691
    %vm2698 = vmor %vm2696, %vm2697
    %v2699 = vsel %vm2698, %v2691, %v2695
    %v2700 = vand.u32 2147483647, %v2479
    %vm2701 = vcmp.eq.f32.partialorder %v2700, 8.507059e+37
    %v2702 = vand.u32 %v2479, 2147483648
    %v2703 = vor.u32 1.1754944e-38, %v2702
    %v2704 = vsel %vm2701, %v2703, %v2699
    %v2705 = vmul.f32 1.0, %v2704
    %v2706 = vrcp.pop %v2480
    %v2707 = vmul.f32 %v2480, %v2706
    %v2708 = vsub.f32 1.0, %v2707
    %v2709 = vmul.f32 %v2706, %v2708
    %v2710 = vadd.f32 %v2706, %v2709
    %vm2711 = vweird.f32 %v2480
    %vm2712 = vweird.f32 %v2706
    %vm2713 = vmor %vm2711, %vm2712
    %v2714 = vsel %vm2713, %v2706, %v2710
    %v2715 = vand.u32 2147483647, %v2480
    %vm2716 = vcmp.eq.f32.partialorder %v2715, 8.507059e+37
    %v2717 = vand.u32 %v2480, 2147483648
    %v2718 = vor.u32 1.1754944e-38, %v2717
    %v2719 = vsel %vm2716, %v2718, %v2714
    %v2720 = vmul.f32 1.0, %v2719
    %v2721 = vld [vmem:[#allocation7] sm:$0xff]
    %v2722 = vld [vmem:[#allocation7 + $0x8] sm:$0xff]
    %v2723 = vld [vmem:[#allocation7 + $0x10] sm:$0xff]
    %v2724 = vld [vmem:[#allocation7 + $0x18] sm:$0xff]
    %v2725 = vld [vmem:[#allocation7 + $0x20] sm:$0xff]
    %v2726 = vld [vmem:[#allocation7 + $0x28] sm:$0xff]
    %v2727 = vld [vmem:[#allocation7 + $0x30] sm:$0xff]
    %v2728 = vld [vmem:[#allocation7 + $0x38] sm:$0xff]
    %v2729 = vld [vmem:[#allocation7 + $0x40] sm:$0xff]
    %v2730 = vld [vmem:[#allocation7 + $0x48] sm:$0xff]
    %v2731 = vld [vmem:[#allocation7 + $0x50] sm:$0xff]
    %v2732 = vld [vmem:[#allocation7 + $0x58] sm:$0xff]
    %v2733 = vld [vmem:[#allocation7 + $0x60] sm:$0xff]
    %v2734 = vld [vmem:[#allocation7 + $0x68] sm:$0xff]
    %v2735 = vld [vmem:[#allocation7 + $0x70] sm:$0xff]
    %v2736 = vld [vmem:[#allocation7 + $0x78] sm:$0xff]
    %v2737 = vmul.f32 %v2495, %v2721
    %v2738 = vmul.f32 %v2510, %v2722
    %v2739 = vmul.f32 %v2525, %v2723
    %v2740 = vmul.f32 %v2540, %v2724
    %v2741 = vmul.f32 %v2555, %v2725
    %v2742 = vmul.f32 %v2570, %v2726
    %v2743 = vmul.f32 %v2585, %v2727
    %v2744 = vmul.f32 %v2600, %v2728
    %v2745 = vmul.f32 %v2615, %v2729
    %v2746 = vmul.f32 %v2630, %v2730
    %v2747 = vmul.f32 %v2645, %v2731
    %v2748 = vmul.f32 %v2660, %v2732
    %v2749 = vmul.f32 %v2675, %v2733
    %v2750 = vmul.f32 %v2690, %v2734
    %v2751 = vmul.f32 %v2705, %v2735
    %v2752 = vmul.f32 %v2720, %v2736
    %2753 = vst [vmem:[#allocation2 + $0x2a0] sm:$0xff] %v2737
    %2754 = vst [vmem:[#allocation2 + $0x2a8] sm:$0xff] %v2738
    %2755 = vst [vmem:[#allocation2 + $0x2b0] sm:$0xff] %v2739
    %2756 = vst [vmem:[#allocation2 + $0x2b8] sm:$0xff] %v2740
    %2757 = vst [vmem:[#allocation2 + $0x2c0] sm:$0xff] %v2741
    %2758 = vst [vmem:[#allocation2 + $0x2c8] sm:$0xff] %v2742
    %2759 = vst [vmem:[#allocation2 + $0x2d0] sm:$0xff] %v2743
    %2760 = vst [vmem:[#allocation2 + $0x2d8] sm:$0xff] %v2744
    %2761 = vst [vmem:[#allocation2 + $0x2e0] sm:$0xff] %v2745
    %2762 = vst [vmem:[#allocation2 + $0x2e8] sm:$0xff] %v2746
    %2763 = vst [vmem:[#allocation2 + $0x2f0] sm:$0xff] %v2747
    %2764 = vst [vmem:[#allocation2 + $0x2f8] sm:$0xff] %v2748
    %2765 = vst [vmem:[#allocation2 + $0x300] sm:$0xff] %v2749
    %2766 = vst [vmem:[#allocation2 + $0x308] sm:$0xff] %v2750
    %2767 = vst [vmem:[#allocation2 + $0x310] sm:$0xff] %v2751
    %2768 = vst [vmem:[#allocation2 + $0x318] sm:$0xff] %v2752
    %v2769 = vld [vmem:[#allocation2 + $0x2a0] sm:$0xff]
    %v2770 = vld [vmem:[#allocation2 + $0x2a8] sm:$0xff]
    %v2771 = vld [vmem:[#allocation2 + $0x2b0] sm:$0xff]
    %v2772 = vld [vmem:[#allocation2 + $0x2b8] sm:$0xff]
    %v2773 = vld [vmem:[#allocation2 + $0x2c0] sm:$0xff]
    %v2774 = vld [vmem:[#allocation2 + $0x2c8] sm:$0xff]
    %v2775 = vld [vmem:[#allocation2 + $0x2d0] sm:$0xff]
    %v2776 = vld [vmem:[#allocation2 + $0x2d8] sm:$0xff]
    %v2777 = vld [vmem:[#allocation2 + $0x2e0] sm:$0xff]
    %v2778 = vld [vmem:[#allocation2 + $0x2e8] sm:$0xff]
    %v2779 = vld [vmem:[#allocation2 + $0x2f0] sm:$0xff]
    %v2780 = vld [vmem:[#allocation2 + $0x2f8] sm:$0xff]
    %v2781 = vld [vmem:[#allocation2 + $0x300] sm:$0xff]
    %v2782 = vld [vmem:[#allocation2 + $0x308] sm:$0xff]
    %v2783 = vld [vmem:[#allocation2 + $0x310] sm:$0xff]
    %v2784 = vld [vmem:[#allocation2 + $0x318] sm:$0xff]
    %2785 = vrot.lane.b32.xlu0 %v2769, 17
    %v2786 = vpop.permute.xlu0 %2785
    %2787 = vrot.lane.b32.xlu0 %v2773, 17
    %v2788 = vpop.permute.xlu0 %2787
    %2789 = vrot.lane.b32.xlu0 %v2777, 17
    %v2790 = vpop.permute.xlu0 %2789
    %2791 = vrot.lane.b32.xlu0 %v2781, 17
    %v2792 = vpop.permute.xlu0 %2791
    %2793 = vrot.lane.b32.xlu0 %v2770, 17
    %v2794 = vpop.permute.xlu0 %2793
    %2795 = vrot.lane.b32.xlu0 %v2774, 17
    %v2796 = vpop.permute.xlu0 %2795
    %2797 = vrot.lane.b32.xlu0 %v2778, 17
    %v2798 = vpop.permute.xlu0 %2797
    %2799 = vrot.lane.b32.xlu0 %v2782, 17
    %v2800 = vpop.permute.xlu0 %2799
    %2801 = vrot.lane.b32.xlu0 %v2771, 17
    %v2802 = vpop.permute.xlu0 %2801
    %2803 = vrot.lane.b32.xlu0 %v2775, 17
    %v2804 = vpop.permute.xlu0 %2803
    %2805 = vrot.lane.b32.xlu0 %v2779, 17
    %v2806 = vpop.permute.xlu0 %2805
    %2807 = vrot.lane.b32.xlu0 %v2783, 17
    %v2808 = vpop.permute.xlu0 %2807
    %2809 = vrot.lane.b32.xlu0 %v2772, 17
    %v2810 = vpop.permute.xlu0 %2809
    %2811 = vrot.lane.b32.xlu0 %v2776, 17
    %v2812 = vpop.permute.xlu0 %2811
    %2813 = vrot.lane.b32.xlu0 %v2780, 17
    %v2814 = vpop.permute.xlu0 %2813
    %2815 = vrot.lane.b32.xlu0 %v2784, 17
    %v2816 = vpop.permute.xlu0 %2815
    %v2817 = vsel %vm112, %v2802, %v2810
    %v2818 = vsel %vm112, %v2804, %v2812
    %v2819 = vsel %vm112, %v2806, %v2814
    %v2820 = vsel %vm112, %v2808, %v2816
    %v2821 = vsel %vm112, %v2794, %v2802
    %v2822 = vsel %vm112, %v2796, %v2804
    %v2823 = vsel %vm112, %v2798, %v2806
    %v2824 = vsel %vm112, %v2800, %v2808
    %v2825 = vsel %vm112, %v2786, %v2794
    %v2826 = vsel %vm112, %v2788, %v2796
    %v2827 = vsel %vm112, %v2790, %v2798
    %v2828 = vsel %vm112, %v2792, %v2800
    %v2829 = vsel %vm112, %v2810, %v2786
    %v2830 = vsel %vm112, %v2812, %v2788
    %v2831 = vsel %vm112, %v2814, %v2790
    %v2832 = vsel %vm112, %v2816, %v2792
    %v2833 = vld [vmem:[#allocation10] ss:$2 sm:$0xf]
    %v2834 = vld [vmem:[%s118] ss:$2 sm:$0xf]
    %vm2835 = vcmp.ge.s32.totalorder %v2833, 1
    %vm2836 = vcmp.ge.s32.totalorder %v2834, 1
    %vm2837 = vmand %vm2835, %vm2836
    %v2838 = vsel %vm2837, 1, 0
    %v2839 = vcvt.s32.f32 %v2838
    %v2841 = vperm.slane %v2839, 0
    %v2842 = vperm.slane %v2839, 1
    %v2843 = vperm.slane %v2839, 2
    %v2844 = vperm.slane %v2839, 3
    %v2849 = vmul.f32 %v2829, %v2841
    %v2850 = vmul.f32 %v2825, %v2842
    %v2851 = vmul.f32 %v2821, %v2843
    %v2852 = vmul.f32 %v2817, %v2844
    %v2853 = vmul.f32 %v2830, %v2841
    %v2854 = vmul.f32 %v2826, %v2842
    %v2855 = vmul.f32 %v2822, %v2843
    %v2856 = vmul.f32 %v2818, %v2844
    %v2857 = vmul.f32 %v2831, %v2841
    %v2858 = vmul.f32 %v2827, %v2842
    %v2859 = vmul.f32 %v2823, %v2843
    %v2860 = vmul.f32 %v2819, %v2844
    %v2861 = vmul.f32 %v2832, %v2841
    %v2862 = vmul.f32 %v2828, %v2842
    %v2863 = vmul.f32 %v2824, %v2843
    %v2864 = vmul.f32 %v2820, %v2844
    %2865 = vst [vmem:[#allocation2 + $0x20] sm:$0xff] %v2849
    %2866 = vst [vmem:[#allocation2 + $0x28] sm:$0xff] %v2850
    %2867 = vst [vmem:[#allocation2 + $0x30] sm:$0xff] %v2851
    %2868 = vst [vmem:[#allocation2 + $0x38] sm:$0xff] %v2852
    %2869 = vst [vmem:[#allocation2 + $0x40] sm:$0xff] %v2853
    %2870 = vst [vmem:[#allocation2 + $0x48] sm:$0xff] %v2854
    %2871 = vst [vmem:[#allocation2 + $0x50] sm:$0xff] %v2855
    %2872 = vst [vmem:[#allocation2 + $0x58] sm:$0xff] %v2856
    %2873 = vst [vmem:[#allocation2 + $0x60] sm:$0xff] %v2857
    %2874 = vst [vmem:[#allocation2 + $0x68] sm:$0xff] %v2858
    %2875 = vst [vmem:[#allocation2 + $0x70] sm:$0xff] %v2859
    %2876 = vst [vmem:[#allocation2 + $0x78] sm:$0xff] %v2860
    %2877 = vst [vmem:[#allocation2 + $0x80] sm:$0xff] %v2861
    %2878 = vst [vmem:[#allocation2 + $0x88] sm:$0xff] %v2862
    %2879 = vst [vmem:[#allocation2 + $0x90] sm:$0xff] %v2863
    %2880 = vst [vmem:[#allocation2 + $0x98] sm:$0xff] %v2864
    %v2881 = vld [vmem:[#allocation2 + $0x2a0] sm:$0xff]
    %v2882 = vld [vmem:[#allocation2 + $0x2a8] sm:$0xff]
    %v2883 = vld [vmem:[#allocation2 + $0x2b0] sm:$0xff]
    %v2884 = vld [vmem:[#allocation2 + $0x2b8] sm:$0xff]
    %v2885 = vld [vmem:[#allocation2 + $0x2c0] sm:$0xff]
    %v2886 = vld [vmem:[#allocation2 + $0x2c8] sm:$0xff]
    %v2887 = vld [vmem:[#allocation2 + $0x2d0] sm:$0xff]
    %v2888 = vld [vmem:[#allocation2 + $0x2d8] sm:$0xff]
    %v2889 = vld [vmem:[#allocation2 + $0x2e0] sm:$0xff]
    %v2890 = vld [vmem:[#allocation2 + $0x2e8] sm:$0xff]
    %v2891 = vld [vmem:[#allocation2 + $0x2f0] sm:$0xff]
    %v2892 = vld [vmem:[#allocation2 + $0x2f8] sm:$0xff]
    %v2893 = vld [vmem:[#allocation2 + $0x300] sm:$0xff]
    %v2894 = vld [vmem:[#allocation2 + $0x308] sm:$0xff]
    %v2895 = vld [vmem:[#allocation2 + $0x310] sm:$0xff]
    %v2896 = vld [vmem:[#allocation2 + $0x318] sm:$0xff]
    %2897 = vrot.lane.b32.xlu0 %v2881, 16
    %v2898 = vpop.permute.xlu0 %2897
    %2899 = vrot.lane.b32.xlu0 %v2885, 16
    %v2900 = vpop.permute.xlu0 %2899
    %2901 = vrot.lane.b32.xlu0 %v2889, 16
    %v2902 = vpop.permute.xlu0 %2901
    %2903 = vrot.lane.b32.xlu0 %v2893, 16
    %v2904 = vpop.permute.xlu0 %2903
    %2905 = vrot.lane.b32.xlu0 %v2882, 16
    %v2906 = vpop.permute.xlu0 %2905
    %2907 = vrot.lane.b32.xlu0 %v2886, 16
    %v2908 = vpop.permute.xlu0 %2907
    %2909 = vrot.lane.b32.xlu0 %v2890, 16
    %v2910 = vpop.permute.xlu0 %2909
    %2911 = vrot.lane.b32.xlu0 %v2894, 16
    %v2912 = vpop.permute.xlu0 %2911
    %2913 = vrot.lane.b32.xlu0 %v2883, 16
    %v2914 = vpop.permute.xlu0 %2913
    %2915 = vrot.lane.b32.xlu0 %v2887, 16
    %v2916 = vpop.permute.xlu0 %2915
    %2917 = vrot.lane.b32.xlu0 %v2891, 16
    %v2918 = vpop.permute.xlu0 %2917
    %2919 = vrot.lane.b32.xlu0 %v2895, 16
    %v2920 = vpop.permute.xlu0 %2919
    %2921 = vrot.lane.b32.xlu0 %v2884, 16
    %v2922 = vpop.permute.xlu0 %2921
    %2923 = vrot.lane.b32.xlu0 %v2888, 16
    %v2924 = vpop.permute.xlu0 %2923
    %2925 = vrot.lane.b32.xlu0 %v2892, 16
    %v2926 = vpop.permute.xlu0 %2925
    %2927 = vrot.lane.b32.xlu0 %v2896, 16
    %v2928 = vpop.permute.xlu0 %2927
    %v2929 = vsel %vm154, %v2914, %v2922
    %v2930 = vsel %vm154, %v2916, %v2924
    %v2931 = vsel %vm154, %v2918, %v2926
    %v2932 = vsel %vm154, %v2920, %v2928
    %v2933 = vsel %vm154, %v2906, %v2914
    %v2934 = vsel %vm154, %v2908, %v2916
    %v2935 = vsel %vm154, %v2910, %v2918
    %v2936 = vsel %vm154, %v2912, %v2920
    %v2937 = vsel %vm154, %v2898, %v2906
    %v2938 = vsel %vm154, %v2900, %v2908
    %v2939 = vsel %vm154, %v2902, %v2910
    %v2940 = vsel %vm154, %v2904, %v2912
    %v2941 = vsel %vm154, %v2922, %v2898
    %v2942 = vsel %vm154, %v2924, %v2900
    %v2943 = vsel %vm154, %v2926, %v2902
    %v2944 = vsel %vm154, %v2928, %v2904
    %v2945 = vld [vmem:[#allocation10] ss:$2 sm:$0xf]
    %vm2946 = vcmp.ge.s32.totalorder %v2945, 1
    %v2947 = vsel %vm2946, 1, 0
    %v2948 = vcvt.s32.f32 %v2947
    %v2950 = vperm.slane %v2948, 0
    %v2951 = vperm.slane %v2948, 1
    %v2952 = vperm.slane %v2948, 2
    %v2953 = vperm.slane %v2948, 3
    %v2958 = vmul.f32 %v2941, %v2950
    %v2959 = vmul.f32 %v2937, %v2951
    %v2960 = vmul.f32 %v2933, %v2952
    %v2961 = vmul.f32 %v2929, %v2953
    %v2962 = vmul.f32 %v2942, %v2950
    %v2963 = vmul.f32 %v2938, %v2951
    %v2964 = vmul.f32 %v2934, %v2952
    %v2965 = vmul.f32 %v2930, %v2953
    %v2966 = vmul.f32 %v2943, %v2950
    %v2967 = vmul.f32 %v2939, %v2951
    %v2968 = vmul.f32 %v2935, %v2952
    %v2969 = vmul.f32 %v2931, %v2953
    %v2970 = vmul.f32 %v2944, %v2950
    %v2971 = vmul.f32 %v2940, %v2951
    %v2972 = vmul.f32 %v2936, %v2952
    %v2973 = vmul.f32 %v2932, %v2953
    %2974 = vst [vmem:[#allocation2 + $0xc0] sm:$0xff] %v2958
    %2975 = vst [vmem:[#allocation2 + $0xc8] sm:$0xff] %v2959
    %2976 = vst [vmem:[#allocation2 + $0xd0] sm:$0xff] %v2960
    %2977 = vst [vmem:[#allocation2 + $0xd8] sm:$0xff] %v2961
    %2978 = vst [vmem:[#allocation2 + $0xe0] sm:$0xff] %v2962
    %2979 = vst [vmem:[#allocation2 + $0xe8] sm:$0xff] %v2963
    %2980 = vst [vmem:[#allocation2 + $0xf0] sm:$0xff] %v2964
    %2981 = vst [vmem:[#allocation2 + $0xf8] sm:$0xff] %v2965
    %2982 = vst [vmem:[#allocation2 + $0x100] sm:$0xff] %v2966
    %2983 = vst [vmem:[#allocation2 + $0x108] sm:$0xff] %v2967
    %2984 = vst [vmem:[#allocation2 + $0x110] sm:$0xff] %v2968
    %2985 = vst [vmem:[#allocation2 + $0x118] sm:$0xff] %v2969
    %2986 = vst [vmem:[#allocation2 + $0x120] sm:$0xff] %v2970
    %2987 = vst [vmem:[#allocation2 + $0x128] sm:$0xff] %v2971
    %2988 = vst [vmem:[#allocation2 + $0x130] sm:$0xff] %v2972
    %2989 = vst [vmem:[#allocation2 + $0x138] sm:$0xff] %v2973
    %v2990 = vld [vmem:[#allocation2 + $0x2a0] sm:$0xff]
    %v2991 = vld [vmem:[#allocation2 + $0x2a8] sm:$0xff]
    %v2992 = vld [vmem:[#allocation2 + $0x2b0] sm:$0xff]
    %v2993 = vld [vmem:[#allocation2 + $0x2b8] sm:$0xff]
    %v2994 = vld [vmem:[#allocation2 + $0x2c0] sm:$0xff]
    %v2995 = vld [vmem:[#allocation2 + $0x2c8] sm:$0xff]
    %v2996 = vld [vmem:[#allocation2 + $0x2d0] sm:$0xff]
    %v2997 = vld [vmem:[#allocation2 + $0x2d8] sm:$0xff]
    %v2998 = vld [vmem:[#allocation2 + $0x2e0] sm:$0xff]
    %v2999 = vld [vmem:[#allocation2 + $0x2e8] sm:$0xff]
    %v3000 = vld [vmem:[#allocation2 + $0x2f0] sm:$0xff]
    %v3001 = vld [vmem:[#allocation2 + $0x2f8] sm:$0xff]
    %v3002 = vld [vmem:[#allocation2 + $0x300] sm:$0xff]
    %v3003 = vld [vmem:[#allocation2 + $0x308] sm:$0xff]
    %v3004 = vld [vmem:[#allocation2 + $0x310] sm:$0xff]
    %v3005 = vld [vmem:[#allocation2 + $0x318] sm:$0xff]
    %3006 = vrot.lane.b32.xlu0 %v2990, 15
    %v3007 = vpop.permute.xlu0 %3006
    %3008 = vrot.lane.b32.xlu0 %v2994, 15
    %v3009 = vpop.permute.xlu0 %3008
    %3010 = vrot.lane.b32.xlu0 %v2998, 15
    %v3011 = vpop.permute.xlu0 %3010
    %3012 = vrot.lane.b32.xlu0 %v3002, 15
    %v3013 = vpop.permute.xlu0 %3012
    %3014 = vrot.lane.b32.xlu0 %v2991, 15
    %v3015 = vpop.permute.xlu0 %3014
    %3016 = vrot.lane.b32.xlu0 %v2995, 15
    %v3017 = vpop.permute.xlu0 %3016
    %3018 = vrot.lane.b32.xlu0 %v2999, 15
    %v3019 = vpop.permute.xlu0 %3018
    %3020 = vrot.lane.b32.xlu0 %v3003, 15
    %v3021 = vpop.permute.xlu0 %3020
    %3022 = vrot.lane.b32.xlu0 %v2992, 15
    %v3023 = vpop.permute.xlu0 %3022
    %3024 = vrot.lane.b32.xlu0 %v2996, 15
    %v3025 = vpop.permute.xlu0 %3024
    %3026 = vrot.lane.b32.xlu0 %v3000, 15
    %v3027 = vpop.permute.xlu0 %3026
    %3028 = vrot.lane.b32.xlu0 %v3004, 15
    %v3029 = vpop.permute.xlu0 %3028
    %3030 = vrot.lane.b32.xlu0 %v2993, 15
    %v3031 = vpop.permute.xlu0 %3030
    %3032 = vrot.lane.b32.xlu0 %v2997, 15
    %v3033 = vpop.permute.xlu0 %3032
    %3034 = vrot.lane.b32.xlu0 %v3001, 15
    %v3035 = vpop.permute.xlu0 %3034
    %3036 = vrot.lane.b32.xlu0 %v3005, 15
    %v3037 = vpop.permute.xlu0 %3036
    %v3038 = vsel %vm192, %v3023, %v3031
    %v3039 = vsel %vm192, %v3025, %v3033
    %v3040 = vsel %vm192, %v3027, %v3035
    %v3041 = vsel %vm192, %v3029, %v3037
    %v3042 = vsel %vm192, %v3015, %v3023
    %v3043 = vsel %vm192, %v3017, %v3025
    %v3044 = vsel %vm192, %v3019, %v3027
    %v3045 = vsel %vm192, %v3021, %v3029
    %v3046 = vsel %vm192, %v3007, %v3015
    %v3047 = vsel %vm192, %v3009, %v3017
    %v3048 = vsel %vm192, %v3011, %v3019
    %v3049 = vsel %vm192, %v3013, %v3021
    %v3050 = vsel %vm192, %v3031, %v3007
    %v3051 = vsel %vm192, %v3033, %v3009
    %v3052 = vsel %vm192, %v3035, %v3011
    %v3053 = vsel %vm192, %v3037, %v3013
    %v3054 = vld [vmem:[#allocation10] ss:$2 sm:$0xf]
    %v3055 = vld [vmem:[%s118] ss:$2 sm:$0xf]
    %vm3056 = vcmp.ge.s32.totalorder %v3054, 1
    %vm3057 = vcmp.lt.s32.totalorder %v3055, 15
    %vm3058 = vmand %vm3056, %vm3057
    %v3059 = vsel %vm3058, 1, 0
    %v3060 = vcvt.s32.f32 %v3059
    %v3062 = vperm.slane %v3060, 0
    %v3063 = vperm.slane %v3060, 1
    %v3064 = vperm.slane %v3060, 2
    %v3065 = vperm.slane %v3060, 3
    %v3070 = vmul.f32 %v3050, %v3062
    %v3071 = vmul.f32 %v3046, %v3063
    %v3072 = vmul.f32 %v3042, %v3064
    %v3073 = vmul.f32 %v3038, %v3065
    %v3074 = vmul.f32 %v3051, %v3062
    %v3075 = vmul.f32 %v3047, %v3063
    %v3076 = vmul.f32 %v3043, %v3064
    %v3077 = vmul.f32 %v3039, %v3065
    %v3078 = vmul.f32 %v3052, %v3062
    %v3079 = vmul.f32 %v3048, %v3063
    %v3080 = vmul.f32 %v3044, %v3064
    %v3081 = vmul.f32 %v3040, %v3065
    %v3082 = vmul.f32 %v3053, %v3062
    %v3083 = vmul.f32 %v3049, %v3063
    %v3084 = vmul.f32 %v3045, %v3064
    %v3085 = vmul.f32 %v3041, %v3065
    %3086 = vst [vmem:[#allocation2 + $0x160] sm:$0xff] %v3070
    %3087 = vst [vmem:[#allocation2 + $0x168] sm:$0xff] %v3071
    %3088 = vst [vmem:[#allocation2 + $0x170] sm:$0xff] %v3072
    %3089 = vst [vmem:[#allocation2 + $0x178] sm:$0xff] %v3073
    %3090 = vst [vmem:[#allocation2 + $0x180] sm:$0xff] %v3074
    %3091 = vst [vmem:[#allocation2 + $0x188] sm:$0xff] %v3075
    %3092 = vst [vmem:[#allocation2 + $0x190] sm:$0xff] %v3076
    %3093 = vst [vmem:[#allocation2 + $0x198] sm:$0xff] %v3077
    %3094 = vst [vmem:[#allocation2 + $0x1a0] sm:$0xff] %v3078
    %3095 = vst [vmem:[#allocation2 + $0x1a8] sm:$0xff] %v3079
    %3096 = vst [vmem:[#allocation2 + $0x1b0] sm:$0xff] %v3080
    %3097 = vst [vmem:[#allocation2 + $0x1b8] sm:$0xff] %v3081
    %3098 = vst [vmem:[#allocation2 + $0x1c0] sm:$0xff] %v3082
    %3099 = vst [vmem:[#allocation2 + $0x1c8] sm:$0xff] %v3083
    %3100 = vst [vmem:[#allocation2 + $0x1d0] sm:$0xff] %v3084
    %3101 = vst [vmem:[#allocation2 + $0x1d8] sm:$0xff] %v3085
    %v3102 = vld [vmem:[#allocation2 + $0x2a0] sm:$0xff]
    %v3103 = vld [vmem:[#allocation2 + $0x2a8] sm:$0xff]
    %v3104 = vld [vmem:[#allocation2 + $0x2b0] sm:$0xff]
    %v3105 = vld [vmem:[#allocation2 + $0x2b8] sm:$0xff]
    %v3106 = vld [vmem:[#allocation2 + $0x2c0] sm:$0xff]
    %v3107 = vld [vmem:[#allocation2 + $0x2c8] sm:$0xff]
    %v3108 = vld [vmem:[#allocation2 + $0x2d0] sm:$0xff]
    %v3109 = vld [vmem:[#allocation2 + $0x2d8] sm:$0xff]
    %v3110 = vld [vmem:[#allocation2 + $0x2e0] sm:$0xff]
    %v3111 = vld [vmem:[#allocation2 + $0x2e8] sm:$0xff]
    %v3112 = vld [vmem:[#allocation2 + $0x2f0] sm:$0xff]
    %v3113 = vld [vmem:[#allocation2 + $0x2f8] sm:$0xff]
    %v3114 = vld [vmem:[#allocation2 + $0x300] sm:$0xff]
    %v3115 = vld [vmem:[#allocation2 + $0x308] sm:$0xff]
    %v3116 = vld [vmem:[#allocation2 + $0x310] sm:$0xff]
    %v3117 = vld [vmem:[#allocation2 + $0x318] sm:$0xff]
    %3118 = vrot.lane.b32.xlu0 %v3102, 1
    %v3119 = vpop.permute.xlu0 %3118
    %3120 = vrot.lane.b32.xlu0 %v3106, 1
    %v3121 = vpop.permute.xlu0 %3120
    %3122 = vrot.lane.b32.xlu0 %v3110, 1
    %v3123 = vpop.permute.xlu0 %3122
    %3124 = vrot.lane.b32.xlu0 %v3114, 1
    %v3125 = vpop.permute.xlu0 %3124
    %3126 = vrot.lane.b32.xlu0 %v3103, 1
    %v3127 = vpop.permute.xlu0 %3126
    %3128 = vrot.lane.b32.xlu0 %v3107, 1
    %v3129 = vpop.permute.xlu0 %3128
    %3130 = vrot.lane.b32.xlu0 %v3111, 1
    %v3131 = vpop.permute.xlu0 %3130
    %3132 = vrot.lane.b32.xlu0 %v3115, 1
    %v3133 = vpop.permute.xlu0 %3132
    %3134 = vrot.lane.b32.xlu0 %v3104, 1
    %v3135 = vpop.permute.xlu0 %3134
    %3136 = vrot.lane.b32.xlu0 %v3108, 1
    %v3137 = vpop.permute.xlu0 %3136
    %3138 = vrot.lane.b32.xlu0 %v3112, 1
    %v3139 = vpop.permute.xlu0 %3138
    %3140 = vrot.lane.b32.xlu0 %v3116, 1
    %v3141 = vpop.permute.xlu0 %3140
    %3142 = vrot.lane.b32.xlu0 %v3105, 1
    %v3143 = vpop.permute.xlu0 %3142
    %3144 = vrot.lane.b32.xlu0 %v3109, 1
    %v3145 = vpop.permute.xlu0 %3144
    %3146 = vrot.lane.b32.xlu0 %v3113, 1
    %v3147 = vpop.permute.xlu0 %3146
    %3148 = vrot.lane.b32.xlu0 %v3117, 1
    %v3149 = vpop.permute.xlu0 %3148
    %v3150 = vsel %vm233, %v3135, %v3143
    %v3151 = vsel %vm233, %v3137, %v3145
    %v3152 = vsel %vm233, %v3139, %v3147
    %v3153 = vsel %vm233, %v3141, %v3149
    %v3154 = vsel %vm233, %v3127, %v3135
    %v3155 = vsel %vm233, %v3129, %v3137
    %v3156 = vsel %vm233, %v3131, %v3139
    %v3157 = vsel %vm233, %v3133, %v3141
    %v3158 = vsel %vm233, %v3119, %v3127
    %v3159 = vsel %vm233, %v3121, %v3129
    %v3160 = vsel %vm233, %v3123, %v3131
    %v3161 = vsel %vm233, %v3125, %v3133
    %v3162 = vsel %vm233, %v3143, %v3119
    %v3163 = vsel %vm233, %v3145, %v3121
    %v3164 = vsel %vm233, %v3147, %v3123
    %v3165 = vsel %vm233, %v3149, %v3125
    %v3166 = vld [vmem:[%s118] ss:$2 sm:$0xf]
    %vm3167 = vcmp.ge.s32.totalorder %v3166, 1
    %v3168 = vsel %vm3167, 1, 0
    %v3169 = vcvt.s32.f32 %v3168
    %v3171 = vperm.slane %v3169, 0
    %v3172 = vperm.slane %v3169, 1
    %v3173 = vperm.slane %v3169, 2
    %v3174 = vperm.slane %v3169, 3
    %v3179 = vmul.f32 %v3162, %v3171
    %v3180 = vmul.f32 %v3158, %v3172
    %v3181 = vmul.f32 %v3154, %v3173
    %v3182 = vmul.f32 %v3150, %v3174
    %v3183 = vmul.f32 %v3163, %v3171
    %v3184 = vmul.f32 %v3159, %v3172
    %v3185 = vmul.f32 %v3155, %v3173
    %v3186 = vmul.f32 %v3151, %v3174
    %v3187 = vmul.f32 %v3164, %v3171
    %v3188 = vmul.f32 %v3160, %v3172
    %v3189 = vmul.f32 %v3156, %v3173
    %v3190 = vmul.f32 %v3152, %v3174
    %v3191 = vmul.f32 %v3165, %v3171
    %v3192 = vmul.f32 %v3161, %v3172
    %v3193 = vmul.f32 %v3157, %v3173
    %v3194 = vmul.f32 %v3153, %v3174
    %3195 = vst [vmem:[#allocation2 + $0x200] sm:$0xff] %v3179
    %3196 = vst [vmem:[#allocation2 + $0x208] sm:$0xff] %v3180
    %3197 = vst [vmem:[#allocation2 + $0x210] sm:$0xff] %v3181
    %3198 = vst [vmem:[#allocation2 + $0x218] sm:$0xff] %v3182
    %3199 = vst [vmem:[#allocation2 + $0x220] sm:$0xff] %v3183
    %3200 = vst [vmem:[#allocation2 + $0x228] sm:$0xff] %v3184
    %3201 = vst [vmem:[#allocation2 + $0x230] sm:$0xff] %v3185
    %3202 = vst [vmem:[#allocation2 + $0x238] sm:$0xff] %v3186
    %3203 = vst [vmem:[#allocation2 + $0x240] sm:$0xff] %v3187
    %3204 = vst [vmem:[#allocation2 + $0x248] sm:$0xff] %v3188
    %3205 = vst [vmem:[#allocation2 + $0x250] sm:$0xff] %v3189
    %3206 = vst [vmem:[#allocation2 + $0x258] sm:$0xff] %v3190
    %3207 = vst [vmem:[#allocation2 + $0x260] sm:$0xff] %v3191
    %3208 = vst [vmem:[#allocation2 + $0x268] sm:$0xff] %v3192
    %3209 = vst [vmem:[#allocation2 + $0x270] sm:$0xff] %v3193
    %3210 = vst [vmem:[#allocation2 + $0x278] sm:$0xff] %v3194
    %v3211 = vld [vmem:[#allocation2 + $0x2a0] sm:$0xff]
    %v3212 = vld [vmem:[#allocation2 + $0x2a8] sm:$0xff]
    %v3213 = vld [vmem:[#allocation2 + $0x2b0] sm:$0xff]
    %v3214 = vld [vmem:[#allocation2 + $0x2b8] sm:$0xff]
    %v3215 = vld [vmem:[#allocation2 + $0x2c0] sm:$0xff]
    %v3216 = vld [vmem:[#allocation2 + $0x2c8] sm:$0xff]
    %v3217 = vld [vmem:[#allocation2 + $0x2d0] sm:$0xff]
    %v3218 = vld [vmem:[#allocation2 + $0x2d8] sm:$0xff]
    %v3219 = vld [vmem:[#allocation2 + $0x2e0] sm:$0xff]
    %v3220 = vld [vmem:[#allocation2 + $0x2e8] sm:$0xff]
    %v3221 = vld [vmem:[#allocation2 + $0x2f0] sm:$0xff]
    %v3222 = vld [vmem:[#allocation2 + $0x2f8] sm:$0xff]
    %v3223 = vld [vmem:[#allocation2 + $0x300] sm:$0xff]
    %v3224 = vld [vmem:[#allocation2 + $0x308] sm:$0xff]
    %v3225 = vld [vmem:[#allocation2 + $0x310] sm:$0xff]
    %v3226 = vld [vmem:[#allocation2 + $0x318] sm:$0xff]
    %3227 = vrot.lane.b32.xlu0 %v3211, 127
    %v3228 = vpop.permute.xlu0 %3227
    %3229 = vrot.lane.b32.xlu0 %v3215, 127
    %v3230 = vpop.permute.xlu0 %3229
    %3231 = vrot.lane.b32.xlu0 %v3219, 127
    %v3232 = vpop.permute.xlu0 %3231
    %3233 = vrot.lane.b32.xlu0 %v3223, 127
    %v3234 = vpop.permute.xlu0 %3233
    %3235 = vrot.lane.b32.xlu0 %v3212, 127
    %v3236 = vpop.permute.xlu0 %3235
    %3237 = vrot.lane.b32.xlu0 %v3216, 127
    %v3238 = vpop.permute.xlu0 %3237
    %3239 = vrot.lane.b32.xlu0 %v3220, 127
    %v3240 = vpop.permute.xlu0 %3239
    %3241 = vrot.lane.b32.xlu0 %v3224, 127
    %v3242 = vpop.permute.xlu0 %3241
    %3243 = vrot.lane.b32.xlu0 %v3213, 127
    %v3244 = vpop.permute.xlu0 %3243
    %3245 = vrot.lane.b32.xlu0 %v3217, 127
    %v3246 = vpop.permute.xlu0 %3245
    %3247 = vrot.lane.b32.xlu0 %v3221, 127
    %v3248 = vpop.permute.xlu0 %3247
    %3249 = vrot.lane.b32.xlu0 %v3225, 127
    %v3250 = vpop.permute.xlu0 %3249
    %3251 = vrot.lane.b32.xlu0 %v3214, 127
    %v3252 = vpop.permute.xlu0 %3251
    %3253 = vrot.lane.b32.xlu0 %v3218, 127
    %v3254 = vpop.permute.xlu0 %3253
    %3255 = vrot.lane.b32.xlu0 %v3222, 127
    %v3256 = vpop.permute.xlu0 %3255
    %3257 = vrot.lane.b32.xlu0 %v3226, 127
    %v3258 = vpop.permute.xlu0 %3257
    %v3259 = vsel %vm279, %v3244, %v3252
    %v3260 = vsel %vm279, %v3246, %v3254
    %v3261 = vsel %vm279, %v3248, %v3256
    %v3262 = vsel %vm279, %v3250, %v3258
    %v3263 = vsel %vm279, %v3236, %v3244
    %v3264 = vsel %vm279, %v3238, %v3246
    %v3265 = vsel %vm279, %v3240, %v3248
    %v3266 = vsel %vm279, %v3242, %v3250
    %v3267 = vsel %vm279, %v3228, %v3236
    %v3268 = vsel %vm279, %v3230, %v3238
    %v3269 = vsel %vm279, %v3232, %v3240
    %v3270 = vsel %vm279, %v3234, %v3242
    %v3271 = vsel %vm279, %v3252, %v3228
    %v3272 = vsel %vm279, %v3254, %v3230
    %v3273 = vsel %vm279, %v3256, %v3232
    %v3274 = vsel %vm279, %v3258, %v3234
    %v3275 = vld [vmem:[%s118] ss:$2 sm:$0xf]
    %vm3276 = vcmp.lt.s32.totalorder %v3275, 15
    %v3277 = vsel %vm3276, 1, 0
    %v3278 = vcvt.s32.f32 %v3277
    %v3280 = vperm.slane %v3278, 0
    %v3281 = vperm.slane %v3278, 1
    %v3282 = vperm.slane %v3278, 2
    %v3283 = vperm.slane %v3278, 3
    %v3288 = vmul.f32 %v3267, %v3280
    %v3289 = vmul.f32 %v3263, %v3281
    %v3290 = vmul.f32 %v3259, %v3282
    %v3291 = vmul.f32 %v3271, %v3283
    %v3292 = vmul.f32 %v3268, %v3280
    %v3293 = vmul.f32 %v3264, %v3281
    %v3294 = vmul.f32 %v3260, %v3282
    %v3295 = vmul.f32 %v3272, %v3283
    %v3296 = vmul.f32 %v3269, %v3280
    %v3297 = vmul.f32 %v3265, %v3281
    %v3298 = vmul.f32 %v3261, %v3282
    %v3299 = vmul.f32 %v3273, %v3283
    %v3300 = vmul.f32 %v3270, %v3280
    %v3301 = vmul.f32 %v3266, %v3281
    %v3302 = vmul.f32 %v3262, %v3282
    %v3303 = vmul.f32 %v3274, %v3283
    %3304 = vst [vmem:[#allocation2 + $0x340] sm:$0xff] %v3288
    %3305 = vst [vmem:[#allocation2 + $0x348] sm:$0xff] %v3289
    %3306 = vst [vmem:[#allocation2 + $0x350] sm:$0xff] %v3290
    %3307 = vst [vmem:[#allocation2 + $0x358] sm:$0xff] %v3291
    %3308 = vst [vmem:[#allocation2 + $0x360] sm:$0xff] %v3292
    %3309 = vst [vmem:[#allocation2 + $0x368] sm:$0xff] %v3293
    %3310 = vst [vmem:[#allocation2 + $0x370] sm:$0xff] %v3294
    %3311 = vst [vmem:[#allocation2 + $0x378] sm:$0xff] %v3295
    %3312 = vst [vmem:[#allocation2 + $0x380] sm:$0xff] %v3296
    %3313 = vst [vmem:[#allocation2 + $0x388] sm:$0xff] %v3297
    %3314 = vst [vmem:[#allocation2 + $0x390] sm:$0xff] %v3298
    %3315 = vst [vmem:[#allocation2 + $0x398] sm:$0xff] %v3299
    %3316 = vst [vmem:[#allocation2 + $0x3a0] sm:$0xff] %v3300
    %3317 = vst [vmem:[#allocation2 + $0x3a8] sm:$0xff] %v3301
    %3318 = vst [vmem:[#allocation2 + $0x3b0] sm:$0xff] %v3302
    %3319 = vst [vmem:[#allocation2 + $0x3b8] sm:$0xff] %v3303
    %v3320 = vld [vmem:[#allocation2 + $0x2a0] sm:$0xff]
    %v3321 = vld [vmem:[#allocation2 + $0x2a8] sm:$0xff]
    %v3322 = vld [vmem:[#allocation2 + $0x2b0] sm:$0xff]
    %v3323 = vld [vmem:[#allocation2 + $0x2b8] sm:$0xff]
    %v3324 = vld [vmem:[#allocation2 + $0x2c0] sm:$0xff]
    %v3325 = vld [vmem:[#allocation2 + $0x2c8] sm:$0xff]
    %v3326 = vld [vmem:[#allocation2 + $0x2d0] sm:$0xff]
    %v3327 = vld [vmem:[#allocation2 + $0x2d8] sm:$0xff]
    %v3328 = vld [vmem:[#allocation2 + $0x2e0] sm:$0xff]
    %v3329 = vld [vmem:[#allocation2 + $0x2e8] sm:$0xff]
    %v3330 = vld [vmem:[#allocation2 + $0x2f0] sm:$0xff]
    %v3331 = vld [vmem:[#allocation2 + $0x2f8] sm:$0xff]
    %v3332 = vld [vmem:[#allocation2 + $0x300] sm:$0xff]
    %v3333 = vld [vmem:[#allocation2 + $0x308] sm:$0xff]
    %v3334 = vld [vmem:[#allocation2 + $0x310] sm:$0xff]
    %v3335 = vld [vmem:[#allocation2 + $0x318] sm:$0xff]
    %3336 = vrot.lane.b32.xlu0 %v3320, 113
    %v3337 = vpop.permute.xlu0 %3336
    %3338 = vrot.lane.b32.xlu0 %v3324, 113
    %v3339 = vpop.permute.xlu0 %3338
    %3340 = vrot.lane.b32.xlu0 %v3328, 113
    %v3341 = vpop.permute.xlu0 %3340
    %3342 = vrot.lane.b32.xlu0 %v3332, 113
    %v3343 = vpop.permute.xlu0 %3342
    %3344 = vrot.lane.b32.xlu0 %v3321, 113
    %v3345 = vpop.permute.xlu0 %3344
    %3346 = vrot.lane.b32.xlu0 %v3325, 113
    %v3347 = vpop.permute.xlu0 %3346
    %3348 = vrot.lane.b32.xlu0 %v3329, 113
    %v3349 = vpop.permute.xlu0 %3348
    %3350 = vrot.lane.b32.xlu0 %v3333, 113
    %v3351 = vpop.permute.xlu0 %3350
    %3352 = vrot.lane.b32.xlu0 %v3322, 113
    %v3353 = vpop.permute.xlu0 %3352
    %3354 = vrot.lane.b32.xlu0 %v3326, 113
    %v3355 = vpop.permute.xlu0 %3354
    %3356 = vrot.lane.b32.xlu0 %v3330, 113
    %v3357 = vpop.permute.xlu0 %3356
    %3358 = vrot.lane.b32.xlu0 %v3334, 113
    %v3359 = vpop.permute.xlu0 %3358
    %3360 = vrot.lane.b32.xlu0 %v3323, 113
    %v3361 = vpop.permute.xlu0 %3360
    %3362 = vrot.lane.b32.xlu0 %v3327, 113
    %v3363 = vpop.permute.xlu0 %3362
    %3364 = vrot.lane.b32.xlu0 %v3331, 113
    %v3365 = vpop.permute.xlu0 %3364
    %3366 = vrot.lane.b32.xlu0 %v3335, 113
    %v3367 = vpop.permute.xlu0 %3366
    %v3368 = vsel %vm317, %v3353, %v3361
    %v3369 = vsel %vm317, %v3355, %v3363
    %v3370 = vsel %vm317, %v3357, %v3365
    %v3371 = vsel %vm317, %v3359, %v3367
    %v3372 = vsel %vm317, %v3345, %v3353
    %v3373 = vsel %vm317, %v3347, %v3355
    %v3374 = vsel %vm317, %v3349, %v3357
    %v3375 = vsel %vm317, %v3351, %v3359
    %v3376 = vsel %vm317, %v3337, %v3345
    %v3377 = vsel %vm317, %v3339, %v3347
    %v3378 = vsel %vm317, %v3341, %v3349
    %v3379 = vsel %vm317, %v3343, %v3351
    %v3380 = vsel %vm317, %v3361, %v3337
    %v3381 = vsel %vm317, %v3363, %v3339
    %v3382 = vsel %vm317, %v3365, %v3341
    %v3383 = vsel %vm317, %v3367, %v3343
    %v3384 = vld [vmem:[#allocation10] ss:$2 sm:$0xf]
    %v3385 = vld [vmem:[%s118] ss:$2 sm:$0xf]
    %vm3386 = vcmp.lt.s32.totalorder %v3384, 15
    %vm3387 = vcmp.ge.s32.totalorder %v3385, 1
    %vm3388 = vmand %vm3386, %vm3387
    %v3389 = vsel %vm3388, 1, 0
    %v3390 = vcvt.s32.f32 %v3389
    %v3392 = vperm.slane %v3390, 0
    %v3393 = vperm.slane %v3390, 1
    %v3394 = vperm.slane %v3390, 2
    %v3395 = vperm.slane %v3390, 3
    %v3400 = vmul.f32 %v3376, %v3392
    %v3401 = vmul.f32 %v3372, %v3393
    %v3402 = vmul.f32 %v3368, %v3394
    %v3403 = vmul.f32 %v3380, %v3395
    %v3404 = vmul.f32 %v3377, %v3392
    %v3405 = vmul.f32 %v3373, %v3393
    %v3406 = vmul.f32 %v3369, %v3394
    %v3407 = vmul.f32 %v3381, %v3395
    %v3408 = vmul.f32 %v3378, %v3392
    %v3409 = vmul.f32 %v3374, %v3393
    %v3410 = vmul.f32 %v3370, %v3394
    %v3411 = vmul.f32 %v3382, %v3395
    %v3412 = vmul.f32 %v3379, %v3392
    %v3413 = vmul.f32 %v3375, %v3393
    %v3414 = vmul.f32 %v3371, %v3394
    %v3415 = vmul.f32 %v3383, %v3395
    %3416 = vst [vmem:[#allocation2 + $0x3e0] sm:$0xff] %v3400
    %3417 = vst [vmem:[#allocation2 + $0x3e8] sm:$0xff] %v3401
    %3418 = vst [vmem:[#allocation2 + $0x3f0] sm:$0xff] %v3402
    %3419 = vst [vmem:[#allocation2 + $0x3f8] sm:$0xff] %v3403
    %3420 = vst [vmem:[#allocation2 + $0x400] sm:$0xff] %v3404
    %3421 = vst [vmem:[#allocation2 + $0x408] sm:$0xff] %v3405
    %3422 = vst [vmem:[#allocation2 + $0x410] sm:$0xff] %v3406
    %3423 = vst [vmem:[#allocation2 + $0x418] sm:$0xff] %v3407
    %3424 = vst [vmem:[#allocation2 + $0x420] sm:$0xff] %v3408
    %3425 = vst [vmem:[#allocation2 + $0x428] sm:$0xff] %v3409
    %3426 = vst [vmem:[#allocation2 + $0x430] sm:$0xff] %v3410
    %3427 = vst [vmem:[#allocation2 + $0x438] sm:$0xff] %v3411
    %3428 = vst [vmem:[#allocation2 + $0x440] sm:$0xff] %v3412
    %3429 = vst [vmem:[#allocation2 + $0x448] sm:$0xff] %v3413
    %3430 = vst [vmem:[#allocation2 + $0x450] sm:$0xff] %v3414
    %3431 = vst [vmem:[#allocation2 + $0x458] sm:$0xff] %v3415
    %v3432 = vld [vmem:[#allocation2 + $0x2a0] sm:$0xff]
    %v3433 = vld [vmem:[#allocation2 + $0x2a8] sm:$0xff]
    %v3434 = vld [vmem:[#allocation2 + $0x2b0] sm:$0xff]
    %v3435 = vld [vmem:[#allocation2 + $0x2b8] sm:$0xff]
    %v3436 = vld [vmem:[#allocation2 + $0x2c0] sm:$0xff]
    %v3437 = vld [vmem:[#allocation2 + $0x2c8] sm:$0xff]
    %v3438 = vld [vmem:[#allocation2 + $0x2d0] sm:$0xff]
    %v3439 = vld [vmem:[#allocation2 + $0x2d8] sm:$0xff]
    %v3440 = vld [vmem:[#allocation2 + $0x2e0] sm:$0xff]
    %v3441 = vld [vmem:[#allocation2 + $0x2e8] sm:$0xff]
    %v3442 = vld [vmem:[#allocation2 + $0x2f0] sm:$0xff]
    %v3443 = vld [vmem:[#allocation2 + $0x2f8] sm:$0xff]
    %v3444 = vld [vmem:[#allocation2 + $0x300] sm:$0xff]
    %v3445 = vld [vmem:[#allocation2 + $0x308] sm:$0xff]
    %v3446 = vld [vmem:[#allocation2 + $0x310] sm:$0xff]
    %v3447 = vld [vmem:[#allocation2 + $0x318] sm:$0xff]
    %3448 = vrot.lane.b32.xlu0 %v3432, 112
    %v3449 = vpop.permute.xlu0 %3448
    %3450 = vrot.lane.b32.xlu0 %v3436, 112
    %v3451 = vpop.permute.xlu0 %3450
    %3452 = vrot.lane.b32.xlu0 %v3440, 112
    %v3453 = vpop.permute.xlu0 %3452
    %3454 = vrot.lane.b32.xlu0 %v3444, 112
    %v3455 = vpop.permute.xlu0 %3454
    %3456 = vrot.lane.b32.xlu0 %v3433, 112
    %v3457 = vpop.permute.xlu0 %3456
    %3458 = vrot.lane.b32.xlu0 %v3437, 112
    %v3459 = vpop.permute.xlu0 %3458
    %3460 = vrot.lane.b32.xlu0 %v3441, 112
    %v3461 = vpop.permute.xlu0 %3460
    %3462 = vrot.lane.b32.xlu0 %v3445, 112
    %v3463 = vpop.permute.xlu0 %3462
    %3464 = vrot.lane.b32.xlu0 %v3434, 112
    %v3465 = vpop.permute.xlu0 %3464
    %3466 = vrot.lane.b32.xlu0 %v3438, 112
    %v3467 = vpop.permute.xlu0 %3466
    %3468 = vrot.lane.b32.xlu0 %v3442, 112
    %v3469 = vpop.permute.xlu0 %3468
    %3470 = vrot.lane.b32.xlu0 %v3446, 112
    %v3471 = vpop.permute.xlu0 %3470
    %3472 = vrot.lane.b32.xlu0 %v3435, 112
    %v3473 = vpop.permute.xlu0 %3472
    %3474 = vrot.lane.b32.xlu0 %v3439, 112
    %v3475 = vpop.permute.xlu0 %3474
    %3476 = vrot.lane.b32.xlu0 %v3443, 112
    %v3477 = vpop.permute.xlu0 %3476
    %3478 = vrot.lane.b32.xlu0 %v3447, 112
    %v3479 = vpop.permute.xlu0 %3478
    %v3480 = vsel %vm358, %v3465, %v3473
    %v3481 = vsel %vm358, %v3467, %v3475
    %v3482 = vsel %vm358, %v3469, %v3477
    %v3483 = vsel %vm358, %v3471, %v3479
    %v3484 = vsel %vm358, %v3457, %v3465
    %v3485 = vsel %vm358, %v3459, %v3467
    %v3486 = vsel %vm358, %v3461, %v3469
    %v3487 = vsel %vm358, %v3463, %v3471
    %v3488 = vsel %vm358, %v3449, %v3457
    %v3489 = vsel %vm358, %v3451, %v3459
    %v3490 = vsel %vm358, %v3453, %v3461
    %v3491 = vsel %vm358, %v3455, %v3463
    %v3492 = vsel %vm358, %v3473, %v3449
    %v3493 = vsel %vm358, %v3475, %v3451
    %v3494 = vsel %vm358, %v3477, %v3453
    %v3495 = vsel %vm358, %v3479, %v3455
    %v3496 = vld [vmem:[#allocation10] ss:$2 sm:$0xf]
    %vm3497 = vcmp.lt.s32.totalorder %v3496, 15
    %v3498 = vsel %vm3497, 1, 0
    %v3499 = vcvt.s32.f32 %v3498
    %v3501 = vperm.slane %v3499, 0
    %v3502 = vperm.slane %v3499, 1
    %v3503 = vperm.slane %v3499, 2
    %v3504 = vperm.slane %v3499, 3
    %v3509 = vmul.f32 %v3488, %v3501
    %v3510 = vmul.f32 %v3484, %v3502
    %v3511 = vmul.f32 %v3480, %v3503
    %v3512 = vmul.f32 %v3492, %v3504
    %v3513 = vmul.f32 %v3489, %v3501
    %v3514 = vmul.f32 %v3485, %v3502
    %v3515 = vmul.f32 %v3481, %v3503
    %v3516 = vmul.f32 %v3493, %v3504
    %v3517 = vmul.f32 %v3490, %v3501
    %v3518 = vmul.f32 %v3486, %v3502
    %v3519 = vmul.f32 %v3482, %v3503
    %v3520 = vmul.f32 %v3494, %v3504
    %v3521 = vmul.f32 %v3491, %v3501
    %v3522 = vmul.f32 %v3487, %v3502
    %v3523 = vmul.f32 %v3483, %v3503
    %v3524 = vmul.f32 %v3495, %v3504
    %3525 = vst [vmem:[#allocation2 + $0x480] sm:$0xff] %v3509
    %3526 = vst [vmem:[#allocation2 + $0x488] sm:$0xff] %v3510
    %3527 = vst [vmem:[#allocation2 + $0x490] sm:$0xff] %v3511
    %3528 = vst [vmem:[#allocation2 + $0x498] sm:$0xff] %v3512
    %3529 = vst [vmem:[#allocation2 + $0x4a0] sm:$0xff] %v3513
    %3530 = vst [vmem:[#allocation2 + $0x4a8] sm:$0xff] %v3514
    %3531 = vst [vmem:[#allocation2 + $0x4b0] sm:$0xff] %v3515
    %3532 = vst [vmem:[#allocation2 + $0x4b8] sm:$0xff] %v3516
    %3533 = vst [vmem:[#allocation2 + $0x4c0] sm:$0xff] %v3517
    %3534 = vst [vmem:[#allocation2 + $0x4c8] sm:$0xff] %v3518
    %3535 = vst [vmem:[#allocation2 + $0x4d0] sm:$0xff] %v3519
    %3536 = vst [vmem:[#allocation2 + $0x4d8] sm:$0xff] %v3520
    %3537 = vst [vmem:[#allocation2 + $0x4e0] sm:$0xff] %v3521
    %3538 = vst [vmem:[#allocation2 + $0x4e8] sm:$0xff] %v3522
    %3539 = vst [vmem:[#allocation2 + $0x4f0] sm:$0xff] %v3523
    %3540 = vst [vmem:[#allocation2 + $0x4f8] sm:$0xff] %v3524
    %v3541 = vld [vmem:[#allocation2 + $0x2a0] sm:$0xff]
    %v3542 = vld [vmem:[#allocation2 + $0x2a8] sm:$0xff]
    %v3543 = vld [vmem:[#allocation2 + $0x2b0] sm:$0xff]
    %v3544 = vld [vmem:[#allocation2 + $0x2b8] sm:$0xff]
    %v3545 = vld [vmem:[#allocation2 + $0x2c0] sm:$0xff]
    %v3546 = vld [vmem:[#allocation2 + $0x2c8] sm:$0xff]
    %v3547 = vld [vmem:[#allocation2 + $0x2d0] sm:$0xff]
    %v3548 = vld [vmem:[#allocation2 + $0x2d8] sm:$0xff]
    %v3549 = vld [vmem:[#allocation2 + $0x2e0] sm:$0xff]
    %v3550 = vld [vmem:[#allocation2 + $0x2e8] sm:$0xff]
    %v3551 = vld [vmem:[#allocation2 + $0x2f0] sm:$0xff]
    %v3552 = vld [vmem:[#allocation2 + $0x2f8] sm:$0xff]
    %v3553 = vld [vmem:[#allocation2 + $0x300] sm:$0xff]
    %v3554 = vld [vmem:[#allocation2 + $0x308] sm:$0xff]
    %v3555 = vld [vmem:[#allocation2 + $0x310] sm:$0xff]
    %v3556 = vld [vmem:[#allocation2 + $0x318] sm:$0xff]
    %3557 = vrot.lane.b32.xlu0 %v3541, 111
    %v3558 = vpop.permute.xlu0 %3557
    %3559 = vrot.lane.b32.xlu0 %v3545, 111
    %v3560 = vpop.permute.xlu0 %3559
    %3561 = vrot.lane.b32.xlu0 %v3549, 111
    %v3562 = vpop.permute.xlu0 %3561
    %3563 = vrot.lane.b32.xlu0 %v3553, 111
    %v3564 = vpop.permute.xlu0 %3563
    %3565 = vrot.lane.b32.xlu0 %v3542, 111
    %v3566 = vpop.permute.xlu0 %3565
    %3567 = vrot.lane.b32.xlu0 %v3546, 111
    %v3568 = vpop.permute.xlu0 %3567
    %3569 = vrot.lane.b32.xlu0 %v3550, 111
    %v3570 = vpop.permute.xlu0 %3569
    %3571 = vrot.lane.b32.xlu0 %v3554, 111
    %v3572 = vpop.permute.xlu0 %3571
    %3573 = vrot.lane.b32.xlu0 %v3543, 111
    %v3574 = vpop.permute.xlu0 %3573
    %3575 = vrot.lane.b32.xlu0 %v3547, 111
    %v3576 = vpop.permute.xlu0 %3575
    %3577 = vrot.lane.b32.xlu0 %v3551, 111
    %v3578 = vpop.permute.xlu0 %3577
    %3579 = vrot.lane.b32.xlu0 %v3555, 111
    %v3580 = vpop.permute.xlu0 %3579
    %3581 = vrot.lane.b32.xlu0 %v3544, 111
    %v3582 = vpop.permute.xlu0 %3581
    %3583 = vrot.lane.b32.xlu0 %v3548, 111
    %v3584 = vpop.permute.xlu0 %3583
    %3585 = vrot.lane.b32.xlu0 %v3552, 111
    %v3586 = vpop.permute.xlu0 %3585
    %3587 = vrot.lane.b32.xlu0 %v3556, 111
    %v3588 = vpop.permute.xlu0 %3587
    %v3589 = vsel %vm396, %v3574, %v3582
    %v3590 = vsel %vm396, %v3576, %v3584
    %v3591 = vsel %vm396, %v3578, %v3586
    %v3592 = vsel %vm396, %v3580, %v3588
    %v3593 = vsel %vm396, %v3566, %v3574
    %v3594 = vsel %vm396, %v3568, %v3576
    %v3595 = vsel %vm396, %v3570, %v3578
    %v3596 = vsel %vm396, %v3572, %v3580
    %v3597 = vsel %vm396, %v3558, %v3566
    %v3598 = vsel %vm396, %v3560, %v3568
    %v3599 = vsel %vm396, %v3562, %v3570
    %v3600 = vsel %vm396, %v3564, %v3572
    %v3601 = vsel %vm396, %v3582, %v3558
    %v3602 = vsel %vm396, %v3584, %v3560
    %v3603 = vsel %vm396, %v3586, %v3562
    %v3604 = vsel %vm396, %v3588, %v3564
    %v3605 = vld [vmem:[#allocation10] ss:$2 sm:$0xf]
    %v3606 = vld [vmem:[%s118] ss:$2 sm:$0xf]
    %vm3607 = vcmp.lt.s32.totalorder %v3605, 15
    %vm3608 = vcmp.lt.s32.totalorder %v3606, 15
    %vm3609 = vmand %vm3607, %vm3608
    %v3610 = vsel %vm3609, 1, 0
    %v3611 = vcvt.s32.f32 %v3610
    %v3613 = vperm.slane %v3611, 0
    %v3614 = vperm.slane %v3611, 1
    %v3615 = vperm.slane %v3611, 2
    %v3616 = vperm.slane %v3611, 3
    %v3621 = vmul.f32 %v3597, %v3613
    %v3622 = vmul.f32 %v3593, %v3614
    %v3623 = vmul.f32 %v3589, %v3615
    %v3624 = vmul.f32 %v3601, %v3616
    %v3625 = vmul.f32 %v3598, %v3613
    %v3626 = vmul.f32 %v3594, %v3614
    %v3627 = vmul.f32 %v3590, %v3615
    %v3628 = vmul.f32 %v3602, %v3616
    %v3629 = vmul.f32 %v3599, %v3613
    %v3630 = vmul.f32 %v3595, %v3614
    %v3631 = vmul.f32 %v3591, %v3615
    %v3632 = vmul.f32 %v3603, %v3616
    %v3633 = vmul.f32 %v3600, %v3613
    %v3634 = vmul.f32 %v3596, %v3614
    %v3635 = vmul.f32 %v3592, %v3615
    %v3636 = vmul.f32 %v3604, %v3616
    %3637 = vst [vmem:[#allocation2 + $0x520] sm:$0xff] %v3621
    %3638 = vst [vmem:[#allocation2 + $0x528] sm:$0xff] %v3622
    %3639 = vst [vmem:[#allocation2 + $0x530] sm:$0xff] %v3623
    %3640 = vst [vmem:[#allocation2 + $0x538] sm:$0xff] %v3624
    %3641 = vst [vmem:[#allocation2 + $0x540] sm:$0xff] %v3625
    %3642 = vst [vmem:[#allocation2 + $0x548] sm:$0xff] %v3626
    %3643 = vst [vmem:[#allocation2 + $0x550] sm:$0xff] %v3627
    %3644 = vst [vmem:[#allocation2 + $0x558] sm:$0xff] %v3628
    %3645 = vst [vmem:[#allocation2 + $0x560] sm:$0xff] %v3629
    %3646 = vst [vmem:[#allocation2 + $0x568] sm:$0xff] %v3630
    %3647 = vst [vmem:[#allocation2 + $0x570] sm:$0xff] %v3631
    %3648 = vst [vmem:[#allocation2 + $0x578] sm:$0xff] %v3632
    %3649 = vst [vmem:[#allocation2 + $0x580] sm:$0xff] %v3633
    %3650 = vst [vmem:[#allocation2 + $0x588] sm:$0xff] %v3634
    %3651 = vst [vmem:[#allocation2 + $0x590] sm:$0xff] %v3635
    %3652 = vst [vmem:[#allocation2 + $0x598] sm:$0xff] %v3636
    %v3653 = vld [vmem:[%s3] sm:$0xff]
    %v3654 = vld [vmem:[%s3 + $0x8] sm:$0xff]
    %v3655 = vld [vmem:[%s3 + $0x10] sm:$0xff]
    %v3656 = vld [vmem:[%s3 + $0x18] sm:$0xff]
    %v3657 = vld [vmem:[%s3 + $0x20] sm:$0xff]
    %v3658 = vld [vmem:[%s3 + $0x28] sm:$0xff]
    %v3659 = vld [vmem:[%s3 + $0x30] sm:$0xff]
    %v3660 = vld [vmem:[%s3 + $0x38] sm:$0xff]
    %v3661 = vld [vmem:[%s3 + $0x40] sm:$0xff]
    %v3662 = vld [vmem:[%s3 + $0x48] sm:$0xff]
    %v3663 = vld [vmem:[%s3 + $0x50] sm:$0xff]
    %v3664 = vld [vmem:[%s3 + $0x58] sm:$0xff]
    %v3665 = vld [vmem:[#allocation2] sm:$0xff]
    %v3666 = vld [vmem:[#allocation2 + $0x8] sm:$0xff]
    %v3667 = vld [vmem:[#allocation2 + $0x10] sm:$0xff]
    %v3668 = vld [vmem:[#allocation2 + $0x18] sm:$0xff]
    %v3669 = vld [vmem:[#allocation2 + $0x20] sm:$0xff]
    %v3670 = vld [vmem:[#allocation2 + $0x28] sm:$0xff]
    %v3671 = vld [vmem:[#allocation2 + $0x30] sm:$0xff]
    %v3672 = vld [vmem:[#allocation2 + $0x38] sm:$0xff]
    %v3673 = vld [vmem:[#allocation2 + $0x40] sm:$0xff]
    %v3674 = vld [vmem:[#allocation2 + $0x48] sm:$0xff]
    %v3675 = vld [vmem:[#allocation2 + $0x50] sm:$0xff]
    %v3676 = vld [vmem:[#allocation2 + $0x58] sm:$0xff]
    %v3677 = vld [vmem:[#allocation2 + $0x60] sm:$0xff]
    %v3678 = vld [vmem:[#allocation2 + $0x68] sm:$0xff]
    %v3679 = vld [vmem:[#allocation2 + $0x70] sm:$0xff]
    %v3680 = vld [vmem:[#allocation2 + $0x78] sm:$0xff]
    %v3681 = vld [vmem:[#allocation2 + $0x80] sm:$0xff]
    %v3682 = vld [vmem:[#allocation2 + $0x88] sm:$0xff]
    %v3683 = vld [vmem:[#allocation2 + $0x90] sm:$0xff]
    %v3684 = vld [vmem:[#allocation2 + $0x98] sm:$0xff]
    %v3685 = vld [vmem:[#allocation2 + $0xa0] sm:$0xff]
    %v3686 = vld [vmem:[#allocation2 + $0xa8] sm:$0xff]
    %v3687 = vld [vmem:[#allocation2 + $0xb0] sm:$0xff]
    %v3688 = vld [vmem:[#allocation2 + $0xb8] sm:$0xff]
    %v3689 = vld [vmem:[#allocation2 + $0xc0] sm:$0xff]
    %v3690 = vld [vmem:[#allocation2 + $0xc8] sm:$0xff]
    %v3691 = vld [vmem:[#allocation2 + $0xd0] sm:$0xff]
    %v3692 = vld [vmem:[#allocation2 + $0xd8] sm:$0xff]
    %v3693 = vld [vmem:[#allocation2 + $0xe0] sm:$0xff]
    %v3694 = vld [vmem:[#allocation2 + $0xe8] sm:$0xff]
    %v3695 = vld [vmem:[#allocation2 + $0xf0] sm:$0xff]
    %v3696 = vld [vmem:[#allocation2 + $0xf8] sm:$0xff]
    %v3697 = vld [vmem:[#allocation2 + $0x100] sm:$0xff]
    %v3698 = vld [vmem:[#allocation2 + $0x108] sm:$0xff]
    %v3699 = vld [vmem:[#allocation2 + $0x110] sm:$0xff]
    %v3700 = vld [vmem:[#allocation2 + $0x118] sm:$0xff]
    %v3701 = vld [vmem:[#allocation2 + $0x120] sm:$0xff]
    %v3702 = vld [vmem:[#allocation2 + $0x128] sm:$0xff]
    %v3703 = vld [vmem:[#allocation2 + $0x130] sm:$0xff]
    %v3704 = vld [vmem:[#allocation2 + $0x138] sm:$0xff]
    %v3705 = vld [vmem:[#allocation2 + $0x140] sm:$0xff]
    %v3706 = vld [vmem:[#allocation2 + $0x148] sm:$0xff]
    %v3707 = vld [vmem:[#allocation2 + $0x150] sm:$0xff]
    %v3708 = vld [vmem:[#allocation2 + $0x158] sm:$0xff]
    %v3709 = vld [vmem:[#allocation2 + $0x160] sm:$0xff]
    %v3710 = vld [vmem:[#allocation2 + $0x168] sm:$0xff]
    %v3711 = vld [vmem:[#allocation2 + $0x170] sm:$0xff]
    %v3712 = vld [vmem:[#allocation2 + $0x178] sm:$0xff]
    %v3713 = vld [vmem:[#allocation2 + $0x180] sm:$0xff]
    %v3714 = vld [vmem:[#allocation2 + $0x188] sm:$0xff]
    %v3715 = vld [vmem:[#allocation2 + $0x190] sm:$0xff]
    %v3716 = vld [vmem:[#allocation2 + $0x198] sm:$0xff]
    %v3717 = vld [vmem:[#allocation2 + $0x1a0] sm:$0xff]
    %v3718 = vld [vmem:[#allocation2 + $0x1a8] sm:$0xff]
    %v3719 = vld [vmem:[#allocation2 + $0x1b0] sm:$0xff]
    %v3720 = vld [vmem:[#allocation2 + $0x1b8] sm:$0xff]
    %v3721 = vld [vmem:[#allocation2 + $0x1c0] sm:$0xff]
    %v3722 = vld [vmem:[#allocation2 + $0x1c8] sm:$0xff]
    %v3723 = vld [vmem:[#allocation2 + $0x1d0] sm:$0xff]
    %v3724 = vld [vmem:[#allocation2 + $0x1d8] sm:$0xff]
    %v3725 = vld [vmem:[#allocation2 + $0x1e0] sm:$0xff]
    %v3726 = vld [vmem:[#allocation2 + $0x1e8] sm:$0xff]
    %v3727 = vld [vmem:[#allocation2 + $0x1f0] sm:$0xff]
    %v3728 = vld [vmem:[#allocation2 + $0x1f8] sm:$0xff]
    %v3729 = vld [vmem:[#allocation2 + $0x200] sm:$0xff]
    %v3730 = vld [vmem:[#allocation2 + $0x208] sm:$0xff]
    %v3731 = vld [vmem:[#allocation2 + $0x210] sm:$0xff]
    %v3732 = vld [vmem:[#allocation2 + $0x218] sm:$0xff]
    %v3733 = vld [vmem:[#allocation2 + $0x220] sm:$0xff]
    %v3734 = vld [vmem:[#allocation2 + $0x228] sm:$0xff]
    %v3735 = vld [vmem:[#allocation2 + $0x230] sm:$0xff]
    %v3736 = vld [vmem:[#allocation2 + $0x238] sm:$0xff]
    %v3737 = vld [vmem:[#allocation2 + $0x240] sm:$0xff]
    %v3738 = vld [vmem:[#allocation2 + $0x248] sm:$0xff]
    %v3739 = vld [vmem:[#allocation2 + $0x250] sm:$0xff]
    %v3740 = vld [vmem:[#allocation2 + $0x258] sm:$0xff]
    %v3741 = vld [vmem:[#allocation2 + $0x260] sm:$0xff]
    %v3742 = vld [vmem:[#allocation2 + $0x268] sm:$0xff]
    %v3743 = vld [vmem:[#allocation2 + $0x270] sm:$0xff]
    %v3744 = vld [vmem:[#allocation2 + $0x278] sm:$0xff]
    %v3745 = vld [vmem:[#allocation2 + $0x280] sm:$0xff]
    %v3746 = vld [vmem:[#allocation2 + $0x288] sm:$0xff]
    %v3747 = vld [vmem:[#allocation2 + $0x290] sm:$0xff]
    %v3748 = vld [vmem:[#allocation2 + $0x298] sm:$0xff]
    %v3749 = vld [vmem:[#allocation2 + $0x2a0] sm:$0xff]
    %v3750 = vld [vmem:[#allocation2 + $0x2a8] sm:$0xff]
    %v3751 = vld [vmem:[#allocation2 + $0x2b0] sm:$0xff]
    %v3752 = vld [vmem:[#allocation2 + $0x2b8] sm:$0xff]
    %v3753 = vld [vmem:[#allocation2 + $0x2c0] sm:$0xff]
    %v3754 = vld [vmem:[#allocation2 + $0x2c8] sm:$0xff]
    %v3755 = vld [vmem:[#allocation2 + $0x2d0] sm:$0xff]
    %v3756 = vld [vmem:[#allocation2 + $0x2d8] sm:$0xff]
    %v3757 = vld [vmem:[#allocation2 + $0x2e0] sm:$0xff]
    %v3758 = vld [vmem:[#allocation2 + $0x2e8] sm:$0xff]
    %v3759 = vld [vmem:[#allocation2 + $0x2f0] sm:$0xff]
    %v3760 = vld [vmem:[#allocation2 + $0x2f8] sm:$0xff]
    %v3761 = vld [vmem:[#allocation2 + $0x300] sm:$0xff]
    %v3762 = vld [vmem:[#allocation2 + $0x308] sm:$0xff]
    %v3763 = vld [vmem:[#allocation2 + $0x310] sm:$0xff]
    %v3764 = vld [vmem:[#allocation2 + $0x318] sm:$0xff]
    %v3765 = vld [vmem:[#allocation2 + $0x320] sm:$0xff]
    %v3766 = vld [vmem:[#allocation2 + $0x328] sm:$0xff]
    %v3767 = vld [vmem:[#allocation2 + $0x330] sm:$0xff]
    %v3768 = vld [vmem:[#allocation2 + $0x338] sm:$0xff]
    %v3769 = vld [vmem:[#allocation2 + $0x340] sm:$0xff]
    %v3770 = vld [vmem:[#allocation2 + $0x348] sm:$0xff]
    %v3771 = vld [vmem:[#allocation2 + $0x350] sm:$0xff]
    %v3772 = vld [vmem:[#allocation2 + $0x358] sm:$0xff]
    %v3773 = vld [vmem:[#allocation2 + $0x360] sm:$0xff]
    %v3774 = vld [vmem:[#allocation2 + $0x368] sm:$0xff]
    %v3775 = vld [vmem:[#allocation2 + $0x370] sm:$0xff]
    %v3776 = vld [vmem:[#allocation2 + $0x378] sm:$0xff]
    %v3777 = vld [vmem:[#allocation2 + $0x380] sm:$0xff]
    %v3778 = vld [vmem:[#allocation2 + $0x388] sm:$0xff]
    %v3779 = vld [vmem:[#allocation2 + $0x390] sm:$0xff]
    %v3780 = vld [vmem:[#allocation2 + $0x398] sm:$0xff]
    %v3781 = vld [vmem:[#allocation2 + $0x3a0] sm:$0xff]
    %v3782 = vld [vmem:[#allocation2 + $0x3a8] sm:$0xff]
    %v3783 = vld [vmem:[#allocation2 + $0x3b0] sm:$0xff]
    %v3784 = vld [vmem:[#allocation2 + $0x3b8] sm:$0xff]
    %v3785 = vld [vmem:[#allocation2 + $0x3c0] sm:$0xff]
    %v3786 = vld [vmem:[#allocation2 + $0x3c8] sm:$0xff]
    %v3787 = vld [vmem:[#allocation2 + $0x3d0] sm:$0xff]
    %v3788 = vld [vmem:[#allocation2 + $0x3d8] sm:$0xff]
    %v3789 = vld [vmem:[#allocation2 + $0x3e0] sm:$0xff]
    %v3790 = vld [vmem:[#allocation2 + $0x3e8] sm:$0xff]
    %v3791 = vld [vmem:[#allocation2 + $0x3f0] sm:$0xff]
    %v3792 = vld [vmem:[#allocation2 + $0x3f8] sm:$0xff]
    %v3793 = vld [vmem:[#allocation2 + $0x400] sm:$0xff]
    %v3794 = vld [vmem:[#allocation2 + $0x408] sm:$0xff]
    %v3795 = vld [vmem:[#allocation2 + $0x410] sm:$0xff]
    %v3796 = vld [vmem:[#allocation2 + $0x418] sm:$0xff]
    %v3797 = vld [vmem:[#allocation2 + $0x420] sm:$0xff]
    %v3798 = vld [vmem:[#allocation2 + $0x428] sm:$0xff]
    %v3799 = vld [vmem:[#allocation2 + $0x430] sm:$0xff]
    %v3800 = vld [vmem:[#allocation2 + $0x438] sm:$0xff]
    %v3801 = vld [vmem:[#allocation2 + $0x440] sm:$0xff]
    %v3802 = vld [vmem:[#allocation2 + $0x448] sm:$0xff]
    %v3803 = vld [vmem:[#allocation2 + $0x450] sm:$0xff]
    %v3804 = vld [vmem:[#allocation2 + $0x458] sm:$0xff]
    %v3805 = vld [vmem:[#allocation2 + $0x460] sm:$0xff]
    %v3806 = vld [vmem:[#allocation2 + $0x468] sm:$0xff]
    %v3807 = vld [vmem:[#allocation2 + $0x470] sm:$0xff]
    %v3808 = vld [vmem:[#allocation2 + $0x478] sm:$0xff]
    %v3809 = vld [vmem:[#allocation2 + $0x480] sm:$0xff]
    %v3810 = vld [vmem:[#allocation2 + $0x488] sm:$0xff]
    %v3811 = vld [vmem:[#allocation2 + $0x490] sm:$0xff]
    %v3812 = vld [vmem:[#allocation2 + $0x498] sm:$0xff]
    %v3813 = vld [vmem:[#allocation2 + $0x4a0] sm:$0xff]
    %v3814 = vld [vmem:[#allocation2 + $0x4a8] sm:$0xff]
    %v3815 = vld [vmem:[#allocation2 + $0x4b0] sm:$0xff]
    %v3816 = vld [vmem:[#allocation2 + $0x4b8] sm:$0xff]
    %v3817 = vld [vmem:[#allocation2 + $0x4c0] sm:$0xff]
    %v3818 = vld [vmem:[#allocation2 + $0x4c8] sm:$0xff]
    %v3819 = vld [vmem:[#allocation2 + $0x4d0] sm:$0xff]
    %v3820 = vld [vmem:[#allocation2 + $0x4d8] sm:$0xff]
    %v3821 = vld [vmem:[#allocation2 + $0x4e0] sm:$0xff]
    %v3822 = vld [vmem:[#allocation2 + $0x4e8] sm:$0xff]
    %v3823 = vld [vmem:[#allocation2 + $0x4f0] sm:$0xff]
    %v3824 = vld [vmem:[#allocation2 + $0x4f8] sm:$0xff]
    %v3825 = vld [vmem:[#allocation2 + $0x500] sm:$0xff]
    %v3826 = vld [vmem:[#allocation2 + $0x508] sm:$0xff]
    %v3827 = vld [vmem:[#allocation2 + $0x510] sm:$0xff]
    %v3828 = vld [vmem:[#allocation2 + $0x518] sm:$0xff]
    %v3829 = vld [vmem:[#allocation2 + $0x520] sm:$0xff]
    %v3830 = vld [vmem:[#allocation2 + $0x528] sm:$0xff]
    %v3831 = vld [vmem:[#allocation2 + $0x530] sm:$0xff]
    %v3832 = vld [vmem:[#allocation2 + $0x538] sm:$0xff]
    %v3833 = vld [vmem:[#allocation2 + $0x540] sm:$0xff]
    %v3834 = vld [vmem:[#allocation2 + $0x548] sm:$0xff]
    %v3835 = vld [vmem:[#allocation2 + $0x550] sm:$0xff]
    %v3836 = vld [vmem:[#allocation2 + $0x558] sm:$0xff]
    %v3837 = vld [vmem:[#allocation2 + $0x560] sm:$0xff]
    %v3838 = vld [vmem:[#allocation2 + $0x568] sm:$0xff]
    %v3839 = vld [vmem:[#allocation2 + $0x570] sm:$0xff]
    %v3840 = vld [vmem:[#allocation2 + $0x578] sm:$0xff]
    %v3841 = vld [vmem:[#allocation2 + $0x580] sm:$0xff]
    %v3842 = vld [vmem:[#allocation2 + $0x588] sm:$0xff]
    %v3843 = vld [vmem:[#allocation2 + $0x590] sm:$0xff]
    %v3844 = vld [vmem:[#allocation2 + $0x598] sm:$0xff]
    %v3845 = vld [vmem:[#allocation2 + $0x5a0] sm:$0xff]
    %v3846 = vld [vmem:[#allocation2 + $0x5a8] sm:$0xff]
    %v3847 = vld [vmem:[#allocation2 + $0x5b0] sm:$0xff]
    %v3848 = vld [vmem:[#allocation2 + $0x5b8] sm:$0xff]
    %v3849 = vld [vmem:[#allocation2 + $0x5c0] sm:$0xff]
    %v3850 = vld [vmem:[#allocation2 + $0x5c8] sm:$0xff]
    %v3851 = vld [vmem:[#allocation2 + $0x5d0] sm:$0xff]
    %v3852 = vld [vmem:[#allocation2 + $0x5d8] sm:$0xff]
    %v3853 = vld [vmem:[#allocation2 + $0x5e0] sm:$0xff]
    %v3854 = vld [vmem:[#allocation2 + $0x5e8] sm:$0xff]
    %v3855 = vld [vmem:[#allocation2 + $0x5f0] sm:$0xff]
    %v3856 = vld [vmem:[#allocation2 + $0x5f8] sm:$0xff]
    %v3857 = vld [vmem:[%s5] sm:$0xff]
    %v3858 = vld [vmem:[%s5 + $0x8] sm:$0xff]
    %v3859 = vld [vmem:[%s5 + $0x10] sm:$0xff]
    %v3860 = vld [vmem:[%s5 + $0x18] sm:$0xff]
    %3862 = vset.pattern.permute.xlu0 0
    %3863 = vperm.xlu0 %3862, %v3857
    %v3864 = vpop.permute.xlu0 %3863
    %3867 = vset.pattern.permute.xlu0 0
    %3868 = vperm.xlu0 %3867, %v3858
    %v3869 = vpop.permute.xlu0 %3868
    %3872 = vset.pattern.permute.xlu0 0
    %3873 = vperm.xlu0 %3872, %v3859
    %v3874 = vpop.permute.xlu0 %3873
    %3877 = vset.pattern.permute.xlu0 0
    %3878 = vperm.xlu0 %3877, %v3860
    %v3879 = vpop.permute.xlu0 %3878
    %3881 = vmatpush.msra.mxu0 %v3725
    %3882 = vmatpush.msra.mxu0 %v3721
    %3883 = vmatpush.msra.mxu0 %v3717
    %3884 = vmatpush.msra.mxu0 %v3713
    %3885 = vmatpush.msra.mxu0 %v3709
    %3886 = vmatpush.msra.mxu0 %v3705
    %3887 = vmatpush.msra.mxu0 %v3701
    %3888 = vmatpush.msra.mxu0 %v3697
    %3889 = vmatpush.msra.mxu0 %v3693
    %3890 = vmatpush.msra.mxu0 %v3689
    %3891 = vmatpush.msra.mxu0 %v3685
    %3892 = vmatpush.msra.mxu0 %v3681
    %3893 = vmatpush.msra.mxu0 %v3677
    %3894 = vmatpush.msra.mxu0 %v3673
    %3895 = vmatpush.msra.mxu0 %v3669
    %3896 = vmatpush.msra.mxu0 %v3665
    %3897 = vmatmul.f32.gmra.mxu0 %v3653
    %v3898 = vpop.f32.mrf.mxu0
    %v3899 = vadd.f32 %v3864, %v3898
    %3900 = vmatmul.f32.gmra.mxu0 %v3656
    %v3901 = vpop.f32.mrf.mxu0
    %v3902 = vadd.f32 %v3869, %v3901
    %3903 = vmatmul.f32.gmra.mxu0 %v3659
    %v3904 = vpop.f32.mrf.mxu0
    %v3905 = vadd.f32 %v3874, %v3904
    %3906 = vmatmul.f32.gmra.mxu0 %v3662
    %v3907 = vpop.f32.mrf.mxu0
    %v3908 = vadd.f32 %v3879, %v3907
    %3909 = vdwg.mxu0
    %3910 = vmatpush.msra.mxu0 %v3789
    %3911 = vmatpush.msra.mxu0 %v3785
    %3912 = vmatpush.msra.mxu0 %v3781
    %3913 = vmatpush.msra.mxu0 %v3777
    %3914 = vmatpush.msra.mxu0 %v3773
    %3915 = vmatpush.msra.mxu0 %v3769
    %3916 = vmatpush.msra.mxu0 %v3765
    %3917 = vmatpush.msra.mxu0 %v3761
    %3918 = vmatpush.msra.mxu0 %v3757
    %3919 = vmatpush.msra.mxu0 %v3753
    %3920 = vmatpush.msra.mxu0 %v3749
    %3921 = vmatpush.msra.mxu0 %v3745
    %3922 = vmatpush.msra.mxu0 %v3741
    %3923 = vmatpush.msra.mxu0 %v3737
    %3924 = vmatpush.msra.mxu0 %v3733
    %3925 = vmatpush.msra.mxu0 %v3729
    %3926 = vmatmul.f32.gmra.mxu0 %v3654
    %v3927 = vpop.f32.mrf.mxu0
    %v3928 = vadd.f32 %v3899, %v3927
    %3929 = vmatmul.f32.gmra.mxu0 %v3657
    %v3930 = vpop.f32.mrf.mxu0
    %v3931 = vadd.f32 %v3902, %v3930
    %3932 = vmatmul.f32.gmra.mxu0 %v3660
    %v3933 = vpop.f32.mrf.mxu0
    %v3934 = vadd.f32 %v3905, %v3933
    %3935 = vmatmul.f32.gmra.mxu0 %v3663
    %v3936 = vpop.f32.mrf.mxu0
    %v3937 = vadd.f32 %v3908, %v3936
    %3938 = vdwg.mxu0
    %3939 = vmatpush.msra.mxu0 %v3853
    %3940 = vmatpush.msra.mxu0 %v3849
    %3941 = vmatpush.msra.mxu0 %v3845
    %3942 = vmatpush.msra.mxu0 %v3841
    %3943 = vmatpush.msra.mxu0 %v3837
    %3944 = vmatpush.msra.mxu0 %v3833
    %3945 = vmatpush.msra.mxu0 %v3829
    %3946 = vmatpush.msra.mxu0 %v3825
    %3947 = vmatpush.msra.mxu0 %v3821
    %3948 = vmatpush.msra.mxu0 %v3817
    %3949 = vmatpush.msra.mxu0 %v3813
    %3950 = vmatpush.msra.mxu0 %v3809
    %3951 = vmatpush.msra.mxu0 %v3805
    %3952 = vmatpush.msra.mxu0 %v3801
    %3953 = vmatpush.msra.mxu0 %v3797
    %3954 = vmatpush.msra.mxu0 %v3793
    %3955 = vmatmul.f32.gmra.mxu0 %v3655
    %v3956 = vpop.f32.mrf.mxu0
    %v3957 = vadd.f32 %v3928, %v3956
    %3958 = vmatmul.f32.gmra.mxu0 %v3658
    %v3959 = vpop.f32.mrf.mxu0
    %v3960 = vadd.f32 %v3931, %v3959
    %3961 = vmatmul.f32.gmra.mxu0 %v3661
    %v3962 = vpop.f32.mrf.mxu0
    %v3963 = vadd.f32 %v3934, %v3962
    %3964 = vmatmul.f32.gmra.mxu0 %v3664
    %v3965 = vpop.f32.mrf.mxu0
    %v3966 = vadd.f32 %v3937, %v3965
    %3967 = vdwg.mxu0
    %3968 = vmatpush.msra.mxu0 %v3726
    %3969 = vmatpush.msra.mxu0 %v3722
    %3970 = vmatpush.msra.mxu0 %v3718
    %3971 = vmatpush.msra.mxu0 %v3714
    %3972 = vmatpush.msra.mxu0 %v3710
    %3973 = vmatpush.msra.mxu0 %v3706
    %3974 = vmatpush.msra.mxu0 %v3702
    %3975 = vmatpush.msra.mxu0 %v3698
    %3976 = vmatpush.msra.mxu0 %v3694
    %3977 = vmatpush.msra.mxu0 %v3690
    %3978 = vmatpush.msra.mxu0 %v3686
    %3979 = vmatpush.msra.mxu0 %v3682
    %3980 = vmatpush.msra.mxu0 %v3678
    %3981 = vmatpush.msra.mxu0 %v3674
    %3982 = vmatpush.msra.mxu0 %v3670
    %3983 = vmatpush.msra.mxu0 %v3666
    %3984 = vmatmul.f32.gmra.mxu0 %v3653
    %v3985 = vpop.f32.mrf.mxu0
    %v3986 = vadd.f32 %v3864, %v3985
    %3987 = vmatmul.f32.gmra.mxu0 %v3656
    %v3988 = vpop.f32.mrf.mxu0
    %v3989 = vadd.f32 %v3869, %v3988
    %3990 = vmatmul.f32.gmra.mxu0 %v3659
    %v3991 = vpop.f32.mrf.mxu0
    %v3992 = vadd.f32 %v3874, %v3991
    %3993 = vmatmul.f32.gmra.mxu0 %v3662
    %v3994 = vpop.f32.mrf.mxu0
    %v3995 = vadd.f32 %v3879, %v3994
    %3996 = vdwg.mxu0
    %3997 = vmatpush.msra.mxu0 %v3790
    %3998 = vmatpush.msra.mxu0 %v3786
    %3999 = vmatpush.msra.mxu0 %v3782
    %4000 = vmatpush.msra.mxu0 %v3778
    %4001 = vmatpush.msra.mxu0 %v3774
    %4002 = vmatpush.msra.mxu0 %v3770
    %4003 = vmatpush.msra.mxu0 %v3766
    %4004 = vmatpush.msra.mxu0 %v3762
    %4005 = vmatpush.msra.mxu0 %v3758
    %4006 = vmatpush.msra.mxu0 %v3754
    %4007 = vmatpush.msra.mxu0 %v3750
    %4008 = vmatpush.msra.mxu0 %v3746
    %4009 = vmatpush.msra.mxu0 %v3742
    %4010 = vmatpush.msra.mxu0 %v3738
    %4011 = vmatpush.msra.mxu0 %v3734
    %4012 = vmatpush.msra.mxu0 %v3730
    %4013 = vmatmul.f32.gmra.mxu0 %v3654
    %v4014 = vpop.f32.mrf.mxu0
    %v4015 = vadd.f32 %v3986, %v4014
    %4016 = vmatmul.f32.gmra.mxu0 %v3657
    %v4017 = vpop.f32.mrf.mxu0
    %v4018 = vadd.f32 %v3989, %v4017
    %4019 = vmatmul.f32.gmra.mxu0 %v3660
    %v4020 = vpop.f32.mrf.mxu0
    %v4021 = vadd.f32 %v3992, %v4020
    %4022 = vmatmul.f32.gmra.mxu0 %v3663
    %v4023 = vpop.f32.mrf.mxu0
    %v4024 = vadd.f32 %v3995, %v4023
    %4025 = vdwg.mxu0
    %4026 = vmatpush.msra.mxu0 %v3854
    %4027 = vmatpush.msra.mxu0 %v3850
    %4028 = vmatpush.msra.mxu0 %v3846
    %4029 = vmatpush.msra.mxu0 %v3842
    %4030 = vmatpush.msra.mxu0 %v3838
    %4031 = vmatpush.msra.mxu0 %v3834
    %4032 = vmatpush.msra.mxu0 %v3830
    %4033 = vmatpush.msra.mxu0 %v3826
    %4034 = vmatpush.msra.mxu0 %v3822
    %4035 = vmatpush.msra.mxu0 %v3818
    %4036 = vmatpush.msra.mxu0 %v3814
    %4037 = vmatpush.msra.mxu0 %v3810
    %4038 = vmatpush.msra.mxu0 %v3806
    %4039 = vmatpush.msra.mxu0 %v3802
    %4040 = vmatpush.msra.mxu0 %v3798
    %4041 = vmatpush.msra.mxu0 %v3794
    %4042 = vmatmul.f32.gmra.mxu0 %v3655
    %v4043 = vpop.f32.mrf.mxu0
    %v4044 = vadd.f32 %v4015, %v4043
    %4045 = vmatmul.f32.gmra.mxu0 %v3658
    %v4046 = vpop.f32.mrf.mxu0
    %v4047 = vadd.f32 %v4018, %v4046
    %4048 = vmatmul.f32.gmra.mxu0 %v3661
    %v4049 = vpop.f32.mrf.mxu0
    %v4050 = vadd.f32 %v4021, %v4049
    %4051 = vmatmul.f32.gmra.mxu0 %v3664
    %v4052 = vpop.f32.mrf.mxu0
    %v4053 = vadd.f32 %v4024, %v4052
    %4054 = vdwg.mxu0
    %4055 = vmatpush.msra.mxu0 %v3727
    %4056 = vmatpush.msra.mxu0 %v3723
    %4057 = vmatpush.msra.mxu0 %v3719
    %4058 = vmatpush.msra.mxu0 %v3715
    %4059 = vmatpush.msra.mxu0 %v3711
    %4060 = vmatpush.msra.mxu0 %v3707
    %4061 = vmatpush.msra.mxu0 %v3703
    %4062 = vmatpush.msra.mxu0 %v3699
    %4063 = vmatpush.msra.mxu0 %v3695
    %4064 = vmatpush.msra.mxu0 %v3691
    %4065 = vmatpush.msra.mxu0 %v3687
    %4066 = vmatpush.msra.mxu0 %v3683
    %4067 = vmatpush.msra.mxu0 %v3679
    %4068 = vmatpush.msra.mxu0 %v3675
    %4069 = vmatpush.msra.mxu0 %v3671
    %4070 = vmatpush.msra.mxu0 %v3667
    %4071 = vmatmul.f32.gmra.mxu0 %v3653
    %v4072 = vpop.f32.mrf.mxu0
    %v4073 = vadd.f32 %v3864, %v4072
    %4074 = vmatmul.f32.gmra.mxu0 %v3656
    %v4075 = vpop.f32.mrf.mxu0
    %v4076 = vadd.f32 %v3869, %v4075
    %4077 = vmatmul.f32.gmra.mxu0 %v3659
    %v4078 = vpop.f32.mrf.mxu0
    %v4079 = vadd.f32 %v3874, %v4078
    %4080 = vmatmul.f32.gmra.mxu0 %v3662
    %v4081 = vpop.f32.mrf.mxu0
    %v4082 = vadd.f32 %v3879, %v4081
    %4083 = vdwg.mxu0
    %4084 = vmatpush.msra.mxu0 %v3791
    %4085 = vmatpush.msra.mxu0 %v3787
    %4086 = vmatpush.msra.mxu0 %v3783
    %4087 = vmatpush.msra.mxu0 %v3779
    %4088 = vmatpush.msra.mxu0 %v3775
    %4089 = vmatpush.msra.mxu0 %v3771
    %4090 = vmatpush.msra.mxu0 %v3767
    %4091 = vmatpush.msra.mxu0 %v3763
    %4092 = vmatpush.msra.mxu0 %v3759
    %4093 = vmatpush.msra.mxu0 %v3755
    %4094 = vmatpush.msra.mxu0 %v3751
    %4095 = vmatpush.msra.mxu0 %v3747
    %4096 = vmatpush.msra.mxu0 %v3743
    %4097 = vmatpush.msra.mxu0 %v3739
    %4098 = vmatpush.msra.mxu0 %v3735
    %4099 = vmatpush.msra.mxu0 %v3731
    %4100 = vmatmul.f32.gmra.mxu0 %v3654
    %v4101 = vpop.f32.mrf.mxu0
    %v4102 = vadd.f32 %v4073, %v4101
    %4103 = vmatmul.f32.gmra.mxu0 %v3657
    %v4104 = vpop.f32.mrf.mxu0
    %v4105 = vadd.f32 %v4076, %v4104
    %4106 = vmatmul.f32.gmra.mxu0 %v3660
    %v4107 = vpop.f32.mrf.mxu0
    %v4108 = vadd.f32 %v4079, %v4107
    %4109 = vmatmul.f32.gmra.mxu0 %v3663
    %v4110 = vpop.f32.mrf.mxu0
    %v4111 = vadd.f32 %v4082, %v4110
    %4112 = vdwg.mxu0
    %4113 = vmatpush.msra.mxu0 %v3855
    %4114 = vmatpush.msra.mxu0 %v3851
    %4115 = vmatpush.msra.mxu0 %v3847
    %4116 = vmatpush.msra.mxu0 %v3843
    %4117 = vmatpush.msra.mxu0 %v3839
    %4118 = vmatpush.msra.mxu0 %v3835
    %4119 = vmatpush.msra.mxu0 %v3831
    %4120 = vmatpush.msra.mxu0 %v3827
    %4121 = vmatpush.msra.mxu0 %v3823
    %4122 = vmatpush.msra.mxu0 %v3819
    %4123 = vmatpush.msra.mxu0 %v3815
    %4124 = vmatpush.msra.mxu0 %v3811
    %4125 = vmatpush.msra.mxu0 %v3807
    %4126 = vmatpush.msra.mxu0 %v3803
    %4127 = vmatpush.msra.mxu0 %v3799
    %4128 = vmatpush.msra.mxu0 %v3795
    %4129 = vmatmul.f32.gmra.mxu0 %v3655
    %v4130 = vpop.f32.mrf.mxu0
    %v4131 = vadd.f32 %v4102, %v4130
    %4132 = vmatmul.f32.gmra.mxu0 %v3658
    %v4133 = vpop.f32.mrf.mxu0
    %v4134 = vadd.f32 %v4105, %v4133
    %4135 = vmatmul.f32.gmra.mxu0 %v3661
    %v4136 = vpop.f32.mrf.mxu0
    %v4137 = vadd.f32 %v4108, %v4136
    %4138 = vmatmul.f32.gmra.mxu0 %v3664
    %v4139 = vpop.f32.mrf.mxu0
    %v4140 = vadd.f32 %v4111, %v4139
    %4141 = vdwg.mxu0
    %4142 = vmatpush.msra.mxu0 %v3728
    %4143 = vmatpush.msra.mxu0 %v3724
    %4144 = vmatpush.msra.mxu0 %v3720
    %4145 = vmatpush.msra.mxu0 %v3716
    %4146 = vmatpush.msra.mxu0 %v3712
    %4147 = vmatpush.msra.mxu0 %v3708
    %4148 = vmatpush.msra.mxu0 %v3704
    %4149 = vmatpush.msra.mxu0 %v3700
    %4150 = vmatpush.msra.mxu0 %v3696
    %4151 = vmatpush.msra.mxu0 %v3692
    %4152 = vmatpush.msra.mxu0 %v3688
    %4153 = vmatpush.msra.mxu0 %v3684
    %4154 = vmatpush.msra.mxu0 %v3680
    %4155 = vmatpush.msra.mxu0 %v3676
    %4156 = vmatpush.msra.mxu0 %v3672
    %4157 = vmatpush.msra.mxu0 %v3668
    %4158 = vmatmul.f32.gmra.mxu0 %v3653
    %v4159 = vpop.f32.mrf.mxu0
    %v4160 = vadd.f32 %v3864, %v4159
    %4161 = vmatmul.f32.gmra.mxu0 %v3656
    %v4162 = vpop.f32.mrf.mxu0
    %v4163 = vadd.f32 %v3869, %v4162
    %4164 = vmatmul.f32.gmra.mxu0 %v3659
    %v4165 = vpop.f32.mrf.mxu0
    %v4166 = vadd.f32 %v3874, %v4165
    %4167 = vmatmul.f32.gmra.mxu0 %v3662
    %v4168 = vpop.f32.mrf.mxu0
    %v4169 = vadd.f32 %v3879, %v4168
    %4170 = vdwg.mxu0
    %4171 = vmatpush.msra.mxu0 %v3792
    %4172 = vmatpush.msra.mxu0 %v3788
    %4173 = vmatpush.msra.mxu0 %v3784
    %4174 = vmatpush.msra.mxu0 %v3780
    %4175 = vmatpush.msra.mxu0 %v3776
    %4176 = vmatpush.msra.mxu0 %v3772
    %4177 = vmatpush.msra.mxu0 %v3768
    %4178 = vmatpush.msra.mxu0 %v3764
    %4179 = vmatpush.msra.mxu0 %v3760
    %4180 = vmatpush.msra.mxu0 %v3756
    %4181 = vmatpush.msra.mxu0 %v3752
    %4182 = vmatpush.msra.mxu0 %v3748
    %4183 = vmatpush.msra.mxu0 %v3744
    %4184 = vmatpush.msra.mxu0 %v3740
    %4185 = vmatpush.msra.mxu0 %v3736
    %4186 = vmatpush.msra.mxu0 %v3732
    %4187 = vmatmul.f32.gmra.mxu0 %v3654
    %v4188 = vpop.f32.mrf.mxu0
    %v4189 = vadd.f32 %v4160, %v4188
    %4190 = vmatmul.f32.gmra.mxu0 %v3657
    %v4191 = vpop.f32.mrf.mxu0
    %v4192 = vadd.f32 %v4163, %v4191
    %4193 = vmatmul.f32.gmra.mxu0 %v3660
    %v4194 = vpop.f32.mrf.mxu0
    %v4195 = vadd.f32 %v4166, %v4194
    %4196 = vmatmul.f32.gmra.mxu0 %v3663
    %v4197 = vpop.f32.mrf.mxu0
    %v4198 = vadd.f32 %v4169, %v4197
    %4199 = vdwg.mxu0
    %4200 = vmatpush.msra.mxu0 %v3856
    %4201 = vmatpush.msra.mxu0 %v3852
    %4202 = vmatpush.msra.mxu0 %v3848
    %4203 = vmatpush.msra.mxu0 %v3844
    %4204 = vmatpush.msra.mxu0 %v3840
    %4205 = vmatpush.msra.mxu0 %v3836
    %4206 = vmatpush.msra.mxu0 %v3832
    %4207 = vmatpush.msra.mxu0 %v3828
    %4208 = vmatpush.msra.mxu0 %v3824
    %4209 = vmatpush.msra.mxu0 %v3820
    %4210 = vmatpush.msra.mxu0 %v3816
    %4211 = vmatpush.msra.mxu0 %v3812
    %4212 = vmatpush.msra.mxu0 %v3808
    %4213 = vmatpush.msra.mxu0 %v3804
    %4214 = vmatpush.msra.mxu0 %v3800
    %4215 = vmatpush.msra.mxu0 %v3796
    %4216 = vmatmul.f32.gmra.mxu0 %v3655
    %v4217 = vpop.f32.mrf.mxu0
    %v4218 = vadd.f32 %v4189, %v4217
    %4219 = vmatmul.f32.gmra.mxu0 %v3658
    %v4220 = vpop.f32.mrf.mxu0
    %v4221 = vadd.f32 %v4192, %v4220
    %4222 = vmatmul.f32.gmra.mxu0 %v3661
    %v4223 = vpop.f32.mrf.mxu0
    %v4224 = vadd.f32 %v4195, %v4223
    %4225 = vmatmul.f32.gmra.mxu0 %v3664
    %v4226 = vpop.f32.mrf.mxu0
    %v4227 = vadd.f32 %v4198, %v4226
    %4228 = vdwg.mxu0
    %v4229 = vtanh.pop %v3957
    %v4230 = vtanh.pop %v4044
    %v4231 = vtanh.pop %v4131
    %v4232 = vtanh.pop %v4218
    %v4233 = vtanh.pop %v3960
    %v4234 = vtanh.pop %v4047
    %v4235 = vtanh.pop %v4134
    %v4236 = vtanh.pop %v4221
    %v4237 = vtanh.pop %v3963
    %v4238 = vtanh.pop %v4050
    %v4239 = vtanh.pop %v4137
    %v4240 = vtanh.pop %v4224
    %v4241 = vtanh.pop %v3966
    %v4242 = vtanh.pop %v4053
    %v4243 = vtanh.pop %v4140
    %v4244 = vtanh.pop %v4227
    %v4245 = vld [vmem:[#allocation3] sm:$0xff]
    %v4246 = vld [vmem:[#allocation3 + $0x8] sm:$0xff]
    %v4247 = vld [vmem:[#allocation3 + $0x10] sm:$0xff]
    %v4248 = vld [vmem:[#allocation3 + $0x18] sm:$0xff]
    %v4249 = vld [vmem:[#allocation3 + $0x20] sm:$0xff]
    %v4250 = vld [vmem:[#allocation3 + $0x28] sm:$0xff]
    %v4251 = vld [vmem:[#allocation3 + $0x30] sm:$0xff]
    %v4252 = vld [vmem:[#allocation3 + $0x38] sm:$0xff]
    %v4253 = vld [vmem:[#allocation3 + $0x40] sm:$0xff]
    %v4254 = vld [vmem:[#allocation3 + $0x48] sm:$0xff]
    %v4255 = vld [vmem:[#allocation3 + $0x50] sm:$0xff]
    %v4256 = vld [vmem:[#allocation3 + $0x58] sm:$0xff]
    %v4257 = vld [vmem:[#allocation3 + $0x60] sm:$0xff]
    %v4258 = vld [vmem:[#allocation3 + $0x68] sm:$0xff]
    %v4259 = vld [vmem:[#allocation3 + $0x70] sm:$0xff]
    %v4260 = vld [vmem:[#allocation3 + $0x78] sm:$0xff]
    %v4261 = vld [vmem:[#allocation7] sm:$0xff]
    %v4262 = vld [vmem:[#allocation7 + $0x8] sm:$0xff]
    %v4263 = vld [vmem:[#allocation7 + $0x10] sm:$0xff]
    %v4264 = vld [vmem:[#allocation7 + $0x18] sm:$0xff]
    %v4265 = vld [vmem:[#allocation7 + $0x20] sm:$0xff]
    %v4266 = vld [vmem:[#allocation7 + $0x28] sm:$0xff]
    %v4267 = vld [vmem:[#allocation7 + $0x30] sm:$0xff]
    %v4268 = vld [vmem:[#allocation7 + $0x38] sm:$0xff]
    %v4269 = vld [vmem:[#allocation7 + $0x40] sm:$0xff]
    %v4270 = vld [vmem:[#allocation7 + $0x48] sm:$0xff]
    %v4271 = vld [vmem:[#allocation7 + $0x50] sm:$0xff]
    %v4272 = vld [vmem:[#allocation7 + $0x58] sm:$0xff]
    %v4273 = vld [vmem:[#allocation7 + $0x60] sm:$0xff]
    %v4274 = vld [vmem:[#allocation7 + $0x68] sm:$0xff]
    %v4275 = vld [vmem:[#allocation7 + $0x70] sm:$0xff]
    %v4276 = vld [vmem:[#allocation7 + $0x78] sm:$0xff]
    %v4277 = vsub.f32 1.0, %v4245
    %v4278 = vsub.f32 1.0, %v4246
    %v4279 = vsub.f32 1.0, %v4247
    %v4280 = vsub.f32 1.0, %v4248
    %v4281 = vsub.f32 1.0, %v4249
    %v4282 = vsub.f32 1.0, %v4250
    %v4283 = vsub.f32 1.0, %v4251
    %v4284 = vsub.f32 1.0, %v4252
    %v4285 = vsub.f32 1.0, %v4253
    %v4286 = vsub.f32 1.0, %v4254
    %v4287 = vsub.f32 1.0, %v4255
    %v4288 = vsub.f32 1.0, %v4256
    %v4289 = vsub.f32 1.0, %v4257
    %v4290 = vsub.f32 1.0, %v4258
    %v4291 = vsub.f32 1.0, %v4259
    %v4292 = vsub.f32 1.0, %v4260
    %v4293 = vmul.f32 %v4261, %v4277
    %v4294 = vmul.f32 %v4262, %v4278
    %v4295 = vmul.f32 %v4263, %v4279
    %v4296 = vmul.f32 %v4264, %v4280
    %v4297 = vmul.f32 %v4265, %v4281
    %v4298 = vmul.f32 %v4266, %v4282
    %v4299 = vmul.f32 %v4267, %v4283
    %v4300 = vmul.f32 %v4268, %v4284
    %v4301 = vmul.f32 %v4269, %v4285
    %v4302 = vmul.f32 %v4270, %v4286
    %v4303 = vmul.f32 %v4271, %v4287
    %v4304 = vmul.f32 %v4272, %v4288
    %v4305 = vmul.f32 %v4273, %v4289
    %v4306 = vmul.f32 %v4274, %v4290
    %v4307 = vmul.f32 %v4275, %v4291
    %v4308 = vmul.f32 %v4276, %v4292
    %v4309 = vmul.f32 %v4229, %v4245
    %v4310 = vmul.f32 %v4230, %v4246
    %v4311 = vmul.f32 %v4231, %v4247
    %v4312 = vmul.f32 %v4232, %v4248
    %v4313 = vmul.f32 %v4233, %v4249
    %v4314 = vmul.f32 %v4234, %v4250
    %v4315 = vmul.f32 %v4235, %v4251
    %v4316 = vmul.f32 %v4236, %v4252
    %v4317 = vmul.f32 %v4237, %v4253
    %v4318 = vmul.f32 %v4238, %v4254
    %v4319 = vmul.f32 %v4239, %v4255
    %v4320 = vmul.f32 %v4240, %v4256
    %v4321 = vmul.f32 %v4241, %v4257
    %v4322 = vmul.f32 %v4242, %v4258
    %v4323 = vmul.f32 %v4243, %v4259
    %v4324 = vmul.f32 %v4244, %v4260
    %v4325 = vadd.f32 %v4293, %v4309
    %v4326 = vadd.f32 %v4294, %v4310
    %v4327 = vadd.f32 %v4295, %v4311
    %v4328 = vadd.f32 %v4296, %v4312
    %v4329 = vadd.f32 %v4297, %v4313
    %v4330 = vadd.f32 %v4298, %v4314
    %v4331 = vadd.f32 %v4299, %v4315
    %v4332 = vadd.f32 %v4300, %v4316
    %v4333 = vadd.f32 %v4301, %v4317
    %v4334 = vadd.f32 %v4302, %v4318
    %v4335 = vadd.f32 %v4303, %v4319
    %v4336 = vadd.f32 %v4304, %v4320
    %v4337 = vadd.f32 %v4305, %v4321
    %v4338 = vadd.f32 %v4306, %v4322
    %v4339 = vadd.f32 %v4307, %v4323
    %v4340 = vadd.f32 %v4308, %v4324
    %4341 = vst [vmem:[#allocation12] sm:$0xff] %v4325
    %4342 = vst [vmem:[#allocation12 + $0x8] sm:$0xff] %v4326
    %4343 = vst [vmem:[#allocation12 + $0x10] sm:$0xff] %v4327
    %4344 = vst [vmem:[#allocation12 + $0x18] sm:$0xff] %v4328
    %4345 = vst [vmem:[#allocation12 + $0x20] sm:$0xff] %v4329
    %4346 = vst [vmem:[#allocation12 + $0x28] sm:$0xff] %v4330
    %4347 = vst [vmem:[#allocation12 + $0x30] sm:$0xff] %v4331
    %4348 = vst [vmem:[#allocation12 + $0x38] sm:$0xff] %v4332
    %4349 = vst [vmem:[#allocation12 + $0x40] sm:$0xff] %v4333
    %4350 = vst [vmem:[#allocation12 + $0x48] sm:$0xff] %v4334
    %4351 = vst [vmem:[#allocation12 + $0x50] sm:$0xff] %v4335
    %4352 = vst [vmem:[#allocation12 + $0x58] sm:$0xff] %v4336
    %4353 = vst [vmem:[#allocation12 + $0x60] sm:$0xff] %v4337
    %4354 = vst [vmem:[#allocation12 + $0x68] sm:$0xff] %v4338
    %4355 = vst [vmem:[#allocation12 + $0x70] sm:$0xff] %v4339
    %4356 = vst [vmem:[#allocation12 + $0x78] sm:$0xff] %v4340
    // Predicated region
    $region46: #{tpu_custom_call.1} parent=1 // pred_check
      _
    $region47: #{tpu_custom_call.1} parent=1 // pred_check_branch
      %4358 = sbr.rel (0) target = $region49
    $region48: #{tpu_custom_call.1} parent=1 // pred_region
      %4360 = vsyncadd [#allocation6], 0
      %s4361 = sshll.u32 [#allocation12], 4
      %s4362 = int_to_ptr.vmem [resolvable:$true] %s4361
      %s4363 = sshll.u32 %s7, 4
      %s4364 = int_to_ptr.hbm [resolvable:$true] %s4363
      %4369 = dma.vmem_to_hbm [thread:$0]  %s4362, 2048, %s4364, [#allocation6], 512, 512, 32
    $region49: #{tpu_custom_call.1} parent=1 // pred_fallthru
      _
    // Predicated region
    $region50: #{tpu_custom_call.1} parent=1 // pred_check
      _
    $region51: #{tpu_custom_call.1} parent=1 // pred_check_branch
      %4371 = sbr.rel (0) target = $region53
    $region52: #{tpu_custom_call.1} parent=1 // pred_region
      %4373 = dma.done [#allocation6], 2048
    $region53: #{tpu_custom_call.1} parent=1 // pred_fallthru
      _
    %4374 = vsyncpa [#allocation5], 1
    %4375 = vsyncpa [#allocation8], 1
    %4376 = vsyncpa [#allocation11], 1
    %4377 = vsyncpa [#allocation6], 1

</llo_original>
